<compile_context>
chip_gen: v6e
topology: v6e:2x2x1
jax: 0.10.0
libtpu: 0.0.40
codegen_flags: <defaults>
</compile_context>

<pallas_src>
import jax
import jax.numpy as jnp
import numpy as np
from jax.experimental import pallas as pl
from jax.experimental.pallas import tpu as pltpu

# ----------------------------- config --------------------------------------
VOCAB_SIZE = 50
EMBED_DIM = 32
HIDDEN_DIM = 32
N_LAYERS = 2          # kernel below is specialized to 2 layers (matches config)
PAD_IDX = 0
SEQ_LEN = 8
BATCH = 2


# ------------------------- fused Pallas kernel ------------------------------
def fused_lstm_net_kernel(xs0_ref, ms_ref, wx0_ref, wh0_ref, b0_ref,
                          wx1_ref, wh1_ref, b1_ref, whead_ref, bhead_ref,
                          out_ref, y1in_ref):
    """Whole LSTM_net forward: 2 bi-LSTM layers (direction-stacked on batch)
    + collapsed linear head.  Everything VMEM-resident, time loop unrolled."""
    T, B2, _ = xs0_ref.shape           # B2 = 2*B (fwd rows then bwd rows)
    B = B2 // 2
    H4 = b0_ref.shape[-1]              # 4*H
    H = H4 // 4

    # ---- hoisted constants (built once, reused by every unrolled step) ----
    lane = jax.lax.broadcasted_iota(jnp.int32, (B2, H4), 1)
    is_g_lane = (lane >= 2 * H) & (lane < 3 * H)      # lanes of the 'g' gate
    row = jax.lax.broadcasted_iota(jnp.int32, (B2, 1), 0)
    is_fwd_row = row < B                              # rows 0..B-1 = fwd dir

    def run_layer(load_x, wx, wh, b, store_out):
        """One bidirectional LSTM layer over the unrolled time loop.
        State h/c is (2B, H): fwd rows on top, (time-reversed) bwd rows below."""
        h = jnp.zeros((B2, H), jnp.float32)
        c = jnp.zeros((B2, H), jnp.float32)
        for t in range(T):
            x_t = load_x(t)                           # (2B, In)
            valid = ms_ref[t] > 0.5                   # (2B, 1) validity mask
            # both directions' gate pre-activations in one lane-dense pass:
            # gw columns [0:4H] use fwd weights, [4H:8H] use bwd weights
            gw = (jnp.dot(x_t, wx, preferred_element_type=jnp.float32)
                  + jnp.dot(h, wh, preferred_element_type=jnp.float32))   # (2B, 8H)
            gates = jnp.where(is_fwd_row, gw[:, :H4], gw[:, H4:]) + b     # (2B, 4H)
            # full-vreg activation with a SINGLE transcendental:
            #   g lanes   -> tanh(x)
            #   i/f/o lanes -> sigmoid(x) = 0.5*tanh(0.5*x) + 0.5
            th = jnp.tanh(jnp.where(is_g_lane, gates, 0.5 * gates))
            act = jnp.where(is_g_lane, th, 0.5 * th + 0.5)
            i_g = act[:, 0:H]
            f_g = act[:, H:2 * H]
            g_g = act[:, 2 * H:3 * H]
            o_g = act[:, 3 * H:4 * H]
            c_new = f_g * c + i_g * g_g
            h_new = o_g * jnp.tanh(c_new)
            # freeze state on padded positions (pack_padded_sequence emulation)
            c = jnp.where(valid, c_new, c)
            h = jnp.where(valid, h_new, h)
            if store_out is not None:
                store_out(t, h)
        return h

    # -------------------- layer 0 (input: embedded tokens) ------------------
    wx0 = wx0_ref[...]
    wh0 = wh0_ref[...]
    b0 = b0_ref[...]

    def store_layer0(t, h):
        # h[:B]  = fwd output at original time t
        # h[B:]  = bwd output at original time T-1-t
        # y1in_ref[s] must hold layer-1's *stacked* input for step s:
        #   rows 0..B-1  -> [fwd_out(s)      | bwd_out(s)     ]
        #   rows B..2B-1 -> [fwd_out(T-1-s)  | bwd_out(T-1-s) ]
        hf = h[:B]
        hb = h[B:]
        y1in_ref[t, 0:B, 0:H] = hf
        y1in_ref[T - 1 - t, B:B2, 0:H] = hf
        y1in_ref[T - 1 - t, 0:B, H:2 * H] = hb
        y1in_ref[t, B:B2, H:2 * H] = hb

    run_layer(lambda t: xs0_ref[t], wx0, wh0, b0, store_layer0)

    # -------------------- layer 1 (input: layer-0 outputs) ------------------
    wx1 = wx1_ref[...]
    wh1 = wh1_ref[...]
    b1 = b1_ref[...]
    h_fin = run_layer(lambda t: y1in_ref[t], wx1, wh1, b1, None)

    # ---- collapsed FC head: out = [h_fwd | h_bwd] @ W_head + b_head --------
    whead = whead_ref[...]                            # (2H, 1)
    out_ref[...] = (
        jnp.dot(h_fin[:B], whead[0:H, :], preferred_element_type=jnp.float32)
        + jnp.dot(h_fin[B:], whead[H:2 * H, :], preferred_element_type=jnp.float32)
        + bhead_ref[...])


# ----------------------------- wrapper ---------------------------------------
def _wide_lstm_weights(p_f, p_b, batch):
    """Direction-concatenated weights + direction-stacked, batch-broadcast bias."""
    wx = jnp.concatenate([p_f["w_ih"], p_b["w_ih"]], axis=1)   # (In, 8H)
    wh = jnp.concatenate([p_f["w_hh"], p_b["w_hh"]], axis=1)   # (H,  8H)
    h4 = p_f["b"].shape[-1]
    b = jnp.concatenate([jnp.broadcast_to(p_f["b"], (batch, h4)),
                         jnp.broadcast_to(p_b["b"], (batch, h4))], axis=0)  # (2B,4H)
    return wx, wh, b


@jax.jit
def lstm_net_forward(params, text, text_lengths):
    # text: (T, B) int32, lengths sorted descending (enforce_sorted=True)
    T, B = text.shape
    H = HIDDEN_DIM
    emb = params["embedding"][text]                                   # (T, B, E)
    mask = (jnp.arange(T)[:, None] < text_lengths[None, :]).astype(jnp.float32)
    mask = mask[:, :, None]                                           # (T, B, 1)

    # direction-stacked inputs: fwd rows (original order) + bwd rows (reversed)
    xs0 = jnp.concatenate([emb, emb[::-1]], axis=1)                   # (T, 2B, E)
    ms = jnp.concatenate([mask, mask[::-1]], axis=1)                  # (T, 2B, 1)

    wx0, wh0, b0 = _wide_lstm_weights(params["lstm"][0]["fwd"],
                                      params["lstm"][0]["bwd"], B)
    wx1, wh1, b1 = _wide_lstm_weights(params["lstm"][1]["fwd"],
                                      params["lstm"][1]["bwd"], B)

    # activation-free fc1/fc2/fc3 collapse to a single affine map
    fc = params["fc"]
    w_head = fc["w1"] @ fc["w2"] @ fc["w3"]                           # (2H, 1)
    b_head = (fc["b1"] @ fc["w2"] + fc["b2"]) @ fc["w3"] + fc["b3"]   # (1, 1)

    return pl.pallas_call(
        fused_lstm_net_kernel,
        out_shape=jax.ShapeDtypeStruct((B, 1), jnp.float32),
        scratch_shapes=[pltpu.VMEM((T, 2 * B, 2 * H), jnp.float32)],  # layer-1 input
    )(xs0, ms, wx0, wh0, b0, wx1, wh1, b1, w_head, b_head)


# ----------------------------- parameters -----------------------------------
def init_params(key):
    H, E, V = HIDDEN_DIM, EMBED_DIM, VOCAB_SIZE
    k = 1.0 / np.sqrt(H)
    keys = iter(jax.random.split(key, 64))

    def u(shape, scale=k):
        return jax.random.uniform(next(keys), shape, jnp.float32, -scale, scale)

    emb = u((V, E), 0.1)
    emb = emb.at[PAD_IDX].set(0.0)          # padding_idx row is zero

    lstm = []
    for layer in range(N_LAYERS):
        in_dim = E if layer == 0 else 2 * H
        layer_p = {}
        for d in ("fwd", "bwd"):
            layer_p[d] = dict(
                w_ih=u((in_dim, 4 * H)),     # pre-transposed (In, 4H)
                w_hh=u((H, 4 * H)),
                b=u((1, 4 * H)) + u((1, 4 * H)),   # b_ih + b_hh combined
            )
        lstm.append(layer_p)

    fc = dict(
        w1=u((2 * H, 3 * H), 1.0 / np.sqrt(2 * H)), b1=u((1, 3 * H), 1.0 / np.sqrt(2 * H)),
        w2=u((3 * H, 2 * H), 1.0 / np.sqrt(3 * H)), b2=u((1, 2 * H), 1.0 / np.sqrt(3 * H)),
        w3=u((2 * H, 1), 1.0 / np.sqrt(2 * H)), b3=u((1, 1), 1.0 / np.sqrt(2 * H)),
    )
    return dict(embedding=emb, lstm=lstm, fc=fc)


# ----------------------------- pure-JAX reference ----------------------------
def _ref_lstm_dir(x, mask, w_ih, w_hh, b, reverse):
    T, B, _ = x.shape
    H = w_hh.shape[0]

    def step(carry, inp):
        h, c = carry
        x_t, m_t = inp
        gates = x_t @ w_ih + h @ w_hh + b
        i = jax.nn.sigmoid(gates[:, 0:H])
        f = jax.nn.sigmoid(gates[:, H:2 * H])
        g = jnp.tanh(gates[:, 2 * H:3 * H])
        o = jax.nn.sigmoid(gates[:, 3 * H:4 * H])
        c_new = f * c + i * g
        h_new = o * jnp.tanh(c_new)
        c = m_t * c_new + (1.0 - m_t) * c
        h = m_t * h_new + (1.0 - m_t) * h
        return (h, c), h

    xs = (x[::-1], mask[::-1]) if reverse else (x, mask)
    (h, _), outs = jax.lax.scan(step, (jnp.zeros((B, H)), jnp.zeros((B, H))), xs)
    if reverse:
        outs = outs[::-1]
    return outs, h


def lstm_net_reference(params, text, text_lengths):
    T, B = text.shape
    emb = params["embedding"][text]
    mask = (jnp.arange(T)[:, None] < text_lengths[None, :]).astype(jnp.float32)[:, :, None]
    x = emb
    hf = hb = None
    for layer in range(N_LAYERS):
        pf = params["lstm"][layer]["fwd"]
        pb = params["lstm"][layer]["bwd"]
        out_f, hf = _ref_lstm_dir(x, mask, pf["w_ih"], pf["w_hh"], pf["b"], False)
        out_b, hb = _ref_lstm_dir(x, mask, pb["w_ih"], pb["w_hh"], pb["b"], True)
        x = jnp.concatenate([out_f, out_b], axis=-1)
    hidden = jnp.concatenate([hf, hb], axis=-1)
    fc = params["fc"]
    out = hidden @ fc["w1"] + fc["b1"]
    out = out @ fc["w2"] + fc["b2"]
    out = out @ fc["w3"] + fc["b3"]
    return out


# --------------------------------- main --------------------------------------
if __name__ == "__main__":
    key = jax.random.PRNGKey(0)
    pkey, tkey = jax.random.split(key)
    params = init_params(pkey)

    # lengths sorted descending (pack_padded_sequence enforce_sorted=True)
    text_lengths = jnp.array([SEQ_LEN, 5], dtype=jnp.int32)
    tokens = jax.random.randint(tkey, (SEQ_LEN, BATCH), 1, VOCAB_SIZE, jnp.int32)
    pad_mask = jnp.arange(SEQ_LEN)[:, None] < text_lengths[None, :]
    text = jnp.where(pad_mask, tokens, PAD_IDX)                     # (T, B)

    out = jax.block_until_ready(lstm_net_forward(params, text, text_lengths))
    ref = jax.block_until_ready(lstm_net_reference(params, text, text_lengths))

    np.testing.assert_allclose(np.asarray(out), np.asarray(ref),
                               rtol=1e-4, atol=1e-4)
    assert out.shape == (BATCH, 1)
    print("KERNEL_OK")
</pallas_src>

<mosaic_0001>
module attributes {stable_mosaic.version = 11 : i64} {
  func.func @fused_lstm_net_kernel(%arg0: memref<8x4x32xf32, #tpu.memory_space<vmem>>, %arg1: memref<8x4x1xf32, #tpu.memory_space<vmem>>, %arg2: memref<32x256xf32, #tpu.memory_space<vmem>>, %arg3: memref<32x256xf32, #tpu.memory_space<vmem>>, %arg4: memref<4x128xf32, #tpu.memory_space<vmem>>, %arg5: memref<64x256xf32, #tpu.memory_space<vmem>>, %arg6: memref<32x256xf32, #tpu.memory_space<vmem>>, %arg7: memref<4x128xf32, #tpu.memory_space<vmem>>, %arg8: memref<64x1xf32, #tpu.memory_space<vmem>>, %arg9: memref<1x1xf32, #tpu.memory_space<vmem>>, %arg10: memref<2x1xf32, #tpu.memory_space<vmem>>, %arg11: memref<8x4x64xf32, #tpu.memory_space<vmem>>) attributes {dimension_semantics = [], scalar_prefetch = 0 : i64, scratch_operands = 1 : i64, tpu.core_type = #tpu.core_type<tc>} {
    %0 = tpu.iota {dimensions = array<i32: 1>} : vector<4x128xi32>
    %c64_i32 = arith.constant 64 : i32
    %1 = vector.broadcast %c64_i32 : i32 to vector<4x128xi32>
    %2 = arith.cmpi sge, %0, %1 : vector<4x128xi32>
    %c96_i32 = arith.constant 96 : i32
    %3 = vector.broadcast %c96_i32 : i32 to vector<4x128xi32>
    %4 = arith.cmpi slt, %0, %3 : vector<4x128xi32>
    %5 = arith.andi %2, %4 : vector<4x128xi1>
    %6 = tpu.iota {dimensions = array<i32: 0>} : vector<4x1xi32>
    %c2_i32 = arith.constant 2 : i32
    %7 = vector.broadcast %c2_i32 : i32 to vector<4x1xi32>
    %8 = arith.cmpi slt, %6, %7 : vector<4x1xi32>
    %c0 = arith.constant 0 : index
    %c0_0 = arith.constant 0 : index
    %9 = vector.load %arg2[%c0, %c0_0] : memref<32x256xf32, #tpu.memory_space<vmem>>, vector<32x256xf32>
    %c0_1 = arith.constant 0 : index
    %c0_2 = arith.constant 0 : index
    %10 = vector.load %arg3[%c0_1, %c0_2] : memref<32x256xf32, #tpu.memory_space<vmem>>, vector<32x256xf32>
    %c0_3 = arith.constant 0 : index
    %c0_4 = arith.constant 0 : index
    %11 = vector.load %arg4[%c0_3, %c0_4] : memref<4x128xf32, #tpu.memory_space<vmem>>, vector<4x128xf32>
    %cst = arith.constant 0.000000e+00 : f32
    %12 = vector.broadcast %cst : f32 to vector<4x32xf32>
    %cst_5 = arith.constant 0.000000e+00 : f32
    %13 = vector.broadcast %cst_5 : f32 to vector<4x32xf32>
    %c0_6 = arith.constant 0 : index
    %c0_7 = arith.constant 0 : index
    %c0_8 = arith.constant 0 : index
    %14 = vector.load %arg0[%c0_6, %c0_7, %c0_8] : memref<8x4x32xf32, #tpu.memory_space<vmem>>, vector<1x4x32xf32>
    %15 = vector.shape_cast %14 : vector<1x4x32xf32> to vector<4x32xf32>
    %c0_9 = arith.constant 0 : index
    %c0_10 = arith.constant 0 : index
    %c0_11 = arith.constant 0 : index
    %16 = vector.load %arg1[%c0_9, %c0_10, %c0_11] : memref<8x4x1xf32, #tpu.memory_space<vmem>>, vector<1x4x1xf32>
    %17 = vector.shape_cast %16 : vector<1x4x1xf32> to vector<4x1xf32>
    %cst_12 = arith.constant 5.000000e-01 : f32
    %18 = vector.broadcast %cst_12 : f32 to vector<4x1xf32>
    %19 = arith.cmpf ogt, %17, %18 : vector<4x1xf32>
    %cst_13 = arith.constant dense<0.000000e+00> : vector<4x256xf32>
    %20 = tpu.matmul %15, %9, %cst_13 {dimension_numbers = #tpu.dot_dimension_numbers<[1], [0], [0], [1], [0, 0, 1, 1], [], []>} : vector<4x32xf32>, vector<32x256xf32>, vector<4x256xf32> -> vector<4x256xf32>
    %cst_14 = arith.constant dense<0.000000e+00> : vector<4x256xf32>
    %21 = tpu.matmul %12, %10, %cst_14 {dimension_numbers = #tpu.dot_dimension_numbers<[1], [0], [0], [1], [0, 0, 1, 1], [], []>} : vector<4x32xf32>, vector<32x256xf32>, vector<4x256xf32> -> vector<4x256xf32>
    %22 = arith.addf %20, %21 : vector<4x256xf32>
    %23 = vector.extract_strided_slice %22 {offsets = [0, 0], sizes = [4, 128], strides = [1, 1]} : vector<4x256xf32> to vector<4x128xf32>
    %24 = vector.extract_strided_slice %22 {offsets = [0, 128], sizes = [4, 128], strides = [1, 1]} : vector<4x256xf32> to vector<4x128xf32>
    %25 = vector.shape_cast %8 : vector<4x1xi1> to vector<4x1xi1>
    %26 = vector.broadcast %25 : vector<4x1xi1> to vector<4x128xi1>
    %27 = arith.select %26, %23, %24 : vector<4x128xi1>, vector<4x128xf32>
    %28 = arith.addf %27, %11 : vector<4x128xf32>
    %cst_15 = arith.constant 5.000000e-01 : f32
    %29 = vector.broadcast %cst_15 : f32 to vector<4x128xf32>
    %30 = arith.mulf %29, %28 : vector<4x128xf32>
    %31 = arith.select %5, %28, %30 : vector<4x128xi1>, vector<4x128xf32>
    %32 = math.tanh %31 : vector<4x128xf32>
    %cst_16 = arith.constant 5.000000e-01 : f32
    %33 = vector.broadcast %cst_16 : f32 to vector<4x128xf32>
    %34 = arith.mulf %33, %32 : vector<4x128xf32>
    %cst_17 = arith.constant 5.000000e-01 : f32
    %35 = vector.broadcast %cst_17 : f32 to vector<4x128xf32>
    %36 = arith.addf %34, %35 : vector<4x128xf32>
    %37 = arith.select %5, %32, %36 : vector<4x128xi1>, vector<4x128xf32>
    %38 = vector.extract_strided_slice %37 {offsets = [0, 0], sizes = [4, 32], strides = [1, 1]} : vector<4x128xf32> to vector<4x32xf32>
    %39 = vector.extract_strided_slice %37 {offsets = [0, 32], sizes = [4, 32], strides = [1, 1]} : vector<4x128xf32> to vector<4x32xf32>
    %40 = vector.extract_strided_slice %37 {offsets = [0, 64], sizes = [4, 32], strides = [1, 1]} : vector<4x128xf32> to vector<4x32xf32>
    %41 = vector.extract_strided_slice %37 {offsets = [0, 96], sizes = [4, 32], strides = [1, 1]} : vector<4x128xf32> to vector<4x32xf32>
    %42 = arith.mulf %39, %13 : vector<4x32xf32>
    %43 = arith.mulf %38, %40 : vector<4x32xf32>
    %44 = arith.addf %42, %43 : vector<4x32xf32>
    %45 = math.tanh %44 : vector<4x32xf32>
    %46 = arith.mulf %41, %45 : vector<4x32xf32>
    %47 = vector.shape_cast %19 : vector<4x1xi1> to vector<4x1xi1>
    %48 = vector.broadcast %47 : vector<4x1xi1> to vector<4x32xi1>
    %49 = arith.select %48, %44, %13 : vector<4x32xi1>, vector<4x32xf32>
    %50 = vector.shape_cast %19 : vector<4x1xi1> to vector<4x1xi1>
    %51 = vector.broadcast %50 : vector<4x1xi1> to vector<4x32xi1>
    %52 = arith.select %51, %46, %12 : vector<4x32xi1>, vector<4x32xf32>
    %53 = vector.extract_strided_slice %52 {offsets = [0, 0], sizes = [2, 32], strides = [1, 1]} : vector<4x32xf32> to vector<2x32xf32>
    %54 = vector.extract_strided_slice %52 {offsets = [2, 0], sizes = [2, 32], strides = [1, 1]} : vector<4x32xf32> to vector<2x32xf32>
    %c0_18 = arith.constant 0 : index
    %c0_19 = arith.constant 0 : index
    %c0_20 = arith.constant 0 : index
    %55 = vector.load %arg11[%c0_18, %c0_19, %c0_20] : memref<8x4x64xf32, #tpu.memory_space<vmem>>, vector<1x2x32xf32>
    %56 = vector.shape_cast %55 : vector<1x2x32xf32> to vector<2x32xf32>
    %57 = vector.shape_cast %53 : vector<2x32xf32> to vector<1x2x32xf32>
    tpu.vector_store %arg11[%c0_18, %c0_19, %c0_20], %57 {strides = array<i32>} : memref<8x4x64xf32, #tpu.memory_space<vmem>>, vector<1x2x32xf32>,
    %c7 = arith.constant 7 : index
    %c2 = arith.constant 2 : index
    %c0_21 = arith.constant 0 : index
    %58 = vector.load %arg11[%c7, %c2, %c0_21] : memref<8x4x64xf32, #tpu.memory_space<vmem>>, vector<1x2x32xf32>
    %59 = vector.shape_cast %58 : vector<1x2x32xf32> to vector<2x32xf32>
    %60 = vector.shape_cast %53 : vector<2x32xf32> to vector<1x2x32xf32>
    tpu.vector_store %arg11[%c7, %c2, %c0_21], %60 {strides = array<i32>} : memref<8x4x64xf32, #tpu.memory_space<vmem>>, vector<1x2x32xf32>,
    %c7_22 = arith.constant 7 : index
    %c0_23 = arith.constant 0 : index
    %c32 = arith.constant 32 : index
    %61 = vector.load %arg11[%c7_22, %c0_23, %c32] : memref<8x4x64xf32, #tpu.memory_space<vmem>>, vector<1x2x32xf32>
    %62 = vector.shape_cast %61 : vector<1x2x32xf32> to vector<2x32xf32>
    %63 = vector.shape_cast %54 : vector<2x32xf32> to vector<1x2x32xf32>
    tpu.vector_store %arg11[%c7_22, %c0_23, %c32], %63 {strides = array<i32>} : memref<8x4x64xf32, #tpu.memory_space<vmem>>, vector<1x2x32xf32>,
    %c0_24 = arith.constant 0 : index
    %c2_25 = arith.constant 2 : index
    %c32_26 = arith.constant 32 : index
    %64 = vector.load %arg11[%c0_24, %c2_25, %c32_26] : memref<8x4x64xf32, #tpu.memory_space<vmem>>, vector<1x2x32xf32>
    %65 = vector.shape_cast %64 : vector<1x2x32xf32> to vector<2x32xf32>
    %66 = vector.shape_cast %54 : vector<2x32xf32> to vector<1x2x32xf32>
    tpu.vector_store %arg11[%c0_24, %c2_25, %c32_26], %66 {strides = array<i32>} : memref<8x4x64xf32, #tpu.memory_space<vmem>>, vector<1x2x32xf32>,
    %c1 = arith.constant 1 : index
    %c0_27 = arith.constant 0 : index
    %c0_28 = arith.constant 0 : index
    %67 = vector.load %arg0[%c1, %c0_27, %c0_28] : memref<8x4x32xf32, #tpu.memory_space<vmem>>, vector<1x4x32xf32>
    %68 = vector.shape_cast %67 : vector<1x4x32xf32> to vector<4x32xf32>
    %c1_29 = arith.constant 1 : index
    %c0_30 = arith.constant 0 : index
    %c0_31 = arith.constant 0 : index
    %69 = vector.load %arg1[%c1_29, %c0_30, %c0_31] : memref<8x4x1xf32, #tpu.memory_space<vmem>>, vector<1x4x1xf32>
    %70 = vector.shape_cast %69 : vector<1x4x1xf32> to vector<4x1xf32>
    %cst_32 = arith.constant 5.000000e-01 : f32
    %71 = vector.broadcast %cst_32 : f32 to vector<4x1xf32>
    %72 = arith.cmpf ogt, %70, %71 : vector<4x1xf32>
    %cst_33 = arith.constant dense<0.000000e+00> : vector<4x256xf32>
    %73 = tpu.matmul %68, %9, %cst_33 {dimension_numbers = #tpu.dot_dimension_numbers<[1], [0], [0], [1], [0, 0, 1, 1], [], []>} : vector<4x32xf32>, vector<32x256xf32>, vector<4x256xf32> -> vector<4x256xf32>
    %cst_34 = arith.constant dense<0.000000e+00> : vector<4x256xf32>
    %74 = tpu.matmul %52, %10, %cst_34 {dimension_numbers = #tpu.dot_dimension_numbers<[1], [0], [0], [1], [0, 0, 1, 1], [], []>} : vector<4x32xf32>, vector<32x256xf32>, vector<4x256xf32> -> vector<4x256xf32>
    %75 = arith.addf %73, %74 : vector<4x256xf32>
    %76 = vector.extract_strided_slice %75 {offsets = [0, 0], sizes = [4, 128], strides = [1, 1]} : vector<4x256xf32> to vector<4x128xf32>
    %77 = vector.extract_strided_slice %75 {offsets = [0, 128], sizes = [4, 128], strides = [1, 1]} : vector<4x256xf32> to vector<4x128xf32>
    %78 = vector.shape_cast %8 : vector<4x1xi1> to vector<4x1xi1>
    %79 = vector.broadcast %78 : vector<4x1xi1> to vector<4x128xi1>
    %80 = arith.select %79, %76, %77 : vector<4x128xi1>, vector<4x128xf32>
    %81 = arith.addf %80, %11 : vector<4x128xf32>
    %cst_35 = arith.constant 5.000000e-01 : f32
    %82 = vector.broadcast %cst_35 : f32 to vector<4x128xf32>
    %83 = arith.mulf %82, %81 : vector<4x128xf32>
    %84 = arith.select %5, %81, %83 : vector<4x128xi1>, vector<4x128xf32>
    %85 = math.tanh %84 : vector<4x128xf32>
    %cst_36 = arith.constant 5.000000e-01 : f32
    %86 = vector.broadcast %cst_36 : f32 to vector<4x128xf32>
    %87 = arith.mulf %86, %85 : vector<4x128xf32>
    %cst_37 = arith.constant 5.000000e-01 : f32
    %88 = vector.broadcast %cst_37 : f32 to vector<4x128xf32>
    %89 = arith.addf %87, %88 : vector<4x128xf32>
    %90 = arith.select %5, %85, %89 : vector<4x128xi1>, vector<4x128xf32>
    %91 = vector.extract_strided_slice %90 {offsets = [0, 0], sizes = [4, 32], strides = [1, 1]} : vector<4x128xf32> to vector<4x32xf32>
    %92 = vector.extract_strided_slice %90 {offsets = [0, 32], sizes = [4, 32], strides = [1, 1]} : vector<4x128xf32> to vector<4x32xf32>
    %93 = vector.extract_strided_slice %90 {offsets = [0, 64], sizes = [4, 32], strides = [1, 1]} : vector<4x128xf32> to vector<4x32xf32>
    %94 = vector.extract_strided_slice %90 {offsets = [0, 96], sizes = [4, 32], strides = [1, 1]} : vector<4x128xf32> to vector<4x32xf32>
    %95 = arith.mulf %92, %49 : vector<4x32xf32>
    %96 = arith.mulf %91, %93 : vector<4x32xf32>
    %97 = arith.addf %95, %96 : vector<4x32xf32>
    %98 = math.tanh %97 : vector<4x32xf32>
    %99 = arith.mulf %94, %98 : vector<4x32xf32>
    %100 = vector.shape_cast %72 : vector<4x1xi1> to vector<4x1xi1>
    %101 = vector.broadcast %100 : vector<4x1xi1> to vector<4x32xi1>
    %102 = arith.select %101, %97, %49 : vector<4x32xi1>, vector<4x32xf32>
    %103 = vector.shape_cast %72 : vector<4x1xi1> to vector<4x1xi1>
    %104 = vector.broadcast %103 : vector<4x1xi1> to vector<4x32xi1>
    %105 = arith.select %104, %99, %52 : vector<4x32xi1>, vector<4x32xf32>
    %106 = vector.extract_strided_slice %105 {offsets = [0, 0], sizes = [2, 32], strides = [1, 1]} : vector<4x32xf32> to vector<2x32xf32>
    %107 = vector.extract_strided_slice %105 {offsets = [2, 0], sizes = [2, 32], strides = [1, 1]} : vector<4x32xf32> to vector<2x32xf32>
    %c1_38 = arith.constant 1 : index
    %c0_39 = arith.constant 0 : index
    %c0_40 = arith.constant 0 : index
    %108 = vector.load %arg11[%c1_38, %c0_39, %c0_40] : memref<8x4x64xf32, #tpu.memory_space<vmem>>, vector<1x2x32xf32>
    %109 = vector.shape_cast %108 : vector<1x2x32xf32> to vector<2x32xf32>
    %110 = vector.shape_cast %106 : vector<2x32xf32> to vector<1x2x32xf32>
    tpu.vector_store %arg11[%c1_38, %c0_39, %c0_40], %110 {strides = array<i32>} : memref<8x4x64xf32, #tpu.memory_space<vmem>>, vector<1x2x32xf32>,
    %c6 = arith.constant 6 : index
    %c2_41 = arith.constant 2 : index
    %c0_42 = arith.constant 0 : index
    %111 = vector.load %arg11[%c6, %c2_41, %c0_42] : memref<8x4x64xf32, #tpu.memory_space<vmem>>, vector<1x2x32xf32>
    %112 = vector.shape_cast %111 : vector<1x2x32xf32> to vector<2x32xf32>
    %113 = vector.shape_cast %106 : vector<2x32xf32> to vector<1x2x32xf32>
    tpu.vector_store %arg11[%c6, %c2_41, %c0_42], %113 {strides = array<i32>} : memref<8x4x64xf32, #tpu.memory_space<vmem>>, vector<1x2x32xf32>,
    %c6_43 = arith.constant 6 : index
    %c0_44 = arith.constant 0 : index
    %c32_45 = arith.constant 32 : index
    %114 = vector.load %arg11[%c6_43, %c0_44, %c32_45] : memref<8x4x64xf32, #tpu.memory_space<vmem>>, vector<1x2x32xf32>
    %115 = vector.shape_cast %114 : vector<1x2x32xf32> to vector<2x32xf32>
    %116 = vector.shape_cast %107 : vector<2x32xf32> to vector<1x2x32xf32>
    tpu.vector_store %arg11[%c6_43, %c0_44, %c32_45], %116 {strides = array<i32>} : memref<8x4x64xf32, #tpu.memory_space<vmem>>, vector<1x2x32xf32>,
    %c1_46 = arith.constant 1 : index
    %c2_47 = arith.constant 2 : index
    %c32_48 = arith.constant 32 : index
    %117 = vector.load %arg11[%c1_46, %c2_47, %c32_48] : memref<8x4x64xf32, #tpu.memory_space<vmem>>, vector<1x2x32xf32>
    %118 = vector.shape_cast %117 : vector<1x2x32xf32> to vector<2x32xf32>
    %119 = vector.shape_cast %107 : vector<2x32xf32> to vector<1x2x32xf32>
    tpu.vector_store %arg11[%c1_46, %c2_47, %c32_48], %119 {strides = array<i32>} : memref<8x4x64xf32, #tpu.memory_space<vmem>>, vector<1x2x32xf32>,
    %c2_49 = arith.constant 2 : index
    %c0_50 = arith.constant 0 : index
    %c0_51 = arith.constant 0 : index
    %120 = vector.load %arg0[%c2_49, %c0_50, %c0_51] : memref<8x4x32xf32, #tpu.memory_space<vmem>>, vector<1x4x32xf32>
    %121 = vector.shape_cast %120 : vector<1x4x32xf32> to vector<4x32xf32>
    %c2_52 = arith.constant 2 : index
    %c0_53 = arith.constant 0 : index
    %c0_54 = arith.constant 0 : index
    %122 = vector.load %arg1[%c2_52, %c0_53, %c0_54] : memref<8x4x1xf32, #tpu.memory_space<vmem>>, vector<1x4x1xf32>
    %123 = vector.shape_cast %122 : vector<1x4x1xf32> to vector<4x1xf32>
    %cst_55 = arith.constant 5.000000e-01 : f32
    %124 = vector.broadcast %cst_55 : f32 to vector<4x1xf32>
    %125 = arith.cmpf ogt, %123, %124 : vector<4x1xf32>
    %cst_56 = arith.constant dense<0.000000e+00> : vector<4x256xf32>
    %126 = tpu.matmul %121, %9, %cst_56 {dimension_numbers = #tpu.dot_dimension_numbers<[1], [0], [0], [1], [0, 0, 1, 1], [], []>} : vector<4x32xf32>, vector<32x256xf32>, vector<4x256xf32> -> vector<4x256xf32>
    %cst_57 = arith.constant dense<0.000000e+00> : vector<4x256xf32>
    %127 = tpu.matmul %105, %10, %cst_57 {dimension_numbers = #tpu.dot_dimension_numbers<[1], [0], [0], [1], [0, 0, 1, 1], [], []>} : vector<4x32xf32>, vector<32x256xf32>, vector<4x256xf32> -> vector<4x256xf32>
    %128 = arith.addf %126, %127 : vector<4x256xf32>
    %129 = vector.extract_strided_slice %128 {offsets = [0, 0], sizes = [4, 128], strides = [1, 1]} : vector<4x256xf32> to vector<4x128xf32>
    %130 = vector.extract_strided_slice %128 {offsets = [0, 128], sizes = [4, 128], strides = [1, 1]} : vector<4x256xf32> to vector<4x128xf32>
    %131 = vector.shape_cast %8 : vector<4x1xi1> to vector<4x1xi1>
    %132 = vector.broadcast %131 : vector<4x1xi1> to vector<4x128xi1>
    %133 = arith.select %132, %129, %130 : vector<4x128xi1>, vector<4x128xf32>
    %134 = arith.addf %133, %11 : vector<4x128xf32>
    %cst_58 = arith.constant 5.000000e-01 : f32
    %135 = vector.broadcast %cst_58 : f32 to vector<4x128xf32>
    %136 = arith.mulf %135, %134 : vector<4x128xf32>
    %137 = arith.select %5, %134, %136 : vector<4x128xi1>, vector<4x128xf32>
    %138 = math.tanh %137 : vector<4x128xf32>
    %cst_59 = arith.constant 5.000000e-01 : f32
    %139 = vector.broadcast %cst_59 : f32 to vector<4x128xf32>
    %140 = arith.mulf %139, %138 : vector<4x128xf32>
    %cst_60 = arith.constant 5.000000e-01 : f32
    %141 = vector.broadcast %cst_60 : f32 to vector<4x128xf32>
    %142 = arith.addf %140, %141 : vector<4x128xf32>
    %143 = arith.select %5, %138, %142 : vector<4x128xi1>, vector<4x128xf32>
    %144 = vector.extract_strided_slice %143 {offsets = [0, 0], sizes = [4, 32], strides = [1, 1]} : vector<4x128xf32> to vector<4x32xf32>
    %145 = vector.extract_strided_slice %143 {offsets = [0, 32], sizes = [4, 32], strides = [1, 1]} : vector<4x128xf32> to vector<4x32xf32>
    %146 = vector.extract_strided_slice %143 {offsets = [0, 64], sizes = [4, 32], strides = [1, 1]} : vector<4x128xf32> to vector<4x32xf32>
    %147 = vector.extract_strided_slice %143 {offsets = [0, 96], sizes = [4, 32], strides = [1, 1]} : vector<4x128xf32> to vector<4x32xf32>
    %148 = arith.mulf %145, %102 : vector<4x32xf32>
    %149 = arith.mulf %144, %146 : vector<4x32xf32>
    %150 = arith.addf %148, %149 : vector<4x32xf32>
    %151 = math.tanh %150 : vector<4x32xf32>
    %152 = arith.mulf %147, %151 : vector<4x32xf32>
    %153 = vector.shape_cast %125 : vector<4x1xi1> to vector<4x1xi1>
    %154 = vector.broadcast %153 : vector<4x1xi1> to vector<4x32xi1>
    %155 = arith.select %154, %150, %102 : vector<4x32xi1>, vector<4x32xf32>
    %156 = vector.shape_cast %125 : vector<4x1xi1> to vector<4x1xi1>
    %157 = vector.broadcast %156 : vector<4x1xi1> to vector<4x32xi1>
    %158 = arith.select %157, %152, %105 : vector<4x32xi1>, vector<4x32xf32>
    %159 = vector.extract_strided_slice %158 {offsets = [0, 0], sizes = [2, 32], strides = [1, 1]} : vector<4x32xf32> to vector<2x32xf32>
    %160 = vector.extract_strided_slice %158 {offsets = [2, 0], sizes = [2, 32], strides = [1, 1]} : vector<4x32xf32> to vector<2x32xf32>
    %c2_61 = arith.constant 2 : index
    %c0_62 = arith.constant 0 : index
    %c0_63 = arith.constant 0 : index
    %161 = vector.load %arg11[%c2_61, %c0_62, %c0_63] : memref<8x4x64xf32, #tpu.memory_space<vmem>>, vector<1x2x32xf32>
    %162 = vector.shape_cast %161 : vector<1x2x32xf32> to vector<2x32xf32>
    %163 = vector.shape_cast %159 : vector<2x32xf32> to vector<1x2x32xf32>
    tpu.vector_store %arg11[%c2_61, %c0_62, %c0_63], %163 {strides = array<i32>} : memref<8x4x64xf32, #tpu.memory_space<vmem>>, vector<1x2x32xf32>,
    %c5 = arith.constant 5 : index
    %c2_64 = arith.constant 2 : index
    %c0_65 = arith.constant 0 : index
    %164 = vector.load %arg11[%c5, %c2_64, %c0_65] : memref<8x4x64xf32, #tpu.memory_space<vmem>>, vector<1x2x32xf32>
    %165 = vector.shape_cast %164 : vector<1x2x32xf32> to vector<2x32xf32>
    %166 = vector.shape_cast %159 : vector<2x32xf32> to vector<1x2x32xf32>
    tpu.vector_store %arg11[%c5, %c2_64, %c0_65], %166 {strides = array<i32>} : memref<8x4x64xf32, #tpu.memory_space<vmem>>, vector<1x2x32xf32>,
    %c5_66 = arith.constant 5 : index
    %c0_67 = arith.constant 0 : index
    %c32_68 = arith.constant 32 : index
    %167 = vector.load %arg11[%c5_66, %c0_67, %c32_68] : memref<8x4x64xf32, #tpu.memory_space<vmem>>, vector<1x2x32xf32>
    %168 = vector.shape_cast %167 : vector<1x2x32xf32> to vector<2x32xf32>
    %169 = vector.shape_cast %160 : vector<2x32xf32> to vector<1x2x32xf32>
    tpu.vector_store %arg11[%c5_66, %c0_67, %c32_68], %169 {strides = array<i32>} : memref<8x4x64xf32, #tpu.memory_space<vmem>>, vector<1x2x32xf32>,
    %c2_69 = arith.constant 2 : index
    %c2_70 = arith.constant 2 : index
    %c32_71 = arith.constant 32 : index
    %170 = vector.load %arg11[%c2_69, %c2_70, %c32_71] : memref<8x4x64xf32, #tpu.memory_space<vmem>>, vector<1x2x32xf32>
    %171 = vector.shape_cast %170 : vector<1x2x32xf32> to vector<2x32xf32>
    %172 = vector.shape_cast %160 : vector<2x32xf32> to vector<1x2x32xf32>
    tpu.vector_store %arg11[%c2_69, %c2_70, %c32_71], %172 {strides = array<i32>} : memref<8x4x64xf32, #tpu.memory_space<vmem>>, vector<1x2x32xf32>,
    %c3 = arith.constant 3 : index
    %c0_72 = arith.constant 0 : index
    %c0_73 = arith.constant 0 : index
    %173 = vector.load %arg0[%c3, %c0_72, %c0_73] : memref<8x4x32xf32, #tpu.memory_space<vmem>>, vector<1x4x32xf32>
    %174 = vector.shape_cast %173 : vector<1x4x32xf32> to vector<4x32xf32>
    %c3_74 = arith.constant 3 : index
    %c0_75 = arith.constant 0 : index
    %c0_76 = arith.constant 0 : index
    %175 = vector.load %arg1[%c3_74, %c0_75, %c0_76] : memref<8x4x1xf32, #tpu.memory_space<vmem>>, vector<1x4x1xf32>
    %176 = vector.shape_cast %175 : vector<1x4x1xf32> to vector<4x1xf32>
    %cst_77 = arith.constant 5.000000e-01 : f32
    %177 = vector.broadcast %cst_77 : f32 to vector<4x1xf32>
    %178 = arith.cmpf ogt, %176, %177 : vector<4x1xf32>
    %cst_78 = arith.constant dense<0.000000e+00> : vector<4x256xf32>
    %179 = tpu.matmul %174, %9, %cst_78 {dimension_numbers = #tpu.dot_dimension_numbers<[1], [0], [0], [1], [0, 0, 1, 1], [], []>} : vector<4x32xf32>, vector<32x256xf32>, vector<4x256xf32> -> vector<4x256xf32>
    %cst_79 = arith.constant dense<0.000000e+00> : vector<4x256xf32>
    %180 = tpu.matmul %158, %10, %cst_79 {dimension_numbers = #tpu.dot_dimension_numbers<[1], [0], [0], [1], [0, 0, 1, 1], [], []>} : vector<4x32xf32>, vector<32x256xf32>, vector<4x256xf32> -> vector<4x256xf32>
    %181 = arith.addf %179, %180 : vector<4x256xf32>
    %182 = vector.extract_strided_slice %181 {offsets = [0, 0], sizes = [4, 128], strides = [1, 1]} : vector<4x256xf32> to vector<4x128xf32>
    %183 = vector.extract_strided_slice %181 {offsets = [0, 128], sizes = [4, 128], strides = [1, 1]} : vector<4x256xf32> to vector<4x128xf32>
    %184 = vector.shape_cast %8 : vector<4x1xi1> to vector<4x1xi1>
    %185 = vector.broadcast %184 : vector<4x1xi1> to vector<4x128xi1>
    %186 = arith.select %185, %182, %183 : vector<4x128xi1>, vector<4x128xf32>
    %187 = arith.addf %186, %11 : vector<4x128xf32>
    %cst_80 = arith.constant 5.000000e-01 : f32
    %188 = vector.broadcast %cst_80 : f32 to vector<4x128xf32>
    %189 = arith.mulf %188, %187 : vector<4x128xf32>
    %190 = arith.select %5, %187, %189 : vector<4x128xi1>, vector<4x128xf32>
    %191 = math.tanh %190 : vector<4x128xf32>
    %cst_81 = arith.constant 5.000000e-01 : f32
    %192 = vector.broadcast %cst_81 : f32 to vector<4x128xf32>
    %193 = arith.mulf %192, %191 : vector<4x128xf32>
    %cst_82 = arith.constant 5.000000e-01 : f32
    %194 = vector.broadcast %cst_82 : f32 to vector<4x128xf32>
    %195 = arith.addf %193, %194 : vector<4x128xf32>
    %196 = arith.select %5, %191, %195 : vector<4x128xi1>, vector<4x128xf32>
    %197 = vector.extract_strided_slice %196 {offsets = [0, 0], sizes = [4, 32], strides = [1, 1]} : vector<4x128xf32> to vector<4x32xf32>
    %198 = vector.extract_strided_slice %196 {offsets = [0, 32], sizes = [4, 32], strides = [1, 1]} : vector<4x128xf32> to vector<4x32xf32>
    %199 = vector.extract_strided_slice %196 {offsets = [0, 64], sizes = [4, 32], strides = [1, 1]} : vector<4x128xf32> to vector<4x32xf32>
    %200 = vector.extract_strided_slice %196 {offsets = [0, 96], sizes = [4, 32], strides = [1, 1]} : vector<4x128xf32> to vector<4x32xf32>
    %201 = arith.mulf %198, %155 : vector<4x32xf32>
    %202 = arith.mulf %197, %199 : vector<4x32xf32>
    %203 = arith.addf %201, %202 : vector<4x32xf32>
    %204 = math.tanh %203 : vector<4x32xf32>
    %205 = arith.mulf %200, %204 : vector<4x32xf32>
    %206 = vector.shape_cast %178 : vector<4x1xi1> to vector<4x1xi1>
    %207 = vector.broadcast %206 : vector<4x1xi1> to vector<4x32xi1>
    %208 = arith.select %207, %203, %155 : vector<4x32xi1>, vector<4x32xf32>
    %209 = vector.shape_cast %178 : vector<4x1xi1> to vector<4x1xi1>
    %210 = vector.broadcast %209 : vector<4x1xi1> to vector<4x32xi1>
    %211 = arith.select %210, %205, %158 : vector<4x32xi1>, vector<4x32xf32>
    %212 = vector.extract_strided_slice %211 {offsets = [0, 0], sizes = [2, 32], strides = [1, 1]} : vector<4x32xf32> to vector<2x32xf32>
    %213 = vector.extract_strided_slice %211 {offsets = [2, 0], sizes = [2, 32], strides = [1, 1]} : vector<4x32xf32> to vector<2x32xf32>
    %c3_83 = arith.constant 3 : index
    %c0_84 = arith.constant 0 : index
    %c0_85 = arith.constant 0 : index
    %214 = vector.load %arg11[%c3_83, %c0_84, %c0_85] : memref<8x4x64xf32, #tpu.memory_space<vmem>>, vector<1x2x32xf32>
    %215 = vector.shape_cast %214 : vector<1x2x32xf32> to vector<2x32xf32>
    %216 = vector.shape_cast %212 : vector<2x32xf32> to vector<1x2x32xf32>
    tpu.vector_store %arg11[%c3_83, %c0_84, %c0_85], %216 {strides = array<i32>} : memref<8x4x64xf32, #tpu.memory_space<vmem>>, vector<1x2x32xf32>,
    %c4 = arith.constant 4 : index
    %c2_86 = arith.constant 2 : index
    %c0_87 = arith.constant 0 : index
    %217 = vector.load %arg11[%c4, %c2_86, %c0_87] : memref<8x4x64xf32, #tpu.memory_space<vmem>>, vector<1x2x32xf32>
    %218 = vector.shape_cast %217 : vector<1x2x32xf32> to vector<2x32xf32>
    %219 = vector.shape_cast %212 : vector<2x32xf32> to vector<1x2x32xf32>
    tpu.vector_store %arg11[%c4, %c2_86, %c0_87], %219 {strides = array<i32>} : memref<8x4x64xf32, #tpu.memory_space<vmem>>, vector<1x2x32xf32>,
    %c4_88 = arith.constant 4 : index
    %c0_89 = arith.constant 0 : index
    %c32_90 = arith.constant 32 : index
    %220 = vector.load %arg11[%c4_88, %c0_89, %c32_90] : memref<8x4x64xf32, #tpu.memory_space<vmem>>, vector<1x2x32xf32>
    %221 = vector.shape_cast %220 : vector<1x2x32xf32> to vector<2x32xf32>
    %222 = vector.shape_cast %213 : vector<2x32xf32> to vector<1x2x32xf32>
    tpu.vector_store %arg11[%c4_88, %c0_89, %c32_90], %222 {strides = array<i32>} : memref<8x4x64xf32, #tpu.memory_space<vmem>>, vector<1x2x32xf32>,
    %c3_91 = arith.constant 3 : index
    %c2_92 = arith.constant 2 : index
    %c32_93 = arith.constant 32 : index
    %223 = vector.load %arg11[%c3_91, %c2_92, %c32_93] : memref<8x4x64xf32, #tpu.memory_space<vmem>>, vector<1x2x32xf32>
    %224 = vector.shape_cast %223 : vector<1x2x32xf32> to vector<2x32xf32>
    %225 = vector.shape_cast %213 : vector<2x32xf32> to vector<1x2x32xf32>
    tpu.vector_store %arg11[%c3_91, %c2_92, %c32_93], %225 {strides = array<i32>} : memref<8x4x64xf32, #tpu.memory_space<vmem>>, vector<1x2x32xf32>,
    %c4_94 = arith.constant 4 : index
    %c0_95 = arith.constant 0 : index
    %c0_96 = arith.constant 0 : index
    %226 = vector.load %arg0[%c4_94, %c0_95, %c0_96] : memref<8x4x32xf32, #tpu.memory_space<vmem>>, vector<1x4x32xf32>
    %227 = vector.shape_cast %226 : vector<1x4x32xf32> to vector<4x32xf32>
    %c4_97 = arith.constant 4 : index
    %c0_98 = arith.constant 0 : index
    %c0_99 = arith.constant 0 : index
    %228 = vector.load %arg1[%c4_97, %c0_98, %c0_99] : memref<8x4x1xf32, #tpu.memory_space<vmem>>, vector<1x4x1xf32>
    %229 = vector.shape_cast %228 : vector<1x4x1xf32> to vector<4x1xf32>
    %cst_100 = arith.constant 5.000000e-01 : f32
    %230 = vector.broadcast %cst_100 : f32 to vector<4x1xf32>
    %231 = arith.cmpf ogt, %229, %230 : vector<4x1xf32>
    %cst_101 = arith.constant dense<0.000000e+00> : vector<4x256xf32>
    %232 = tpu.matmul %227, %9, %cst_101 {dimension_numbers = #tpu.dot_dimension_numbers<[1], [0], [0], [1], [0, 0, 1, 1], [], []>} : vector<4x32xf32>, vector<32x256xf32>, vector<4x256xf32> -> vector<4x256xf32>
    %cst_102 = arith.constant dense<0.000000e+00> : vector<4x256xf32>
    %233 = tpu.matmul %211, %10, %cst_102 {dimension_numbers = #tpu.dot_dimension_numbers<[1], [0], [0], [1], [0, 0, 1, 1], [], []>} : vector<4x32xf32>, vector<32x256xf32>, vector<4x256xf32> -> vector<4x256xf32>
    %234 = arith.addf %232, %233 : vector<4x256xf32>
    %235 = vector.extract_strided_slice %234 {offsets = [0, 0], sizes = [4, 128], strides = [1, 1]} : vector<4x256xf32> to vector<4x128xf32>
    %236 = vector.extract_strided_slice %234 {offsets = [0, 128], sizes = [4, 128], strides = [1, 1]} : vector<4x256xf32> to vector<4x128xf32>
    %237 = vector.shape_cast %8 : vector<4x1xi1> to vector<4x1xi1>
    %238 = vector.broadcast %237 : vector<4x1xi1> to vector<4x128xi1>
    %239 = arith.select %238, %235, %236 : vector<4x128xi1>, vector<4x128xf32>
    %240 = arith.addf %239, %11 : vector<4x128xf32>
    %cst_103 = arith.constant 5.000000e-01 : f32
    %241 = vector.broadcast %cst_103 : f32 to vector<4x128xf32>
    %242 = arith.mulf %241, %240 : vector<4x128xf32>
    %243 = arith.select %5, %240, %242 : vector<4x128xi1>, vector<4x128xf32>
    %244 = math.tanh %243 : vector<4x128xf32>
    %cst_104 = arith.constant 5.000000e-01 : f32
    %245 = vector.broadcast %cst_104 : f32 to vector<4x128xf32>
    %246 = arith.mulf %245, %244 : vector<4x128xf32>
    %cst_105 = arith.constant 5.000000e-01 : f32
    %247 = vector.broadcast %cst_105 : f32 to vector<4x128xf32>
    %248 = arith.addf %246, %247 : vector<4x128xf32>
    %249 = arith.select %5, %244, %248 : vector<4x128xi1>, vector<4x128xf32>
    %250 = vector.extract_strided_slice %249 {offsets = [0, 0], sizes = [4, 32], strides = [1, 1]} : vector<4x128xf32> to vector<4x32xf32>
    %251 = vector.extract_strided_slice %249 {offsets = [0, 32], sizes = [4, 32], strides = [1, 1]} : vector<4x128xf32> to vector<4x32xf32>
    %252 = vector.extract_strided_slice %249 {offsets = [0, 64], sizes = [4, 32], strides = [1, 1]} : vector<4x128xf32> to vector<4x32xf32>
    %253 = vector.extract_strided_slice %249 {offsets = [0, 96], sizes = [4, 32], strides = [1, 1]} : vector<4x128xf32> to vector<4x32xf32>
    %254 = arith.mulf %251, %208 : vector<4x32xf32>
    %255 = arith.mulf %250, %252 : vector<4x32xf32>
    %256 = arith.addf %254, %255 : vector<4x32xf32>
    %257 = math.tanh %256 : vector<4x32xf32>
    %258 = arith.mulf %253, %257 : vector<4x32xf32>
    %259 = vector.shape_cast %231 : vector<4x1xi1> to vector<4x1xi1>
    %260 = vector.broadcast %259 : vector<4x1xi1> to vector<4x32xi1>
    %261 = arith.select %260, %256, %208 : vector<4x32xi1>, vector<4x32xf32>
    %262 = vector.shape_cast %231 : vector<4x1xi1> to vector<4x1xi1>
    %263 = vector.broadcast %262 : vector<4x1xi1> to vector<4x32xi1>
    %264 = arith.select %263, %258, %211 : vector<4x32xi1>, vector<4x32xf32>
    %265 = vector.extract_strided_slice %264 {offsets = [0, 0], sizes = [2, 32], strides = [1, 1]} : vector<4x32xf32> to vector<2x32xf32>
    %266 = vector.extract_strided_slice %264 {offsets = [2, 0], sizes = [2, 32], strides = [1, 1]} : vector<4x32xf32> to vector<2x32xf32>
    %c4_106 = arith.constant 4 : index
    %c0_107 = arith.constant 0 : index
    %c0_108 = arith.constant 0 : index
    %267 = vector.load %arg11[%c4_106, %c0_107, %c0_108] : memref<8x4x64xf32, #tpu.memory_space<vmem>>, vector<1x2x32xf32>
    %268 = vector.shape_cast %267 : vector<1x2x32xf32> to vector<2x32xf32>
    %269 = vector.shape_cast %265 : vector<2x32xf32> to vector<1x2x32xf32>
    tpu.vector_store %arg11[%c4_106, %c0_107, %c0_108], %269 {strides = array<i32>} : memref<8x4x64xf32, #tpu.memory_space<vmem>>, vector<1x2x32xf32>,
    %c3_109 = arith.constant 3 : index
    %c2_110 = arith.constant 2 : index
    %c0_111 = arith.constant 0 : index
    %270 = vector.load %arg11[%c3_109, %c2_110, %c0_111] : memref<8x4x64xf32, #tpu.memory_space<vmem>>, vector<1x2x32xf32>
    %271 = vector.shape_cast %270 : vector<1x2x32xf32> to vector<2x32xf32>
    %272 = vector.shape_cast %265 : vector<2x32xf32> to vector<1x2x32xf32>
    tpu.vector_store %arg11[%c3_109, %c2_110, %c0_111], %272 {strides = array<i32>} : memref<8x4x64xf32, #tpu.memory_space<vmem>>, vector<1x2x32xf32>,
    %c3_112 = arith.constant 3 : index
    %c0_113 = arith.constant 0 : index
    %c32_114 = arith.constant 32 : index
    %273 = vector.load %arg11[%c3_112, %c0_113, %c32_114] : memref<8x4x64xf32, #tpu.memory_space<vmem>>, vector<1x2x32xf32>
    %274 = vector.shape_cast %273 : vector<1x2x32xf32> to vector<2x32xf32>
    %275 = vector.shape_cast %266 : vector<2x32xf32> to vector<1x2x32xf32>
    tpu.vector_store %arg11[%c3_112, %c0_113, %c32_114], %275 {strides = array<i32>} : memref<8x4x64xf32, #tpu.memory_space<vmem>>, vector<1x2x32xf32>,
    %c4_115 = arith.constant 4 : index
    %c2_116 = arith.constant 2 : index
    %c32_117 = arith.constant 32 : index
    %276 = vector.load %arg11[%c4_115, %c2_116, %c32_117] : memref<8x4x64xf32, #tpu.memory_space<vmem>>, vector<1x2x32xf32>
    %277 = vector.shape_cast %276 : vector<1x2x32xf32> to vector<2x32xf32>
    %278 = vector.shape_cast %266 : vector<2x32xf32> to vector<1x2x32xf32>
    tpu.vector_store %arg11[%c4_115, %c2_116, %c32_117], %278 {strides = array<i32>} : memref<8x4x64xf32, #tpu.memory_space<vmem>>, vector<1x2x32xf32>,
    %c5_118 = arith.constant 5 : index
    %c0_119 = arith.constant 0 : index
    %c0_120 = arith.constant 0 : index
    %279 = vector.load %arg0[%c5_118, %c0_119, %c0_120] : memref<8x4x32xf32, #tpu.memory_space<vmem>>, vector<1x4x32xf32>
    %280 = vector.shape_cast %279 : vector<1x4x32xf32> to vector<4x32xf32>
    %c5_121 = arith.constant 5 : index
    %c0_122 = arith.constant 0 : index
    %c0_123 = arith.constant 0 : index
    %281 = vector.load %arg1[%c5_121, %c0_122, %c0_123] : memref<8x4x1xf32, #tpu.memory_space<vmem>>, vector<1x4x1xf32>
    %282 = vector.shape_cast %281 : vector<1x4x1xf32> to vector<4x1xf32>
    %cst_124 = arith.constant 5.000000e-01 : f32
    %283 = vector.broadcast %cst_124 : f32 to vector<4x1xf32>
    %284 = arith.cmpf ogt, %282, %283 : vector<4x1xf32>
    %cst_125 = arith.constant dense<0.000000e+00> : vector<4x256xf32>
    %285 = tpu.matmul %280, %9, %cst_125 {dimension_numbers = #tpu.dot_dimension_numbers<[1], [0], [0], [1], [0, 0, 1, 1], [], []>} : vector<4x32xf32>, vector<32x256xf32>, vector<4x256xf32> -> vector<4x256xf32>
    %cst_126 = arith.constant dense<0.000000e+00> : vector<4x256xf32>
    %286 = tpu.matmul %264, %10, %cst_126 {dimension_numbers = #tpu.dot_dimension_numbers<[1], [0], [0], [1], [0, 0, 1, 1], [], []>} : vector<4x32xf32>, vector<32x256xf32>, vector<4x256xf32> -> vector<4x256xf32>
    %287 = arith.addf %285, %286 : vector<4x256xf32>
    %288 = vector.extract_strided_slice %287 {offsets = [0, 0], sizes = [4, 128], strides = [1, 1]} : vector<4x256xf32> to vector<4x128xf32>
    %289 = vector.extract_strided_slice %287 {offsets = [0, 128], sizes = [4, 128], strides = [1, 1]} : vector<4x256xf32> to vector<4x128xf32>
    %290 = vector.shape_cast %8 : vector<4x1xi1> to vector<4x1xi1>
    %291 = vector.broadcast %290 : vector<4x1xi1> to vector<4x128xi1>
    %292 = arith.select %291, %288, %289 : vector<4x128xi1>, vector<4x128xf32>
    %293 = arith.addf %292, %11 : vector<4x128xf32>
    %cst_127 = arith.constant 5.000000e-01 : f32
    %294 = vector.broadcast %cst_127 : f32 to vector<4x128xf32>
    %295 = arith.mulf %294, %293 : vector<4x128xf32>
    %296 = arith.select %5, %293, %295 : vector<4x128xi1>, vector<4x128xf32>
    %297 = math.tanh %296 : vector<4x128xf32>
    %cst_128 = arith.constant 5.000000e-01 : f32
    %298 = vector.broadcast %cst_128 : f32 to vector<4x128xf32>
    %299 = arith.mulf %298, %297 : vector<4x128xf32>
    %cst_129 = arith.constant 5.000000e-01 : f32
    %300 = vector.broadcast %cst_129 : f32 to vector<4x128xf32>
    %301 = arith.addf %299, %300 : vector<4x128xf32>
    %302 = arith.select %5, %297, %301 : vector<4x128xi1>, vector<4x128xf32>
    %303 = vector.extract_strided_slice %302 {offsets = [0, 0], sizes = [4, 32], strides = [1, 1]} : vector<4x128xf32> to vector<4x32xf32>
    %304 = vector.extract_strided_slice %302 {offsets = [0, 32], sizes = [4, 32], strides = [1, 1]} : vector<4x128xf32> to vector<4x32xf32>
    %305 = vector.extract_strided_slice %302 {offsets = [0, 64], sizes = [4, 32], strides = [1, 1]} : vector<4x128xf32> to vector<4x32xf32>
    %306 = vector.extract_strided_slice %302 {offsets = [0, 96], sizes = [4, 32], strides = [1, 1]} : vector<4x128xf32> to vector<4x32xf32>
    %307 = arith.mulf %304, %261 : vector<4x32xf32>
    %308 = arith.mulf %303, %305 : vector<4x32xf32>
    %309 = arith.addf %307, %308 : vector<4x32xf32>
    %310 = math.tanh %309 : vector<4x32xf32>
    %311 = arith.mulf %306, %310 : vector<4x32xf32>
    %312 = vector.shape_cast %284 : vector<4x1xi1> to vector<4x1xi1>
    %313 = vector.broadcast %312 : vector<4x1xi1> to vector<4x32xi1>
    %314 = arith.select %313, %309, %261 : vector<4x32xi1>, vector<4x32xf32>
    %315 = vector.shape_cast %284 : vector<4x1xi1> to vector<4x1xi1>
    %316 = vector.broadcast %315 : vector<4x1xi1> to vector<4x32xi1>
    %317 = arith.select %316, %311, %264 : vector<4x32xi1>, vector<4x32xf32>
    %318 = vector.extract_strided_slice %317 {offsets = [0, 0], sizes = [2, 32], strides = [1, 1]} : vector<4x32xf32> to vector<2x32xf32>
    %319 = vector.extract_strided_slice %317 {offsets = [2, 0], sizes = [2, 32], strides = [1, 1]} : vector<4x32xf32> to vector<2x32xf32>
    %c5_130 = arith.constant 5 : index
    %c0_131 = arith.constant 0 : index
    %c0_132 = arith.constant 0 : index
    %320 = vector.load %arg11[%c5_130, %c0_131, %c0_132] : memref<8x4x64xf32, #tpu.memory_space<vmem>>, vector<1x2x32xf32>
    %321 = vector.shape_cast %320 : vector<1x2x32xf32> to vector<2x32xf32>
    %322 = vector.shape_cast %318 : vector<2x32xf32> to vector<1x2x32xf32>
    tpu.vector_store %arg11[%c5_130, %c0_131, %c0_132], %322 {strides = array<i32>} : memref<8x4x64xf32, #tpu.memory_space<vmem>>, vector<1x2x32xf32>,
    %c2_133 = arith.constant 2 : index
    %c2_134 = arith.constant 2 : index
    %c0_135 = arith.constant 0 : index
    %323 = vector.load %arg11[%c2_133, %c2_134, %c0_135] : memref<8x4x64xf32, #tpu.memory_space<vmem>>, vector<1x2x32xf32>
    %324 = vector.shape_cast %323 : vector<1x2x32xf32> to vector<2x32xf32>
    %325 = vector.shape_cast %318 : vector<2x32xf32> to vector<1x2x32xf32>
    tpu.vector_store %arg11[%c2_133, %c2_134, %c0_135], %325 {strides = array<i32>} : memref<8x4x64xf32, #tpu.memory_space<vmem>>, vector<1x2x32xf32>,
    %c2_136 = arith.constant 2 : index
    %c0_137 = arith.constant 0 : index
    %c32_138 = arith.constant 32 : index
    %326 = vector.load %arg11[%c2_136, %c0_137, %c32_138] : memref<8x4x64xf32, #tpu.memory_space<vmem>>, vector<1x2x32xf32>
    %327 = vector.shape_cast %326 : vector<1x2x32xf32> to vector<2x32xf32>
    %328 = vector.shape_cast %319 : vector<2x32xf32> to vector<1x2x32xf32>
    tpu.vector_store %arg11[%c2_136, %c0_137, %c32_138], %328 {strides = array<i32>} : memref<8x4x64xf32, #tpu.memory_space<vmem>>, vector<1x2x32xf32>,
    %c5_139 = arith.constant 5 : index
    %c2_140 = arith.constant 2 : index
    %c32_141 = arith.constant 32 : index
    %329 = vector.load %arg11[%c5_139, %c2_140, %c32_141] : memref<8x4x64xf32, #tpu.memory_space<vmem>>, vector<1x2x32xf32>
    %330 = vector.shape_cast %329 : vector<1x2x32xf32> to vector<2x32xf32>
    %331 = vector.shape_cast %319 : vector<2x32xf32> to vector<1x2x32xf32>
    tpu.vector_store %arg11[%c5_139, %c2_140, %c32_141], %331 {strides = array<i32>} : memref<8x4x64xf32, #tpu.memory_space<vmem>>, vector<1x2x32xf32>,
    %c6_142 = arith.constant 6 : index
    %c0_143 = arith.constant 0 : index
    %c0_144 = arith.constant 0 : index
    %332 = vector.load %arg0[%c6_142, %c0_143, %c0_144] : memref<8x4x32xf32, #tpu.memory_space<vmem>>, vector<1x4x32xf32>
    %333 = vector.shape_cast %332 : vector<1x4x32xf32> to vector<4x32xf32>
    %c6_145 = arith.constant 6 : index
    %c0_146 = arith.constant 0 : index
    %c0_147 = arith.constant 0 : index
    %334 = vector.load %arg1[%c6_145, %c0_146, %c0_147] : memref<8x4x1xf32, #tpu.memory_space<vmem>>, vector<1x4x1xf32>
    %335 = vector.shape_cast %334 : vector<1x4x1xf32> to vector<4x1xf32>
    %cst_148 = arith.constant 5.000000e-01 : f32
    %336 = vector.broadcast %cst_148 : f32 to vector<4x1xf32>
    %337 = arith.cmpf ogt, %335, %336 : vector<4x1xf32>
    %cst_149 = arith.constant dense<0.000000e+00> : vector<4x256xf32>
    %338 = tpu.matmul %333, %9, %cst_149 {dimension_numbers = #tpu.dot_dimension_numbers<[1], [0], [0], [1], [0, 0, 1, 1], [], []>} : vector<4x32xf32>, vector<32x256xf32>, vector<4x256xf32> -> vector<4x256xf32>
    %cst_150 = arith.constant dense<0.000000e+00> : vector<4x256xf32>
    %339 = tpu.matmul %317, %10, %cst_150 {dimension_numbers = #tpu.dot_dimension_numbers<[1], [0], [0], [1], [0, 0, 1, 1], [], []>} : vector<4x32xf32>, vector<32x256xf32>, vector<4x256xf32> -> vector<4x256xf32>
    %340 = arith.addf %338, %339 : vector<4x256xf32>
    %341 = vector.extract_strided_slice %340 {offsets = [0, 0], sizes = [4, 128], strides = [1, 1]} : vector<4x256xf32> to vector<4x128xf32>
    %342 = vector.extract_strided_slice %340 {offsets = [0, 128], sizes = [4, 128], strides = [1, 1]} : vector<4x256xf32> to vector<4x128xf32>
    %343 = vector.shape_cast %8 : vector<4x1xi1> to vector<4x1xi1>
    %344 = vector.broadcast %343 : vector<4x1xi1> to vector<4x128xi1>
    %345 = arith.select %344, %341, %342 : vector<4x128xi1>, vector<4x128xf32>
    %346 = arith.addf %345, %11 : vector<4x128xf32>
    %cst_151 = arith.constant 5.000000e-01 : f32
    %347 = vector.broadcast %cst_151 : f32 to vector<4x128xf32>
    %348 = arith.mulf %347, %346 : vector<4x128xf32>
    %349 = arith.select %5, %346, %348 : vector<4x128xi1>, vector<4x128xf32>
    %350 = math.tanh %349 : vector<4x128xf32>
    %cst_152 = arith.constant 5.000000e-01 : f32
    %351 = vector.broadcast %cst_152 : f32 to vector<4x128xf32>
    %352 = arith.mulf %351, %350 : vector<4x128xf32>
    %cst_153 = arith.constant 5.000000e-01 : f32
    %353 = vector.broadcast %cst_153 : f32 to vector<4x128xf32>
    %354 = arith.addf %352, %353 : vector<4x128xf32>
    %355 = arith.select %5, %350, %354 : vector<4x128xi1>, vector<4x128xf32>
    %356 = vector.extract_strided_slice %355 {offsets = [0, 0], sizes = [4, 32], strides = [1, 1]} : vector<4x128xf32> to vector<4x32xf32>
    %357 = vector.extract_strided_slice %355 {offsets = [0, 32], sizes = [4, 32], strides = [1, 1]} : vector<4x128xf32> to vector<4x32xf32>
    %358 = vector.extract_strided_slice %355 {offsets = [0, 64], sizes = [4, 32], strides = [1, 1]} : vector<4x128xf32> to vector<4x32xf32>
    %359 = vector.extract_strided_slice %355 {offsets = [0, 96], sizes = [4, 32], strides = [1, 1]} : vector<4x128xf32> to vector<4x32xf32>
    %360 = arith.mulf %357, %314 : vector<4x32xf32>
    %361 = arith.mulf %356, %358 : vector<4x32xf32>
    %362 = arith.addf %360, %361 : vector<4x32xf32>
    %363 = math.tanh %362 : vector<4x32xf32>
    %364 = arith.mulf %359, %363 : vector<4x32xf32>
    %365 = vector.shape_cast %337 : vector<4x1xi1> to vector<4x1xi1>
    %366 = vector.broadcast %365 : vector<4x1xi1> to vector<4x32xi1>
    %367 = arith.select %366, %362, %314 : vector<4x32xi1>, vector<4x32xf32>
    %368 = vector.shape_cast %337 : vector<4x1xi1> to vector<4x1xi1>
    %369 = vector.broadcast %368 : vector<4x1xi1> to vector<4x32xi1>
    %370 = arith.select %369, %364, %317 : vector<4x32xi1>, vector<4x32xf32>
    %371 = vector.extract_strided_slice %370 {offsets = [0, 0], sizes = [2, 32], strides = [1, 1]} : vector<4x32xf32> to vector<2x32xf32>
    %372 = vector.extract_strided_slice %370 {offsets = [2, 0], sizes = [2, 32], strides = [1, 1]} : vector<4x32xf32> to vector<2x32xf32>
    %c6_154 = arith.constant 6 : index
    %c0_155 = arith.constant 0 : index
    %c0_156 = arith.constant 0 : index
    %373 = vector.load %arg11[%c6_154, %c0_155, %c0_156] : memref<8x4x64xf32, #tpu.memory_space<vmem>>, vector<1x2x32xf32>
    %374 = vector.shape_cast %373 : vector<1x2x32xf32> to vector<2x32xf32>
    %375 = vector.shape_cast %371 : vector<2x32xf32> to vector<1x2x32xf32>
    tpu.vector_store %arg11[%c6_154, %c0_155, %c0_156], %375 {strides = array<i32>} : memref<8x4x64xf32, #tpu.memory_space<vmem>>, vector<1x2x32xf32>,
    %c1_157 = arith.constant 1 : index
    %c2_158 = arith.constant 2 : index
    %c0_159 = arith.constant 0 : index
    %376 = vector.load %arg11[%c1_157, %c2_158, %c0_159] : memref<8x4x64xf32, #tpu.memory_space<vmem>>, vector<1x2x32xf32>
    %377 = vector.shape_cast %376 : vector<1x2x32xf32> to vector<2x32xf32>
    %378 = vector.shape_cast %371 : vector<2x32xf32> to vector<1x2x32xf32>
    tpu.vector_store %arg11[%c1_157, %c2_158, %c0_159], %378 {strides = array<i32>} : memref<8x4x64xf32, #tpu.memory_space<vmem>>, vector<1x2x32xf32>,
    %c1_160 = arith.constant 1 : index
    %c0_161 = arith.constant 0 : index
    %c32_162 = arith.constant 32 : index
    %379 = vector.load %arg11[%c1_160, %c0_161, %c32_162] : memref<8x4x64xf32, #tpu.memory_space<vmem>>, vector<1x2x32xf32>
    %380 = vector.shape_cast %379 : vector<1x2x32xf32> to vector<2x32xf32>
    %381 = vector.shape_cast %372 : vector<2x32xf32> to vector<1x2x32xf32>
    tpu.vector_store %arg11[%c1_160, %c0_161, %c32_162], %381 {strides = array<i32>} : memref<8x4x64xf32, #tpu.memory_space<vmem>>, vector<1x2x32xf32>,
    %c6_163 = arith.constant 6 : index
    %c2_164 = arith.constant 2 : index
    %c32_165 = arith.constant 32 : index
    %382 = vector.load %arg11[%c6_163, %c2_164, %c32_165] : memref<8x4x64xf32, #tpu.memory_space<vmem>>, vector<1x2x32xf32>
    %383 = vector.shape_cast %382 : vector<1x2x32xf32> to vector<2x32xf32>
    %384 = vector.shape_cast %372 : vector<2x32xf32> to vector<1x2x32xf32>
    tpu.vector_store %arg11[%c6_163, %c2_164, %c32_165], %384 {strides = array<i32>} : memref<8x4x64xf32, #tpu.memory_space<vmem>>, vector<1x2x32xf32>,
    %c7_166 = arith.constant 7 : index
    %c0_167 = arith.constant 0 : index
    %c0_168 = arith.constant 0 : index
    %385 = vector.load %arg0[%c7_166, %c0_167, %c0_168] : memref<8x4x32xf32, #tpu.memory_space<vmem>>, vector<1x4x32xf32>
    %386 = vector.shape_cast %385 : vector<1x4x32xf32> to vector<4x32xf32>
    %c7_169 = arith.constant 7 : index
    %c0_170 = arith.constant 0 : index
    %c0_171 = arith.constant 0 : index
    %387 = vector.load %arg1[%c7_169, %c0_170, %c0_171] : memref<8x4x1xf32, #tpu.memory_space<vmem>>, vector<1x4x1xf32>
    %388 = vector.shape_cast %387 : vector<1x4x1xf32> to vector<4x1xf32>
    %cst_172 = arith.constant 5.000000e-01 : f32
    %389 = vector.broadcast %cst_172 : f32 to vector<4x1xf32>
    %390 = arith.cmpf ogt, %388, %389 : vector<4x1xf32>
    %cst_173 = arith.constant dense<0.000000e+00> : vector<4x256xf32>
    %391 = tpu.matmul %386, %9, %cst_173 {dimension_numbers = #tpu.dot_dimension_numbers<[1], [0], [0], [1], [0, 0, 1, 1], [], []>} : vector<4x32xf32>, vector<32x256xf32>, vector<4x256xf32> -> vector<4x256xf32>
    %cst_174 = arith.constant dense<0.000000e+00> : vector<4x256xf32>
    %392 = tpu.matmul %370, %10, %cst_174 {dimension_numbers = #tpu.dot_dimension_numbers<[1], [0], [0], [1], [0, 0, 1, 1], [], []>} : vector<4x32xf32>, vector<32x256xf32>, vector<4x256xf32> -> vector<4x256xf32>
    %393 = arith.addf %391, %392 : vector<4x256xf32>
    %394 = vector.extract_strided_slice %393 {offsets = [0, 0], sizes = [4, 128], strides = [1, 1]} : vector<4x256xf32> to vector<4x128xf32>
    %395 = vector.extract_strided_slice %393 {offsets = [0, 128], sizes = [4, 128], strides = [1, 1]} : vector<4x256xf32> to vector<4x128xf32>
    %396 = vector.shape_cast %8 : vector<4x1xi1> to vector<4x1xi1>
    %397 = vector.broadcast %396 : vector<4x1xi1> to vector<4x128xi1>
    %398 = arith.select %397, %394, %395 : vector<4x128xi1>, vector<4x128xf32>
    %399 = arith.addf %398, %11 : vector<4x128xf32>
    %cst_175 = arith.constant 5.000000e-01 : f32
    %400 = vector.broadcast %cst_175 : f32 to vector<4x128xf32>
    %401 = arith.mulf %400, %399 : vector<4x128xf32>
    %402 = arith.select %5, %399, %401 : vector<4x128xi1>, vector<4x128xf32>
    %403 = math.tanh %402 : vector<4x128xf32>
    %cst_176 = arith.constant 5.000000e-01 : f32
    %404 = vector.broadcast %cst_176 : f32 to vector<4x128xf32>
    %405 = arith.mulf %404, %403 : vector<4x128xf32>
    %cst_177 = arith.constant 5.000000e-01 : f32
    %406 = vector.broadcast %cst_177 : f32 to vector<4x128xf32>
    %407 = arith.addf %405, %406 : vector<4x128xf32>
    %408 = arith.select %5, %403, %407 : vector<4x128xi1>, vector<4x128xf32>
    %409 = vector.extract_strided_slice %408 {offsets = [0, 0], sizes = [4, 32], strides = [1, 1]} : vector<4x128xf32> to vector<4x32xf32>
    %410 = vector.extract_strided_slice %408 {offsets = [0, 32], sizes = [4, 32], strides = [1, 1]} : vector<4x128xf32> to vector<4x32xf32>
    %411 = vector.extract_strided_slice %408 {offsets = [0, 64], sizes = [4, 32], strides = [1, 1]} : vector<4x128xf32> to vector<4x32xf32>
    %412 = vector.extract_strided_slice %408 {offsets = [0, 96], sizes = [4, 32], strides = [1, 1]} : vector<4x128xf32> to vector<4x32xf32>
    %413 = arith.mulf %410, %367 : vector<4x32xf32>
    %414 = arith.mulf %409, %411 : vector<4x32xf32>
    %415 = arith.addf %413, %414 : vector<4x32xf32>
    %416 = math.tanh %415 : vector<4x32xf32>
    %417 = arith.mulf %412, %416 : vector<4x32xf32>
    %418 = vector.shape_cast %390 : vector<4x1xi1> to vector<4x1xi1>
    %419 = vector.broadcast %418 : vector<4x1xi1> to vector<4x32xi1>
    %420 = arith.select %419, %417, %370 : vector<4x32xi1>, vector<4x32xf32>
    %421 = vector.extract_strided_slice %420 {offsets = [0, 0], sizes = [2, 32], strides = [1, 1]} : vector<4x32xf32> to vector<2x32xf32>
    %422 = vector.extract_strided_slice %420 {offsets = [2, 0], sizes = [2, 32], strides = [1, 1]} : vector<4x32xf32> to vector<2x32xf32>
    %c7_178 = arith.constant 7 : index
    %c0_179 = arith.constant 0 : index
    %c0_180 = arith.constant 0 : index
    %423 = vector.load %arg11[%c7_178, %c0_179, %c0_180] : memref<8x4x64xf32, #tpu.memory_space<vmem>>, vector<1x2x32xf32>
    %424 = vector.shape_cast %423 : vector<1x2x32xf32> to vector<2x32xf32>
    %425 = vector.shape_cast %421 : vector<2x32xf32> to vector<1x2x32xf32>
    tpu.vector_store %arg11[%c7_178, %c0_179, %c0_180], %425 {strides = array<i32>} : memref<8x4x64xf32, #tpu.memory_space<vmem>>, vector<1x2x32xf32>,
    %c0_181 = arith.constant 0 : index
    %c2_182 = arith.constant 2 : index
    %c0_183 = arith.constant 0 : index
    %426 = vector.load %arg11[%c0_181, %c2_182, %c0_183] : memref<8x4x64xf32, #tpu.memory_space<vmem>>, vector<1x2x32xf32>
    %427 = vector.shape_cast %426 : vector<1x2x32xf32> to vector<2x32xf32>
    %428 = vector.shape_cast %421 : vector<2x32xf32> to vector<1x2x32xf32>
    tpu.vector_store %arg11[%c0_181, %c2_182, %c0_183], %428 {strides = array<i32>} : memref<8x4x64xf32, #tpu.memory_space<vmem>>, vector<1x2x32xf32>,
    %c0_184 = arith.constant 0 : index
    %c0_185 = arith.constant 0 : index
    %c32_186 = arith.constant 32 : index
    %429 = vector.load %arg11[%c0_184, %c0_185, %c32_186] : memref<8x4x64xf32, #tpu.memory_space<vmem>>, vector<1x2x32xf32>
    %430 = vector.shape_cast %429 : vector<1x2x32xf32> to vector<2x32xf32>
    %431 = vector.shape_cast %422 : vector<2x32xf32> to vector<1x2x32xf32>
    tpu.vector_store %arg11[%c0_184, %c0_185, %c32_186], %431 {strides = array<i32>} : memref<8x4x64xf32, #tpu.memory_space<vmem>>, vector<1x2x32xf32>,
    %c7_187 = arith.constant 7 : index
    %c2_188 = arith.constant 2 : index
    %c32_189 = arith.constant 32 : index
    %432 = vector.load %arg11[%c7_187, %c2_188, %c32_189] : memref<8x4x64xf32, #tpu.memory_space<vmem>>, vector<1x2x32xf32>
    %433 = vector.shape_cast %432 : vector<1x2x32xf32> to vector<2x32xf32>
    %434 = vector.shape_cast %422 : vector<2x32xf32> to vector<1x2x32xf32>
    tpu.vector_store %arg11[%c7_187, %c2_188, %c32_189], %434 {strides = array<i32>} : memref<8x4x64xf32, #tpu.memory_space<vmem>>, vector<1x2x32xf32>,
    %c0_190 = arith.constant 0 : index
    %c0_191 = arith.constant 0 : index
    %435 = vector.load %arg5[%c0_190, %c0_191] : memref<64x256xf32, #tpu.memory_space<vmem>>, vector<64x256xf32>
    %c0_192 = arith.constant 0 : index
    %c0_193 = arith.constant 0 : index
    %436 = vector.load %arg6[%c0_192, %c0_193] : memref<32x256xf32, #tpu.memory_space<vmem>>, vector<32x256xf32>
    %c0_194 = arith.constant 0 : index
    %c0_195 = arith.constant 0 : index
    %437 = vector.load %arg7[%c0_194, %c0_195] : memref<4x128xf32, #tpu.memory_space<vmem>>, vector<4x128xf32>
    %cst_196 = arith.constant 0.000000e+00 : f32
    %438 = vector.broadcast %cst_196 : f32 to vector<4x32xf32>
    %cst_197 = arith.constant 0.000000e+00 : f32
    %439 = vector.broadcast %cst_197 : f32 to vector<4x32xf32>
    %c0_198 = arith.constant 0 : index
    %c0_199 = arith.constant 0 : index
    %c0_200 = arith.constant 0 : index
    %440 = vector.load %arg11[%c0_198, %c0_199, %c0_200] : memref<8x4x64xf32, #tpu.memory_space<vmem>>, vector<1x4x64xf32>
    %441 = vector.shape_cast %440 : vector<1x4x64xf32> to vector<4x64xf32>
    %c0_201 = arith.constant 0 : index
    %c0_202 = arith.constant 0 : index
    %c0_203 = arith.constant 0 : index
    %442 = vector.load %arg1[%c0_201, %c0_202, %c0_203] : memref<8x4x1xf32, #tpu.memory_space<vmem>>, vector<1x4x1xf32>
    %443 = vector.shape_cast %442 : vector<1x4x1xf32> to vector<4x1xf32>
    %cst_204 = arith.constant 5.000000e-01 : f32
    %444 = vector.broadcast %cst_204 : f32 to vector<4x1xf32>
    %445 = arith.cmpf ogt, %443, %444 : vector<4x1xf32>
    %cst_205 = arith.constant dense<0.000000e+00> : vector<4x256xf32>
    %446 = tpu.matmul %441, %435, %cst_205 {dimension_numbers = #tpu.dot_dimension_numbers<[1], [0], [0], [1], [0, 0, 1, 1], [], []>} : vector<4x64xf32>, vector<64x256xf32>, vector<4x256xf32> -> vector<4x256xf32>
    %cst_206 = arith.constant dense<0.000000e+00> : vector<4x256xf32>
    %447 = tpu.matmul %438, %436, %cst_206 {dimension_numbers = #tpu.dot_dimension_numbers<[1], [0], [0], [1], [0, 0, 1, 1], [], []>} : vector<4x32xf32>, vector<32x256xf32>, vector<4x256xf32> -> vector<4x256xf32>
    %448 = arith.addf %446, %447 : vector<4x256xf32>
    %449 = vector.extract_strided_slice %448 {offsets = [0, 0], sizes = [4, 128], strides = [1, 1]} : vector<4x256xf32> to vector<4x128xf32>
    %450 = vector.extract_strided_slice %448 {offsets = [0, 128], sizes = [4, 128], strides = [1, 1]} : vector<4x256xf32> to vector<4x128xf32>
    %451 = vector.shape_cast %8 : vector<4x1xi1> to vector<4x1xi1>
    %452 = vector.broadcast %451 : vector<4x1xi1> to vector<4x128xi1>
    %453 = arith.select %452, %449, %450 : vector<4x128xi1>, vector<4x128xf32>
    %454 = arith.addf %453, %437 : vector<4x128xf32>
    %cst_207 = arith.constant 5.000000e-01 : f32
    %455 = vector.broadcast %cst_207 : f32 to vector<4x128xf32>
    %456 = arith.mulf %455, %454 : vector<4x128xf32>
    %457 = arith.select %5, %454, %456 : vector<4x128xi1>, vector<4x128xf32>
    %458 = math.tanh %457 : vector<4x128xf32>
    %cst_208 = arith.constant 5.000000e-01 : f32
    %459 = vector.broadcast %cst_208 : f32 to vector<4x128xf32>
    %460 = arith.mulf %459, %458 : vector<4x128xf32>
    %cst_209 = arith.constant 5.000000e-01 : f32
    %461 = vector.broadcast %cst_209 : f32 to vector<4x128xf32>
    %462 = arith.addf %460, %461 : vector<4x128xf32>
    %463 = arith.select %5, %458, %462 : vector<4x128xi1>, vector<4x128xf32>
    %464 = vector.extract_strided_slice %463 {offsets = [0, 0], sizes = [4, 32], strides = [1, 1]} : vector<4x128xf32> to vector<4x32xf32>
    %465 = vector.extract_strided_slice %463 {offsets = [0, 32], sizes = [4, 32], strides = [1, 1]} : vector<4x128xf32> to vector<4x32xf32>
    %466 = vector.extract_strided_slice %463 {offsets = [0, 64], sizes = [4, 32], strides = [1, 1]} : vector<4x128xf32> to vector<4x32xf32>
    %467 = vector.extract_strided_slice %463 {offsets = [0, 96], sizes = [4, 32], strides = [1, 1]} : vector<4x128xf32> to vector<4x32xf32>
    %468 = arith.mulf %465, %439 : vector<4x32xf32>
    %469 = arith.mulf %464, %466 : vector<4x32xf32>
    %470 = arith.addf %468, %469 : vector<4x32xf32>
    %471 = math.tanh %470 : vector<4x32xf32>
    %472 = arith.mulf %467, %471 : vector<4x32xf32>
    %473 = vector.shape_cast %445 : vector<4x1xi1> to vector<4x1xi1>
    %474 = vector.broadcast %473 : vector<4x1xi1> to vector<4x32xi1>
    %475 = arith.select %474, %470, %439 : vector<4x32xi1>, vector<4x32xf32>
    %476 = vector.shape_cast %445 : vector<4x1xi1> to vector<4x1xi1>
    %477 = vector.broadcast %476 : vector<4x1xi1> to vector<4x32xi1>
    %478 = arith.select %477, %472, %438 : vector<4x32xi1>, vector<4x32xf32>
    %c1_210 = arith.constant 1 : index
    %c0_211 = arith.constant 0 : index
    %c0_212 = arith.constant 0 : index
    %479 = vector.load %arg11[%c1_210, %c0_211, %c0_212] : memref<8x4x64xf32, #tpu.memory_space<vmem>>, vector<1x4x64xf32>
    %480 = vector.shape_cast %479 : vector<1x4x64xf32> to vector<4x64xf32>
    %c1_213 = arith.constant 1 : index
    %c0_214 = arith.constant 0 : index
    %c0_215 = arith.constant 0 : index
    %481 = vector.load %arg1[%c1_213, %c0_214, %c0_215] : memref<8x4x1xf32, #tpu.memory_space<vmem>>, vector<1x4x1xf32>
    %482 = vector.shape_cast %481 : vector<1x4x1xf32> to vector<4x1xf32>
    %cst_216 = arith.constant 5.000000e-01 : f32
    %483 = vector.broadcast %cst_216 : f32 to vector<4x1xf32>
    %484 = arith.cmpf ogt, %482, %483 : vector<4x1xf32>
    %cst_217 = arith.constant dense<0.000000e+00> : vector<4x256xf32>
    %485 = tpu.matmul %480, %435, %cst_217 {dimension_numbers = #tpu.dot_dimension_numbers<[1], [0], [0], [1], [0, 0, 1, 1], [], []>} : vector<4x64xf32>, vector<64x256xf32>, vector<4x256xf32> -> vector<4x256xf32>
    %cst_218 = arith.constant dense<0.000000e+00> : vector<4x256xf32>
    %486 = tpu.matmul %478, %436, %cst_218 {dimension_numbers = #tpu.dot_dimension_numbers<[1], [0], [0], [1], [0, 0, 1, 1], [], []>} : vector<4x32xf32>, vector<32x256xf32>, vector<4x256xf32> -> vector<4x256xf32>
    %487 = arith.addf %485, %486 : vector<4x256xf32>
    %488 = vector.extract_strided_slice %487 {offsets = [0, 0], sizes = [4, 128], strides = [1, 1]} : vector<4x256xf32> to vector<4x128xf32>
    %489 = vector.extract_strided_slice %487 {offsets = [0, 128], sizes = [4, 128], strides = [1, 1]} : vector<4x256xf32> to vector<4x128xf32>
    %490 = vector.shape_cast %8 : vector<4x1xi1> to vector<4x1xi1>
    %491 = vector.broadcast %490 : vector<4x1xi1> to vector<4x128xi1>
    %492 = arith.select %491, %488, %489 : vector<4x128xi1>, vector<4x128xf32>
    %493 = arith.addf %492, %437 : vector<4x128xf32>
    %cst_219 = arith.constant 5.000000e-01 : f32
    %494 = vector.broadcast %cst_219 : f32 to vector<4x128xf32>
    %495 = arith.mulf %494, %493 : vector<4x128xf32>
    %496 = arith.select %5, %493, %495 : vector<4x128xi1>, vector<4x128xf32>
    %497 = math.tanh %496 : vector<4x128xf32>
    %cst_220 = arith.constant 5.000000e-01 : f32
    %498 = vector.broadcast %cst_220 : f32 to vector<4x128xf32>
    %499 = arith.mulf %498, %497 : vector<4x128xf32>
    %cst_221 = arith.constant 5.000000e-01 : f32
    %500 = vector.broadcast %cst_221 : f32 to vector<4x128xf32>
    %501 = arith.addf %499, %500 : vector<4x128xf32>
    %502 = arith.select %5, %497, %501 : vector<4x128xi1>, vector<4x128xf32>
    %503 = vector.extract_strided_slice %502 {offsets = [0, 0], sizes = [4, 32], strides = [1, 1]} : vector<4x128xf32> to vector<4x32xf32>
    %504 = vector.extract_strided_slice %502 {offsets = [0, 32], sizes = [4, 32], strides = [1, 1]} : vector<4x128xf32> to vector<4x32xf32>
    %505 = vector.extract_strided_slice %502 {offsets = [0, 64], sizes = [4, 32], strides = [1, 1]} : vector<4x128xf32> to vector<4x32xf32>
    %506 = vector.extract_strided_slice %502 {offsets = [0, 96], sizes = [4, 32], strides = [1, 1]} : vector<4x128xf32> to vector<4x32xf32>
    %507 = arith.mulf %504, %475 : vector<4x32xf32>
    %508 = arith.mulf %503, %505 : vector<4x32xf32>
    %509 = arith.addf %507, %508 : vector<4x32xf32>
    %510 = math.tanh %509 : vector<4x32xf32>
    %511 = arith.mulf %506, %510 : vector<4x32xf32>
    %512 = vector.shape_cast %484 : vector<4x1xi1> to vector<4x1xi1>
    %513 = vector.broadcast %512 : vector<4x1xi1> to vector<4x32xi1>
    %514 = arith.select %513, %509, %475 : vector<4x32xi1>, vector<4x32xf32>
    %515 = vector.shape_cast %484 : vector<4x1xi1> to vector<4x1xi1>
    %516 = vector.broadcast %515 : vector<4x1xi1> to vector<4x32xi1>
    %517 = arith.select %516, %511, %478 : vector<4x32xi1>, vector<4x32xf32>
    %c2_222 = arith.constant 2 : index
    %c0_223 = arith.constant 0 : index
    %c0_224 = arith.constant 0 : index
    %518 = vector.load %arg11[%c2_222, %c0_223, %c0_224] : memref<8x4x64xf32, #tpu.memory_space<vmem>>, vector<1x4x64xf32>
    %519 = vector.shape_cast %518 : vector<1x4x64xf32> to vector<4x64xf32>
    %c2_225 = arith.constant 2 : index
    %c0_226 = arith.constant 0 : index
    %c0_227 = arith.constant 0 : index
    %520 = vector.load %arg1[%c2_225, %c0_226, %c0_227] : memref<8x4x1xf32, #tpu.memory_space<vmem>>, vector<1x4x1xf32>
    %521 = vector.shape_cast %520 : vector<1x4x1xf32> to vector<4x1xf32>
    %cst_228 = arith.constant 5.000000e-01 : f32
    %522 = vector.broadcast %cst_228 : f32 to vector<4x1xf32>
    %523 = arith.cmpf ogt, %521, %522 : vector<4x1xf32>
    %cst_229 = arith.constant dense<0.000000e+00> : vector<4x256xf32>
    %524 = tpu.matmul %519, %435, %cst_229 {dimension_numbers = #tpu.dot_dimension_numbers<[1], [0], [0], [1], [0, 0, 1, 1], [], []>} : vector<4x64xf32>, vector<64x256xf32>, vector<4x256xf32> -> vector<4x256xf32>
    %cst_230 = arith.constant dense<0.000000e+00> : vector<4x256xf32>
    %525 = tpu.matmul %517, %436, %cst_230 {dimension_numbers = #tpu.dot_dimension_numbers<[1], [0], [0], [1], [0, 0, 1, 1], [], []>} : vector<4x32xf32>, vector<32x256xf32>, vector<4x256xf32> -> vector<4x256xf32>
    %526 = arith.addf %524, %525 : vector<4x256xf32>
    %527 = vector.extract_strided_slice %526 {offsets = [0, 0], sizes = [4, 128], strides = [1, 1]} : vector<4x256xf32> to vector<4x128xf32>
    %528 = vector.extract_strided_slice %526 {offsets = [0, 128], sizes = [4, 128], strides = [1, 1]} : vector<4x256xf32> to vector<4x128xf32>
    %529 = vector.shape_cast %8 : vector<4x1xi1> to vector<4x1xi1>
    %530 = vector.broadcast %529 : vector<4x1xi1> to vector<4x128xi1>
    %531 = arith.select %530, %527, %528 : vector<4x128xi1>, vector<4x128xf32>
    %532 = arith.addf %531, %437 : vector<4x128xf32>
    %cst_231 = arith.constant 5.000000e-01 : f32
    %533 = vector.broadcast %cst_231 : f32 to vector<4x128xf32>
    %534 = arith.mulf %533, %532 : vector<4x128xf32>
    %535 = arith.select %5, %532, %534 : vector<4x128xi1>, vector<4x128xf32>
    %536 = math.tanh %535 : vector<4x128xf32>
    %cst_232 = arith.constant 5.000000e-01 : f32
    %537 = vector.broadcast %cst_232 : f32 to vector<4x128xf32>
    %538 = arith.mulf %537, %536 : vector<4x128xf32>
    %cst_233 = arith.constant 5.000000e-01 : f32
    %539 = vector.broadcast %cst_233 : f32 to vector<4x128xf32>
    %540 = arith.addf %538, %539 : vector<4x128xf32>
    %541 = arith.select %5, %536, %540 : vector<4x128xi1>, vector<4x128xf32>
    %542 = vector.extract_strided_slice %541 {offsets = [0, 0], sizes = [4, 32], strides = [1, 1]} : vector<4x128xf32> to vector<4x32xf32>
    %543 = vector.extract_strided_slice %541 {offsets = [0, 32], sizes = [4, 32], strides = [1, 1]} : vector<4x128xf32> to vector<4x32xf32>
    %544 = vector.extract_strided_slice %541 {offsets = [0, 64], sizes = [4, 32], strides = [1, 1]} : vector<4x128xf32> to vector<4x32xf32>
    %545 = vector.extract_strided_slice %541 {offsets = [0, 96], sizes = [4, 32], strides = [1, 1]} : vector<4x128xf32> to vector<4x32xf32>
    %546 = arith.mulf %543, %514 : vector<4x32xf32>
    %547 = arith.mulf %542, %544 : vector<4x32xf32>
    %548 = arith.addf %546, %547 : vector<4x32xf32>
    %549 = math.tanh %548 : vector<4x32xf32>
    %550 = arith.mulf %545, %549 : vector<4x32xf32>
    %551 = vector.shape_cast %523 : vector<4x1xi1> to vector<4x1xi1>
    %552 = vector.broadcast %551 : vector<4x1xi1> to vector<4x32xi1>
    %553 = arith.select %552, %548, %514 : vector<4x32xi1>, vector<4x32xf32>
    %554 = vector.shape_cast %523 : vector<4x1xi1> to vector<4x1xi1>
    %555 = vector.broadcast %554 : vector<4x1xi1> to vector<4x32xi1>
    %556 = arith.select %555, %550, %517 : vector<4x32xi1>, vector<4x32xf32>
    %c3_234 = arith.constant 3 : index
    %c0_235 = arith.constant 0 : index
    %c0_236 = arith.constant 0 : index
    %557 = vector.load %arg11[%c3_234, %c0_235, %c0_236] : memref<8x4x64xf32, #tpu.memory_space<vmem>>, vector<1x4x64xf32>
    %558 = vector.shape_cast %557 : vector<1x4x64xf32> to vector<4x64xf32>
    %c3_237 = arith.constant 3 : index
    %c0_238 = arith.constant 0 : index
    %c0_239 = arith.constant 0 : index
    %559 = vector.load %arg1[%c3_237, %c0_238, %c0_239] : memref<8x4x1xf32, #tpu.memory_space<vmem>>, vector<1x4x1xf32>
    %560 = vector.shape_cast %559 : vector<1x4x1xf32> to vector<4x1xf32>
    %cst_240 = arith.constant 5.000000e-01 : f32
    %561 = vector.broadcast %cst_240 : f32 to vector<4x1xf32>
    %562 = arith.cmpf ogt, %560, %561 : vector<4x1xf32>
    %cst_241 = arith.constant dense<0.000000e+00> : vector<4x256xf32>
    %563 = tpu.matmul %558, %435, %cst_241 {dimension_numbers = #tpu.dot_dimension_numbers<[1], [0], [0], [1], [0, 0, 1, 1], [], []>} : vector<4x64xf32>, vector<64x256xf32>, vector<4x256xf32> -> vector<4x256xf32>
    %cst_242 = arith.constant dense<0.000000e+00> : vector<4x256xf32>
    %564 = tpu.matmul %556, %436, %cst_242 {dimension_numbers = #tpu.dot_dimension_numbers<[1], [0], [0], [1], [0, 0, 1, 1], [], []>} : vector<4x32xf32>, vector<32x256xf32>, vector<4x256xf32> -> vector<4x256xf32>
    %565 = arith.addf %563, %564 : vector<4x256xf32>
    %566 = vector.extract_strided_slice %565 {offsets = [0, 0], sizes = [4, 128], strides = [1, 1]} : vector<4x256xf32> to vector<4x128xf32>
    %567 = vector.extract_strided_slice %565 {offsets = [0, 128], sizes = [4, 128], strides = [1, 1]} : vector<4x256xf32> to vector<4x128xf32>
    %568 = vector.shape_cast %8 : vector<4x1xi1> to vector<4x1xi1>
    %569 = vector.broadcast %568 : vector<4x1xi1> to vector<4x128xi1>
    %570 = arith.select %569, %566, %567 : vector<4x128xi1>, vector<4x128xf32>
    %571 = arith.addf %570, %437 : vector<4x128xf32>
    %cst_243 = arith.constant 5.000000e-01 : f32
    %572 = vector.broadcast %cst_243 : f32 to vector<4x128xf32>
    %573 = arith.mulf %572, %571 : vector<4x128xf32>
    %574 = arith.select %5, %571, %573 : vector<4x128xi1>, vector<4x128xf32>
    %575 = math.tanh %574 : vector<4x128xf32>
    %cst_244 = arith.constant 5.000000e-01 : f32
    %576 = vector.broadcast %cst_244 : f32 to vector<4x128xf32>
    %577 = arith.mulf %576, %575 : vector<4x128xf32>
    %cst_245 = arith.constant 5.000000e-01 : f32
    %578 = vector.broadcast %cst_245 : f32 to vector<4x128xf32>
    %579 = arith.addf %577, %578 : vector<4x128xf32>
    %580 = arith.select %5, %575, %579 : vector<4x128xi1>, vector<4x128xf32>
    %581 = vector.extract_strided_slice %580 {offsets = [0, 0], sizes = [4, 32], strides = [1, 1]} : vector<4x128xf32> to vector<4x32xf32>
    %582 = vector.extract_strided_slice %580 {offsets = [0, 32], sizes = [4, 32], strides = [1, 1]} : vector<4x128xf32> to vector<4x32xf32>
    %583 = vector.extract_strided_slice %580 {offsets = [0, 64], sizes = [4, 32], strides = [1, 1]} : vector<4x128xf32> to vector<4x32xf32>
    %584 = vector.extract_strided_slice %580 {offsets = [0, 96], sizes = [4, 32], strides = [1, 1]} : vector<4x128xf32> to vector<4x32xf32>
    %585 = arith.mulf %582, %553 : vector<4x32xf32>
    %586 = arith.mulf %581, %583 : vector<4x32xf32>
    %587 = arith.addf %585, %586 : vector<4x32xf32>
    %588 = math.tanh %587 : vector<4x32xf32>
    %589 = arith.mulf %584, %588 : vector<4x32xf32>
    %590 = vector.shape_cast %562 : vector<4x1xi1> to vector<4x1xi1>
    %591 = vector.broadcast %590 : vector<4x1xi1> to vector<4x32xi1>
    %592 = arith.select %591, %587, %553 : vector<4x32xi1>, vector<4x32xf32>
    %593 = vector.shape_cast %562 : vector<4x1xi1> to vector<4x1xi1>
    %594 = vector.broadcast %593 : vector<4x1xi1> to vector<4x32xi1>
    %595 = arith.select %594, %589, %556 : vector<4x32xi1>, vector<4x32xf32>
    %c4_246 = arith.constant 4 : index
    %c0_247 = arith.constant 0 : index
    %c0_248 = arith.constant 0 : index
    %596 = vector.load %arg11[%c4_246, %c0_247, %c0_248] : memref<8x4x64xf32, #tpu.memory_space<vmem>>, vector<1x4x64xf32>
    %597 = vector.shape_cast %596 : vector<1x4x64xf32> to vector<4x64xf32>
    %c4_249 = arith.constant 4 : index
    %c0_250 = arith.constant 0 : index
    %c0_251 = arith.constant 0 : index
    %598 = vector.load %arg1[%c4_249, %c0_250, %c0_251] : memref<8x4x1xf32, #tpu.memory_space<vmem>>, vector<1x4x1xf32>
    %599 = vector.shape_cast %598 : vector<1x4x1xf32> to vector<4x1xf32>
    %cst_252 = arith.constant 5.000000e-01 : f32
    %600 = vector.broadcast %cst_252 : f32 to vector<4x1xf32>
    %601 = arith.cmpf ogt, %599, %600 : vector<4x1xf32>
    %cst_253 = arith.constant dense<0.000000e+00> : vector<4x256xf32>
    %602 = tpu.matmul %597, %435, %cst_253 {dimension_numbers = #tpu.dot_dimension_numbers<[1], [0], [0], [1], [0, 0, 1, 1], [], []>} : vector<4x64xf32>, vector<64x256xf32>, vector<4x256xf32> -> vector<4x256xf32>
    %cst_254 = arith.constant dense<0.000000e+00> : vector<4x256xf32>
    %603 = tpu.matmul %595, %436, %cst_254 {dimension_numbers = #tpu.dot_dimension_numbers<[1], [0], [0], [1], [0, 0, 1, 1], [], []>} : vector<4x32xf32>, vector<32x256xf32>, vector<4x256xf32> -> vector<4x256xf32>
    %604 = arith.addf %602, %603 : vector<4x256xf32>
    %605 = vector.extract_strided_slice %604 {offsets = [0, 0], sizes = [4, 128], strides = [1, 1]} : vector<4x256xf32> to vector<4x128xf32>
    %606 = vector.extract_strided_slice %604 {offsets = [0, 128], sizes = [4, 128], strides = [1, 1]} : vector<4x256xf32> to vector<4x128xf32>
    %607 = vector.shape_cast %8 : vector<4x1xi1> to vector<4x1xi1>
    %608 = vector.broadcast %607 : vector<4x1xi1> to vector<4x128xi1>
    %609 = arith.select %608, %605, %606 : vector<4x128xi1>, vector<4x128xf32>
    %610 = arith.addf %609, %437 : vector<4x128xf32>
    %cst_255 = arith.constant 5.000000e-01 : f32
    %611 = vector.broadcast %cst_255 : f32 to vector<4x128xf32>
    %612 = arith.mulf %611, %610 : vector<4x128xf32>
    %613 = arith.select %5, %610, %612 : vector<4x128xi1>, vector<4x128xf32>
    %614 = math.tanh %613 : vector<4x128xf32>
    %cst_256 = arith.constant 5.000000e-01 : f32
    %615 = vector.broadcast %cst_256 : f32 to vector<4x128xf32>
    %616 = arith.mulf %615, %614 : vector<4x128xf32>
    %cst_257 = arith.constant 5.000000e-01 : f32
    %617 = vector.broadcast %cst_257 : f32 to vector<4x128xf32>
    %618 = arith.addf %616, %617 : vector<4x128xf32>
    %619 = arith.select %5, %614, %618 : vector<4x128xi1>, vector<4x128xf32>
    %620 = vector.extract_strided_slice %619 {offsets = [0, 0], sizes = [4, 32], strides = [1, 1]} : vector<4x128xf32> to vector<4x32xf32>
    %621 = vector.extract_strided_slice %619 {offsets = [0, 32], sizes = [4, 32], strides = [1, 1]} : vector<4x128xf32> to vector<4x32xf32>
    %622 = vector.extract_strided_slice %619 {offsets = [0, 64], sizes = [4, 32], strides = [1, 1]} : vector<4x128xf32> to vector<4x32xf32>
    %623 = vector.extract_strided_slice %619 {offsets = [0, 96], sizes = [4, 32], strides = [1, 1]} : vector<4x128xf32> to vector<4x32xf32>
    %624 = arith.mulf %621, %592 : vector<4x32xf32>
    %625 = arith.mulf %620, %622 : vector<4x32xf32>
    %626 = arith.addf %624, %625 : vector<4x32xf32>
    %627 = math.tanh %626 : vector<4x32xf32>
    %628 = arith.mulf %623, %627 : vector<4x32xf32>
    %629 = vector.shape_cast %601 : vector<4x1xi1> to vector<4x1xi1>
    %630 = vector.broadcast %629 : vector<4x1xi1> to vector<4x32xi1>
    %631 = arith.select %630, %626, %592 : vector<4x32xi1>, vector<4x32xf32>
    %632 = vector.shape_cast %601 : vector<4x1xi1> to vector<4x1xi1>
    %633 = vector.broadcast %632 : vector<4x1xi1> to vector<4x32xi1>
    %634 = arith.select %633, %628, %595 : vector<4x32xi1>, vector<4x32xf32>
    %c5_258 = arith.constant 5 : index
    %c0_259 = arith.constant 0 : index
    %c0_260 = arith.constant 0 : index
    %635 = vector.load %arg11[%c5_258, %c0_259, %c0_260] : memref<8x4x64xf32, #tpu.memory_space<vmem>>, vector<1x4x64xf32>
    %636 = vector.shape_cast %635 : vector<1x4x64xf32> to vector<4x64xf32>
    %c5_261 = arith.constant 5 : index
    %c0_262 = arith.constant 0 : index
    %c0_263 = arith.constant 0 : index
    %637 = vector.load %arg1[%c5_261, %c0_262, %c0_263] : memref<8x4x1xf32, #tpu.memory_space<vmem>>, vector<1x4x1xf32>
    %638 = vector.shape_cast %637 : vector<1x4x1xf32> to vector<4x1xf32>
    %cst_264 = arith.constant 5.000000e-01 : f32
    %639 = vector.broadcast %cst_264 : f32 to vector<4x1xf32>
    %640 = arith.cmpf ogt, %638, %639 : vector<4x1xf32>
    %cst_265 = arith.constant dense<0.000000e+00> : vector<4x256xf32>
    %641 = tpu.matmul %636, %435, %cst_265 {dimension_numbers = #tpu.dot_dimension_numbers<[1], [0], [0], [1], [0, 0, 1, 1], [], []>} : vector<4x64xf32>, vector<64x256xf32>, vector<4x256xf32> -> vector<4x256xf32>
    %cst_266 = arith.constant dense<0.000000e+00> : vector<4x256xf32>
    %642 = tpu.matmul %634, %436, %cst_266 {dimension_numbers = #tpu.dot_dimension_numbers<[1], [0], [0], [1], [0, 0, 1, 1], [], []>} : vector<4x32xf32>, vector<32x256xf32>, vector<4x256xf32> -> vector<4x256xf32>
    %643 = arith.addf %641, %642 : vector<4x256xf32>
    %644 = vector.extract_strided_slice %643 {offsets = [0, 0], sizes = [4, 128], strides = [1, 1]} : vector<4x256xf32> to vector<4x128xf32>
    %645 = vector.extract_strided_slice %643 {offsets = [0, 128], sizes = [4, 128], strides = [1, 1]} : vector<4x256xf32> to vector<4x128xf32>
    %646 = vector.shape_cast %8 : vector<4x1xi1> to vector<4x1xi1>
    %647 = vector.broadcast %646 : vector<4x1xi1> to vector<4x128xi1>
    %648 = arith.select %647, %644, %645 : vector<4x128xi1>, vector<4x128xf32>
    %649 = arith.addf %648, %437 : vector<4x128xf32>
    %cst_267 = arith.constant 5.000000e-01 : f32
    %650 = vector.broadcast %cst_267 : f32 to vector<4x128xf32>
    %651 = arith.mulf %650, %649 : vector<4x128xf32>
    %652 = arith.select %5, %649, %651 : vector<4x128xi1>, vector<4x128xf32>
    %653 = math.tanh %652 : vector<4x128xf32>
    %cst_268 = arith.constant 5.000000e-01 : f32
    %654 = vector.broadcast %cst_268 : f32 to vector<4x128xf32>
    %655 = arith.mulf %654, %653 : vector<4x128xf32>
    %cst_269 = arith.constant 5.000000e-01 : f32
    %656 = vector.broadcast %cst_269 : f32 to vector<4x128xf32>
    %657 = arith.addf %655, %656 : vector<4x128xf32>
    %658 = arith.select %5, %653, %657 : vector<4x128xi1>, vector<4x128xf32>
    %659 = vector.extract_strided_slice %658 {offsets = [0, 0], sizes = [4, 32], strides = [1, 1]} : vector<4x128xf32> to vector<4x32xf32>
    %660 = vector.extract_strided_slice %658 {offsets = [0, 32], sizes = [4, 32], strides = [1, 1]} : vector<4x128xf32> to vector<4x32xf32>
    %661 = vector.extract_strided_slice %658 {offsets = [0, 64], sizes = [4, 32], strides = [1, 1]} : vector<4x128xf32> to vector<4x32xf32>
    %662 = vector.extract_strided_slice %658 {offsets = [0, 96], sizes = [4, 32], strides = [1, 1]} : vector<4x128xf32> to vector<4x32xf32>
    %663 = arith.mulf %660, %631 : vector<4x32xf32>
    %664 = arith.mulf %659, %661 : vector<4x32xf32>
    %665 = arith.addf %663, %664 : vector<4x32xf32>
    %666 = math.tanh %665 : vector<4x32xf32>
    %667 = arith.mulf %662, %666 : vector<4x32xf32>
    %668 = vector.shape_cast %640 : vector<4x1xi1> to vector<4x1xi1>
    %669 = vector.broadcast %668 : vector<4x1xi1> to vector<4x32xi1>
    %670 = arith.select %669, %665, %631 : vector<4x32xi1>, vector<4x32xf32>
    %671 = vector.shape_cast %640 : vector<4x1xi1> to vector<4x1xi1>
    %672 = vector.broadcast %671 : vector<4x1xi1> to vector<4x32xi1>
    %673 = arith.select %672, %667, %634 : vector<4x32xi1>, vector<4x32xf32>
    %c6_270 = arith.constant 6 : index
    %c0_271 = arith.constant 0 : index
    %c0_272 = arith.constant 0 : index
    %674 = vector.load %arg11[%c6_270, %c0_271, %c0_272] : memref<8x4x64xf32, #tpu.memory_space<vmem>>, vector<1x4x64xf32>
    %675 = vector.shape_cast %674 : vector<1x4x64xf32> to vector<4x64xf32>
    %c6_273 = arith.constant 6 : index
    %c0_274 = arith.constant 0 : index
    %c0_275 = arith.constant 0 : index
    %676 = vector.load %arg1[%c6_273, %c0_274, %c0_275] : memref<8x4x1xf32, #tpu.memory_space<vmem>>, vector<1x4x1xf32>
    %677 = vector.shape_cast %676 : vector<1x4x1xf32> to vector<4x1xf32>
    %cst_276 = arith.constant 5.000000e-01 : f32
    %678 = vector.broadcast %cst_276 : f32 to vector<4x1xf32>
    %679 = arith.cmpf ogt, %677, %678 : vector<4x1xf32>
    %cst_277 = arith.constant dense<0.000000e+00> : vector<4x256xf32>
    %680 = tpu.matmul %675, %435, %cst_277 {dimension_numbers = #tpu.dot_dimension_numbers<[1], [0], [0], [1], [0, 0, 1, 1], [], []>} : vector<4x64xf32>, vector<64x256xf32>, vector<4x256xf32> -> vector<4x256xf32>
    %cst_278 = arith.constant dense<0.000000e+00> : vector<4x256xf32>
    %681 = tpu.matmul %673, %436, %cst_278 {dimension_numbers = #tpu.dot_dimension_numbers<[1], [0], [0], [1], [0, 0, 1, 1], [], []>} : vector<4x32xf32>, vector<32x256xf32>, vector<4x256xf32> -> vector<4x256xf32>
    %682 = arith.addf %680, %681 : vector<4x256xf32>
    %683 = vector.extract_strided_slice %682 {offsets = [0, 0], sizes = [4, 128], strides = [1, 1]} : vector<4x256xf32> to vector<4x128xf32>
    %684 = vector.extract_strided_slice %682 {offsets = [0, 128], sizes = [4, 128], strides = [1, 1]} : vector<4x256xf32> to vector<4x128xf32>
    %685 = vector.shape_cast %8 : vector<4x1xi1> to vector<4x1xi1>
    %686 = vector.broadcast %685 : vector<4x1xi1> to vector<4x128xi1>
    %687 = arith.select %686, %683, %684 : vector<4x128xi1>, vector<4x128xf32>
    %688 = arith.addf %687, %437 : vector<4x128xf32>
    %cst_279 = arith.constant 5.000000e-01 : f32
    %689 = vector.broadcast %cst_279 : f32 to vector<4x128xf32>
    %690 = arith.mulf %689, %688 : vector<4x128xf32>
    %691 = arith.select %5, %688, %690 : vector<4x128xi1>, vector<4x128xf32>
    %692 = math.tanh %691 : vector<4x128xf32>
    %cst_280 = arith.constant 5.000000e-01 : f32
    %693 = vector.broadcast %cst_280 : f32 to vector<4x128xf32>
    %694 = arith.mulf %693, %692 : vector<4x128xf32>
    %cst_281 = arith.constant 5.000000e-01 : f32
    %695 = vector.broadcast %cst_281 : f32 to vector<4x128xf32>
    %696 = arith.addf %694, %695 : vector<4x128xf32>
    %697 = arith.select %5, %692, %696 : vector<4x128xi1>, vector<4x128xf32>
    %698 = vector.extract_strided_slice %697 {offsets = [0, 0], sizes = [4, 32], strides = [1, 1]} : vector<4x128xf32> to vector<4x32xf32>
    %699 = vector.extract_strided_slice %697 {offsets = [0, 32], sizes = [4, 32], strides = [1, 1]} : vector<4x128xf32> to vector<4x32xf32>
    %700 = vector.extract_strided_slice %697 {offsets = [0, 64], sizes = [4, 32], strides = [1, 1]} : vector<4x128xf32> to vector<4x32xf32>
    %701 = vector.extract_strided_slice %697 {offsets = [0, 96], sizes = [4, 32], strides = [1, 1]} : vector<4x128xf32> to vector<4x32xf32>
    %702 = arith.mulf %699, %670 : vector<4x32xf32>
    %703 = arith.mulf %698, %700 : vector<4x32xf32>
    %704 = arith.addf %702, %703 : vector<4x32xf32>
    %705 = math.tanh %704 : vector<4x32xf32>
    %706 = arith.mulf %701, %705 : vector<4x32xf32>
    %707 = vector.shape_cast %679 : vector<4x1xi1> to vector<4x1xi1>
    %708 = vector.broadcast %707 : vector<4x1xi1> to vector<4x32xi1>
    %709 = arith.select %708, %704, %670 : vector<4x32xi1>, vector<4x32xf32>
    %710 = vector.shape_cast %679 : vector<4x1xi1> to vector<4x1xi1>
    %711 = vector.broadcast %710 : vector<4x1xi1> to vector<4x32xi1>
    %712 = arith.select %711, %706, %673 : vector<4x32xi1>, vector<4x32xf32>
    %c7_282 = arith.constant 7 : index
    %c0_283 = arith.constant 0 : index
    %c0_284 = arith.constant 0 : index
    %713 = vector.load %arg11[%c7_282, %c0_283, %c0_284] : memref<8x4x64xf32, #tpu.memory_space<vmem>>, vector<1x4x64xf32>
    %714 = vector.shape_cast %713 : vector<1x4x64xf32> to vector<4x64xf32>
    %c7_285 = arith.constant 7 : index
    %c0_286 = arith.constant 0 : index
    %c0_287 = arith.constant 0 : index
    %715 = vector.load %arg1[%c7_285, %c0_286, %c0_287] : memref<8x4x1xf32, #tpu.memory_space<vmem>>, vector<1x4x1xf32>
    %716 = vector.shape_cast %715 : vector<1x4x1xf32> to vector<4x1xf32>
    %cst_288 = arith.constant 5.000000e-01 : f32
    %717 = vector.broadcast %cst_288 : f32 to vector<4x1xf32>
    %718 = arith.cmpf ogt, %716, %717 : vector<4x1xf32>
    %cst_289 = arith.constant dense<0.000000e+00> : vector<4x256xf32>
    %719 = tpu.matmul %714, %435, %cst_289 {dimension_numbers = #tpu.dot_dimension_numbers<[1], [0], [0], [1], [0, 0, 1, 1], [], []>} : vector<4x64xf32>, vector<64x256xf32>, vector<4x256xf32> -> vector<4x256xf32>
    %cst_290 = arith.constant dense<0.000000e+00> : vector<4x256xf32>
    %720 = tpu.matmul %712, %436, %cst_290 {dimension_numbers = #tpu.dot_dimension_numbers<[1], [0], [0], [1], [0, 0, 1, 1], [], []>} : vector<4x32xf32>, vector<32x256xf32>, vector<4x256xf32> -> vector<4x256xf32>
    %721 = arith.addf %719, %720 : vector<4x256xf32>
    %722 = vector.extract_strided_slice %721 {offsets = [0, 0], sizes = [4, 128], strides = [1, 1]} : vector<4x256xf32> to vector<4x128xf32>
    %723 = vector.extract_strided_slice %721 {offsets = [0, 128], sizes = [4, 128], strides = [1, 1]} : vector<4x256xf32> to vector<4x128xf32>
    %724 = vector.shape_cast %8 : vector<4x1xi1> to vector<4x1xi1>
    %725 = vector.broadcast %724 : vector<4x1xi1> to vector<4x128xi1>
    %726 = arith.select %725, %722, %723 : vector<4x128xi1>, vector<4x128xf32>
    %727 = arith.addf %726, %437 : vector<4x128xf32>
    %cst_291 = arith.constant 5.000000e-01 : f32
    %728 = vector.broadcast %cst_291 : f32 to vector<4x128xf32>
    %729 = arith.mulf %728, %727 : vector<4x128xf32>
    %730 = arith.select %5, %727, %729 : vector<4x128xi1>, vector<4x128xf32>
    %731 = math.tanh %730 : vector<4x128xf32>
    %cst_292 = arith.constant 5.000000e-01 : f32
    %732 = vector.broadcast %cst_292 : f32 to vector<4x128xf32>
    %733 = arith.mulf %732, %731 : vector<4x128xf32>
    %cst_293 = arith.constant 5.000000e-01 : f32
    %734 = vector.broadcast %cst_293 : f32 to vector<4x128xf32>
    %735 = arith.addf %733, %734 : vector<4x128xf32>
    %736 = arith.select %5, %731, %735 : vector<4x128xi1>, vector<4x128xf32>
    %737 = vector.extract_strided_slice %736 {offsets = [0, 0], sizes = [4, 32], strides = [1, 1]} : vector<4x128xf32> to vector<4x32xf32>
    %738 = vector.extract_strided_slice %736 {offsets = [0, 32], sizes = [4, 32], strides = [1, 1]} : vector<4x128xf32> to vector<4x32xf32>
    %739 = vector.extract_strided_slice %736 {offsets = [0, 64], sizes = [4, 32], strides = [1, 1]} : vector<4x128xf32> to vector<4x32xf32>
    %740 = vector.extract_strided_slice %736 {offsets = [0, 96], sizes = [4, 32], strides = [1, 1]} : vector<4x128xf32> to vector<4x32xf32>
    %741 = arith.mulf %738, %709 : vector<4x32xf32>
    %742 = arith.mulf %737, %739 : vector<4x32xf32>
    %743 = arith.addf %741, %742 : vector<4x32xf32>
    %744 = math.tanh %743 : vector<4x32xf32>
    %745 = arith.mulf %740, %744 : vector<4x32xf32>
    %746 = vector.shape_cast %718 : vector<4x1xi1> to vector<4x1xi1>
    %747 = vector.broadcast %746 : vector<4x1xi1> to vector<4x32xi1>
    %748 = arith.select %747, %745, %712 : vector<4x32xi1>, vector<4x32xf32>
    %c0_294 = arith.constant 0 : index
    %c0_295 = arith.constant 0 : index
    %749 = vector.load %arg8[%c0_294, %c0_295] : memref<64x1xf32, #tpu.memory_space<vmem>>, vector<64x1xf32>
    %750 = vector.extract_strided_slice %748 {offsets = [0, 0], sizes = [2, 32], strides = [1, 1]} : vector<4x32xf32> to vector<2x32xf32>
    %751 = vector.extract_strided_slice %749 {offsets = [0, 0], sizes = [32, 1], strides = [1, 1]} : vector<64x1xf32> to vector<32x1xf32>
    %cst_296 = arith.constant dense<0.000000e+00> : vector<2x1xf32>
    %752 = tpu.matmul %750, %751, %cst_296 {dimension_numbers = #tpu.dot_dimension_numbers<[1], [0], [0], [1], [0, 0, 1, 1], [], []>} : vector<2x32xf32>, vector<32x1xf32>, vector<2x1xf32> -> vector<2x1xf32>
    %753 = vector.extract_strided_slice %748 {offsets = [2, 0], sizes = [2, 32], strides = [1, 1]} : vector<4x32xf32> to vector<2x32xf32>
    %754 = vector.extract_strided_slice %749 {offsets = [32, 0], sizes = [32, 1], strides = [1, 1]} : vector<64x1xf32> to vector<32x1xf32>
    %cst_297 = arith.constant dense<0.000000e+00> : vector<2x1xf32>
    %755 = tpu.matmul %753, %754, %cst_297 {dimension_numbers = #tpu.dot_dimension_numbers<[1], [0], [0], [1], [0, 0, 1, 1], [], []>} : vector<2x32xf32>, vector<32x1xf32>, vector<2x1xf32> -> vector<2x1xf32>
    %756 = arith.addf %752, %755 : vector<2x1xf32>
    %c0_298 = arith.constant 0 : index
    %c0_299 = arith.constant 0 : index
    %757 = vector.load %arg9[%c0_298, %c0_299] : memref<1x1xf32, #tpu.memory_space<vmem>>, vector<1x1xf32>
    %758 = vector.broadcast %757 : vector<1x1xf32> to vector<2x1xf32>
    %759 = arith.addf %756, %758 : vector<2x1xf32>
    %c0_300 = arith.constant 0 : index
    %c0_301 = arith.constant 0 : index
    %760 = vector.load %arg10[%c0_300, %c0_301] : memref<2x1xf32, #tpu.memory_space<vmem>>, vector<2x1xf32>
    tpu.vector_store %arg10[%c0_300, %c0_301], %759 {strides = array<i32>} : memref<2x1xf32, #tpu.memory_space<vmem>>, vector<2x1xf32>,
    return
  }
}

</mosaic_0001>

<llo_original>
// kernel: reverse
$region0: #{reverse}
  %s0 = inlined_call_operand.vmem [shape: f32[8,2], index: 0, kind: input, shape index: {}]
  %s1 = inlined_call_operand.vmem [shape: f32[8,2], index: 1, kind: output, shape index: {}]
  %v2 = vlaneseq
  %v3 = vsub.s32 7, %v2
  %4 = vset.pattern.permute.xlu0 %v3
  $region1: #{reverse} parent=0
    #allocation0 [shape = 'u8[4096]{0}', space=vmem, size = 0x1000, scoped, tag = 'operand span for operand 0']
    #allocation1 [shape = 'u8[1024]{0}', space=vmem, size = 0x400, scoped, tag = 'packed  for operand 0']
    #allocation2 [shape = 'u8[4096]{0}', space=vmem, size = 0x1000, scoped, tag = 'operand span for operand 1']
    #allocation3 [shape = 'u8[1024]{0}', space=vmem, size = 0x400, scoped, tag = 'packed  for operand 1']
    // Predicated region
    $region2: #{reverse} parent=1 // pred_check
      _
    $region3: #{reverse} parent=1 // pred_check_branch
      %6 = sbr.rel (0) target = $region5
    $region4: #{reverse} parent=1 // pred_region
      // Predicated region
      $region6: #{reverse} parent=4 // pred_check
        _
      $region7: #{reverse} parent=4 // pred_check_branch
        %8 = sbr.rel target = $region9
      $region8: #{reverse} parent=4 // pred_region
        // Predicated region
        $region21: #{reverse} parent=8 // pred_check
          _
        $region22: #{reverse} parent=8 // pred_check_branch
          %24 = sbr.rel (0) target = $region24
        $region23: #{reverse} parent=8 // pred_region
          %s26 = ssub.s32 4, 1
          loop: start=0, step=1, limit=1
          $region25: #{reverse} parent=23 // loop_pre_header
            _
          $region26: #{reverse} parent=23 // loop_header
            %s28 = sphi 0, %s32
            %p29 = scmp.ge.s32.totalorder %s28, 1
            %s33 = sphi %s0, %s0
            %s34 = sphi [#allocation1], [#allocation1]
          $region27: #{reverse} parent=23 // loop_header_branch
            %31 = sbr.rel (%p29) target = $region31
          $region28: #{reverse} parent=23 // loop_body
            %v35 = vld [vmem:[%s33] sm:%s26]
            %36 = vst [vmem:[%s34] sm:%s26] %v35
          $region29: #{reverse} parent=23 // loop_footer
            %s32 = sadd.s32 1, %s28
          $region30: #{reverse} parent=23 // loop_footer_branch
            %27 = sbr.rel target = $region26
          $region31: #{reverse} parent=23 // loop_exit
            _
        $region24: #{reverse} parent=8 // pred_fallthru
          _
      $region9: #{reverse} parent=4 // pred_fallthru
        _
      // Predicated region
      $region10: #{reverse} parent=4 // pred_check
        _
      $region11: #{reverse} parent=4 // pred_check_branch
        %10 = sbr.rel (0) target = $region13
      $region12: #{reverse} parent=4 // pred_region
        %s12 = ssub.s32 4, 1
        loop: start=0, step=1, limit=1
        $region14: #{reverse} parent=12 // loop_pre_header
          _
        $region15: #{reverse} parent=12 // loop_header
          %s14 = sphi 0, %s18
          %p15 = scmp.ge.s32.totalorder %s14, 1
          %s19 = sphi %s0, %s0
          %s20 = sphi [#allocation1], [#allocation1]
        $region16: #{reverse} parent=12 // loop_header_branch
          %17 = sbr.rel (%p15) target = $region20
        $region17: #{reverse} parent=12 // loop_body
          %v21 = vld [vmem:[%s19] sm:%s12]
          %22 = vst [vmem:[%s20] sm:%s12] %v21
        $region18: #{reverse} parent=12 // loop_footer
          %s18 = sadd.s32 1, %s14
        $region19: #{reverse} parent=12 // loop_footer_branch
          %13 = sbr.rel target = $region15
        $region20: #{reverse} parent=12 // loop_exit
          _
      $region13: #{reverse} parent=4 // pred_fallthru
        _
    $region5: #{reverse} parent=1 // pred_fallthru
      _
    %37 = vnop
    %s39 = sshll.u32 1, 2
    %s40 = ssub.s32 %s39, 1
    %v41 = vld [vmem:[#allocation1] sm:%s40]
    %42 = vst [vmem:[#allocation0] sm:%s40] %v41
    %v43 = vld [vmem:[#allocation0] sm:$0xff]
    %44 = vperm.xlu0 %4, %v43
    %v45 = vpop.permute.xlu0 %44
    %46 = vst [vmem:[#allocation2] sm:$0xff] %v45
    %s48 = sshll.u32 1, 2
    %s49 = ssub.s32 %s48, 1
    %v51 = vld [vmem:[#allocation2] sm:%s49]
    %s52 = sshll.u32 1, 2
    %s53 = ssub.s32 %s52, 1
    %54 = vst [vmem:[#allocation3] sm:%s53] %v51
    // Predicated region
    $region32: #{reverse} parent=1 // pred_check
      _
    $region33: #{reverse} parent=1 // pred_check_branch
      %56 = sbr.rel (0) target = $region35
    $region34: #{reverse} parent=1 // pred_region
      // Predicated region
      $region36: #{reverse} parent=34 // pred_check
        _
      $region37: #{reverse} parent=34 // pred_check_branch
        %58 = sbr.rel target = $region39
      $region38: #{reverse} parent=34 // pred_region
        // Predicated region
        $region51: #{reverse} parent=38 // pred_check
          _
        $region52: #{reverse} parent=38 // pred_check_branch
          %74 = sbr.rel (0) target = $region54
        $region53: #{reverse} parent=38 // pred_region
          %s76 = ssub.s32 4, 1
          loop: start=0, step=1, limit=1
          $region55: #{reverse} parent=53 // loop_pre_header
            _
          $region56: #{reverse} parent=53 // loop_header
            %s78 = sphi 0, %s82
            %p79 = scmp.ge.s32.totalorder %s78, 1
            %s83 = sphi [#allocation3], [#allocation3]
            %s84 = sphi %s1, %s1
          $region57: #{reverse} parent=53 // loop_header_branch
            %81 = sbr.rel (%p79) target = $region61
          $region58: #{reverse} parent=53 // loop_body
            %v85 = vld [vmem:[%s83] sm:%s76]
            %86 = vst [vmem:[%s84] sm:%s76] %v85
          $region59: #{reverse} parent=53 // loop_footer
            %s82 = sadd.s32 1, %s78
          $region60: #{reverse} parent=53 // loop_footer_branch
            %77 = sbr.rel target = $region56
          $region61: #{reverse} parent=53 // loop_exit
            _
        $region54: #{reverse} parent=38 // pred_fallthru
          _
      $region39: #{reverse} parent=34 // pred_fallthru
        _
      // Predicated region
      $region40: #{reverse} parent=34 // pred_check
        _
      $region41: #{reverse} parent=34 // pred_check_branch
        %60 = sbr.rel (0) target = $region43
      $region42: #{reverse} parent=34 // pred_region
        %s62 = ssub.s32 4, 1
        loop: start=0, step=1, limit=1
        $region44: #{reverse} parent=42 // loop_pre_header
          _
        $region45: #{reverse} parent=42 // loop_header
          %s64 = sphi 0, %s68
          %p65 = scmp.ge.s32.totalorder %s64, 1
          %s69 = sphi [#allocation3], [#allocation3]
          %s70 = sphi %s1, %s1
        $region46: #{reverse} parent=42 // loop_header_branch
          %67 = sbr.rel (%p65) target = $region50
        $region47: #{reverse} parent=42 // loop_body
          %v71 = vld [vmem:[%s69] sm:%s62]
          %72 = vst [vmem:[%s70] sm:%s62] %v71
        $region48: #{reverse} parent=42 // loop_footer
          %s68 = sadd.s32 1, %s64
        $region49: #{reverse} parent=42 // loop_footer_branch
          %63 = sbr.rel target = $region45
        $region50: #{reverse} parent=42 // loop_exit
          _
      $region43: #{reverse} parent=34 // pred_fallthru
        _
    $region35: #{reverse} parent=1 // pred_fallthru
      _
    %87 = vnop

// kernel: lstm_net_forward.1
$region0: #{lstm_net_forward.1}
  #allocation0 [shape = 'u32[]', space=smem, size = 0x4, offset = 0x4, fixed_abs, tag = 'smem constant byte address 0x4 - core index']
  #allocation1 [shape = 'u32[144,128]{1,0:T(1,128)}', space=vmem, size = 0x12000, scoped, tag = 'internal scratch']
  #allocation2 [shape = 'f32[8,4,64]{2,1,0:T(4,128)}', space=vmem, size = 0x4000, scoped, tag = 'scratch operand']
  #allocation3 [shape = 'f32[1,1]{1,0:T(1,128)S(1)}', space=vmem, size = 0x200, scoped, tag = 'scoped memory for lstm_net_forward.1']
  %s0 = inlined_call_operand.vmem [shape: f32[8,4,32], index: 0, kind: input, shape index: {}]
  %s1 = inlined_call_operand.vmem [shape: f32[8,4,1], index: 1, kind: input, shape index: {}]
  %s2 = inlined_call_operand.vmem [shape: f32[32,256], index: 2, kind: input, shape index: {}]
  %s3 = inlined_call_operand.vmem [shape: f32[32,256], index: 3, kind: input, shape index: {}]
  %s4 = inlined_call_operand.vmem [shape: f32[4,128], index: 4, kind: input, shape index: {}]
  %s5 = inlined_call_operand.vmem [shape: f32[64,256], index: 5, kind: input, shape index: {}]
  %s6 = inlined_call_operand.vmem [shape: f32[32,256], index: 6, kind: input, shape index: {}]
  %s7 = inlined_call_operand.vmem [shape: f32[4,128], index: 7, kind: input, shape index: {}]
  %s8 = inlined_call_operand.vmem [shape: f32[64,1], index: 8, kind: input, shape index: {}]
  %s9 = inlined_call_operand.<no memory space> [shape: f32[1,1], index: 9, kind: input, shape index: {}]
  %s10 = inlined_call_operand.vmem [shape: f32[2,1], index: 10, kind: output, shape index: {}]
  %s11 = sld [smem:[#allocation0]]
  $region50: #{lstm_net_forward.1} parent=0
    _
  %s13 = ssub.s32 1, %s11
  %s14 = scalar_select 0, %s13, %s11
  %v15 = vstv %s9
  %16 = vst [vmem:[#allocation3] sm:$0x1] %v15
  // Predicated region
  $region2: #{lstm_net_forward.1} parent=0 // pred_check
    _
  $region3: #{lstm_net_forward.1} parent=0 // pred_check_branch
    %18 = sbr.rel (0) target = $region5
  $region4: #{lstm_net_forward.1} parent=0 // pred_region
    _
  $region5: #{lstm_net_forward.1} parent=0 // pred_fallthru
    _
  // Predicated region
  $region6: #{lstm_net_forward.1} parent=0 // pred_check
    _
  $region7: #{lstm_net_forward.1} parent=0 // pred_check_branch
    %20 = sbr.rel (0) target = $region9
  $region8: #{lstm_net_forward.1} parent=0 // pred_region
    _
  $region9: #{lstm_net_forward.1} parent=0 // pred_fallthru
    _
  // Predicated region
  $region10: #{lstm_net_forward.1} parent=0 // pred_check
    _
  $region11: #{lstm_net_forward.1} parent=0 // pred_check_branch
    %22 = sbr.rel (0) target = $region13
  $region12: #{lstm_net_forward.1} parent=0 // pred_region
    _
  $region13: #{lstm_net_forward.1} parent=0 // pred_fallthru
    _
  // Predicated region
  $region14: #{lstm_net_forward.1} parent=0 // pred_check
    _
  $region15: #{lstm_net_forward.1} parent=0 // pred_check_branch
    %24 = sbr.rel (0) target = $region17
  $region16: #{lstm_net_forward.1} parent=0 // pred_region
    _
  $region17: #{lstm_net_forward.1} parent=0 // pred_fallthru
    _
  // Predicated region
  $region18: #{lstm_net_forward.1} parent=0 // pred_check
    _
  $region19: #{lstm_net_forward.1} parent=0 // pred_check_branch
    %26 = sbr.rel (0) target = $region21
  $region20: #{lstm_net_forward.1} parent=0 // pred_region
    _
  $region21: #{lstm_net_forward.1} parent=0 // pred_fallthru
    _
  // Predicated region
  $region22: #{lstm_net_forward.1} parent=0 // pred_check
    _
  $region23: #{lstm_net_forward.1} parent=0 // pred_check_branch
    %28 = sbr.rel (0) target = $region25
  $region24: #{lstm_net_forward.1} parent=0 // pred_region
    _
  $region25: #{lstm_net_forward.1} parent=0 // pred_fallthru
    _
  // Predicated region
  $region26: #{lstm_net_forward.1} parent=0 // pred_check
    _
  $region27: #{lstm_net_forward.1} parent=0 // pred_check_branch
    %30 = sbr.rel (0) target = $region29
  $region28: #{lstm_net_forward.1} parent=0 // pred_region
    _
  $region29: #{lstm_net_forward.1} parent=0 // pred_fallthru
    _
  // Predicated region
  $region30: #{lstm_net_forward.1} parent=0 // pred_check
    _
  $region31: #{lstm_net_forward.1} parent=0 // pred_check_branch
    %32 = sbr.rel (0) target = $region33
  $region32: #{lstm_net_forward.1} parent=0 // pred_region
    _
  $region33: #{lstm_net_forward.1} parent=0 // pred_fallthru
    _
  // Predicated region
  $region34: #{lstm_net_forward.1} parent=0 // pred_check
    _
  $region35: #{lstm_net_forward.1} parent=0 // pred_check_branch
    %34 = sbr.rel (0) target = $region37
  $region36: #{lstm_net_forward.1} parent=0 // pred_region
    _
  $region37: #{lstm_net_forward.1} parent=0 // pred_fallthru
    _
  // Predicated region
  $region38: #{lstm_net_forward.1} parent=0 // pred_check
    _
  $region39: #{lstm_net_forward.1} parent=0 // pred_check_branch
    %36 = sbr.rel (0) target = $region41
  $region40: #{lstm_net_forward.1} parent=0 // pred_region
    _
  $region41: #{lstm_net_forward.1} parent=0 // pred_fallthru
    _
  %v37 = vlaneseq
  %v38 = vand.u32 %v37, 127
  %vm39 = vcmp.ge.s32.totalorder %v38, 64
  %vm40 = vcmp.lt.s32.totalorder %v38, 96
  %vm41 = vmand %vm39, %vm40
  %v42 = vlaneseq
  %v43 = vshrl.u32 %v42, 7
  %vm44 = vcmp.lt.s32.totalorder %v43, 2
  %v45 = vld [vmem:[%s2] sm:$0xff]
  %v46 = vld [vmem:[%s2 + $0x8] sm:$0xff]
  %v47 = vld [vmem:[%s2 + $0x10] sm:$0xff]
  %v48 = vld [vmem:[%s2 + $0x18] sm:$0xff]
  %v49 = vld [vmem:[%s2 + $0x20] sm:$0xff]
  %v50 = vld [vmem:[%s2 + $0x28] sm:$0xff]
  %v51 = vld [vmem:[%s2 + $0x30] sm:$0xff]
  %v52 = vld [vmem:[%s2 + $0x38] sm:$0xff]
  %v53 = vld [vmem:[%s3] sm:$0xff]
  %v54 = vld [vmem:[%s3 + $0x8] sm:$0xff]
  %v55 = vld [vmem:[%s3 + $0x10] sm:$0xff]
  %v56 = vld [vmem:[%s3 + $0x18] sm:$0xff]
  %v57 = vld [vmem:[%s3 + $0x20] sm:$0xff]
  %v58 = vld [vmem:[%s3 + $0x28] sm:$0xff]
  %v59 = vld [vmem:[%s3 + $0x30] sm:$0xff]
  %v60 = vld [vmem:[%s3 + $0x38] sm:$0xff]
  %v61 = vld [vmem:[%s4] sm:$0xf]
  %v62 = vld [vmem:[%s0] sm:$0xf]
  %v63 = vld [vmem:[%s1] sm:$0xf]
  %vm64 = vcmp.gt.f32.partialorder %v63, 0.5
  %vm65 = vcmask 261120
  %v67 = vsel %vm65, 0.0, 0
  %69 = vmatprep.subr.mxu0 0.0
  %70 = vmatpush1.msra.mxu0 0.0
  %71 = vmatprep.subr.mxu0 0.0
  %72 = vmatpush1.msra.mxu0 0.0
  %73 = vmatprep.subr.mxu0 0.0
  %74 = vmatpush1.msra.mxu0 0.0
  %75 = vmatprep.subr.mxu0 0.0
  %76 = vmatpush1.msra.mxu0 0.0
  %77 = vmatprep.subr.mxu0 0.0
  %78 = vmatpush1.msra.mxu0 0.0
  %79 = vmatprep.subr.mxu0 0.0
  %80 = vmatpush1.msra.mxu0 0.0
  %81 = vmatprep.subr.mxu0 0.0
  %82 = vmatpush1.msra.mxu0 0.0
  %83 = vmatprep.subr.mxu0 0.0
  %84 = vmatpush1.msra.mxu0 0.0
  %85 = vmatprep.subr.mxu0 0.0
  %86 = vmatpush1.msra.mxu0 0.0
  %87 = vmatprep.subr.mxu0 0.0
  %88 = vmatpush1.msra.mxu0 0.0
  %89 = vmatprep.subr.mxu0 0.0
  %90 = vmatpush1.msra.mxu0 0.0
  %91 = vmatprep.subr.mxu0 0.0
  %92 = vmatpush1.msra.mxu0 0.0
  %93 = vmatprep.subr.mxu0 %v60
  %94 = vmatpush1.msra.mxu0 %v59
  %95 = vmatprep.subr.mxu0 %v58
  %96 = vmatpush1.msra.mxu0 %v57
  %97 = vmatprep.subr.mxu0 %v56
  %98 = vmatpush1.msra.mxu0 %v55
  %99 = vmatprep.subr.mxu0 %v54
  %100 = vmatpush1.msra.mxu0 %v53
  %101 = vmatprep.subr.mxu0 0.0
  %102 = vmatpush2.msra.mxu0 0.0
  %103 = vmatprep.subr.mxu0 0.0
  %104 = vmatpush2.msra.mxu0 0.0
  %105 = vmatprep.subr.mxu0 0.0
  %106 = vmatpush2.msra.mxu0 0.0
  %107 = vmatprep.subr.mxu0 0.0
  %108 = vmatpush2.msra.mxu0 0.0
  %109 = vmatprep.subr.mxu0 0.0
  %110 = vmatpush2.msra.mxu0 0.0
  %111 = vmatprep.subr.mxu0 0.0
  %112 = vmatpush2.msra.mxu0 0.0
  %113 = vmatprep.subr.mxu0 0.0
  %114 = vmatpush2.msra.mxu0 0.0
  %115 = vmatprep.subr.mxu0 0.0
  %116 = vmatpush2.msra.mxu0 0.0
  %117 = vmatprep.subr.mxu0 0.0
  %118 = vmatpush2.msra.mxu0 0.0
  %119 = vmatprep.subr.mxu0 0.0
  %120 = vmatpush2.msra.mxu0 0.0
  %121 = vmatprep.subr.mxu0 0.0
  %122 = vmatpush2.msra.mxu0 0.0
  %123 = vmatprep.subr.mxu0 0.0
  %124 = vmatpush2.msra.mxu0 0.0
  %125 = vmatprep.subr.mxu0 0.0
  %126 = vmatpush2.msra.mxu0 0.0
  %127 = vmatprep.subr.mxu0 0.0
  %128 = vmatpush2.msra.mxu0 0.0
  %129 = vmatprep.subr.mxu0 0.0
  %130 = vmatpush2.msra.mxu0 0.0
  %131 = vmatprep.subr.mxu0 0.0
  %132 = vmatpush2.msra.mxu0 0.0
  %133 = vmatprep.mubr.f32.mxu0 0.0
  %134 = vmatmul.mubr.f32.gmra.mxu0 %v67
  %v135 = vpop.f32.mrf.mxu0
  %v136 = vadd.f32 0.0, %v135
  %v137 = vpop.f32.mrf.mxu0
  %v138 = vadd.f32 0.0, %v137
  %139 = vdwg.mxu0
  %v141 = vsel %vm65, %v62, 0
  %143 = vmatprep.subr.mxu0 0.0
  %144 = vmatpush1.msra.mxu0 0.0
  %145 = vmatprep.subr.mxu0 0.0
  %146 = vmatpush1.msra.mxu0 0.0
  %147 = vmatprep.subr.mxu0 0.0
  %148 = vmatpush1.msra.mxu0 0.0
  %149 = vmatprep.subr.mxu0 0.0
  %150 = vmatpush1.msra.mxu0 0.0
  %151 = vmatprep.subr.mxu0 0.0
  %152 = vmatpush1.msra.mxu0 0.0
  %153 = vmatprep.subr.mxu0 0.0
  %154 = vmatpush1.msra.mxu0 0.0
  %155 = vmatprep.subr.mxu0 0.0
  %156 = vmatpush1.msra.mxu0 0.0
  %157 = vmatprep.subr.mxu0 0.0
  %158 = vmatpush1.msra.mxu0 0.0
  %159 = vmatprep.subr.mxu0 0.0
  %160 = vmatpush1.msra.mxu0 0.0
  %161 = vmatprep.subr.mxu0 0.0
  %162 = vmatpush1.msra.mxu0 0.0
  %163 = vmatprep.subr.mxu0 0.0
  %164 = vmatpush1.msra.mxu0 0.0
  %165 = vmatprep.subr.mxu0 0.0
  %166 = vmatpush1.msra.mxu0 0.0
  %167 = vmatprep.subr.mxu0 %v52
  %168 = vmatpush1.msra.mxu0 %v51
  %169 = vmatprep.subr.mxu0 %v50
  %170 = vmatpush1.msra.mxu0 %v49
  %171 = vmatprep.subr.mxu0 %v48
  %172 = vmatpush1.msra.mxu0 %v47
  %173 = vmatprep.subr.mxu0 %v46
  %174 = vmatpush1.msra.mxu0 %v45
  %175 = vmatprep.subr.mxu0 0.0
  %176 = vmatpush2.msra.mxu0 0.0
  %177 = vmatprep.subr.mxu0 0.0
  %178 = vmatpush2.msra.mxu0 0.0
  %179 = vmatprep.subr.mxu0 0.0
  %180 = vmatpush2.msra.mxu0 0.0
  %181 = vmatprep.subr.mxu0 0.0
  %182 = vmatpush2.msra.mxu0 0.0
  %183 = vmatprep.subr.mxu0 0.0
  %184 = vmatpush2.msra.mxu0 0.0
  %185 = vmatprep.subr.mxu0 0.0
  %186 = vmatpush2.msra.mxu0 0.0
  %187 = vmatprep.subr.mxu0 0.0
  %188 = vmatpush2.msra.mxu0 0.0
  %189 = vmatprep.subr.mxu0 0.0
  %190 = vmatpush2.msra.mxu0 0.0
  %191 = vmatprep.subr.mxu0 0.0
  %192 = vmatpush2.msra.mxu0 0.0
  %193 = vmatprep.subr.mxu0 0.0
  %194 = vmatpush2.msra.mxu0 0.0
  %195 = vmatprep.subr.mxu0 0.0
  %196 = vmatpush2.msra.mxu0 0.0
  %197 = vmatprep.subr.mxu0 0.0
  %198 = vmatpush2.msra.mxu0 0.0
  %199 = vmatprep.subr.mxu0 0.0
  %200 = vmatpush2.msra.mxu0 0.0
  %201 = vmatprep.subr.mxu0 0.0
  %202 = vmatpush2.msra.mxu0 0.0
  %203 = vmatprep.subr.mxu0 0.0
  %204 = vmatpush2.msra.mxu0 0.0
  %205 = vmatprep.subr.mxu0 0.0
  %206 = vmatpush2.msra.mxu0 0.0
  %207 = vmatprep.mubr.f32.mxu0 0.0
  %208 = vmatmul.mubr.f32.gmra.mxu0 %v141
  %v209 = vpop.f32.mrf.mxu0
  %v210 = vadd.f32 %v136, %v209
  %v211 = vpop.f32.mrf.mxu0
  %v212 = vadd.f32 %v138, %v211
  %213 = vdwg.mxu0
  %v214 = vsel %vm44, 1, 0
  %vm215 = vcmp.eq.s32.totalorder %v214, 1
  %v216 = vsel %vm215, %v210, %v212
  %v217 = vadd.f32 %v216, %v61
  %v218 = vmul.f32 %v217, 0.5
  %v219 = vsel %vm41, %v217, %v218
  %v220 = vtanh.pop %v219
  %v221 = vmul.f32 %v220, 0.5
  %v222 = vadd.f32 %v221, 0.5
  %v223 = vsel %vm41, %v220, %v222
  %v224 = vmul.f32 %v223, 0.0
  %226 = vrot.lane.b32.xlu0 %v223, 64
  %v227 = vpop.permute.xlu0 %226
  %v229 = vmul.f32 %v223, %v227
  %231 = vrot.lane.b32.xlu0 %v229, 32
  %v232 = vpop.permute.xlu0 %231
  %v234 = vadd.f32 %v224, %v232
  %v235 = vtanh.pop %v234
  %237 = vrot.lane.b32.xlu0 %v235, 64
  %v238 = vpop.permute.xlu0 %237
  %v240 = vmul.f32 %v223, %v238
  %v241 = vsel %vm64, 1, 0
  %242 = vset.pattern.permute.xlu0 0
  %243 = vperm.xlu0 %242, %v241
  %v244 = vpop.permute.xlu0 %243
  %vm245 = vcmp.eq.s32.totalorder %v244, 1
  %v246 = vsel %vm245, %v234, 0.0
  %v247 = vsel %vm245, %v240, 0.0
  %249 = vrot.lane.b32.xlu0 %v247, 32
  %v250 = vpop.permute.xlu0 %249
  %vm252 = vcmask 254976
  %253 = vst.msk [vmem:[#allocation2] sm:$0x3] %vm252, %v250
  %s254 = scalar_lea.vmem [#allocation2], 28
  %255 = vst.msk [vmem:[%s254 + $0x2] sm:$0x3] %vm252, %v250
  %256 = vrot.lane.b32.xlu0 %v247, 64
  %v257 = vpop.permute.xlu0 %256
  %vm259 = vcmask 519426
  %260 = vst.msk [vmem:[%s254 - $0x2] sm:$0xc] %vm259, %v257
  %261 = vst.msk [vmem:[#allocation2] sm:$0xc] %vm259, %v257
  %s262 = scalar_lea.vmem %s0, 4
  %v263 = vld [vmem:[%s262] sm:$0xf]
  %s264 = scalar_lea.vmem %s1, 4
  %v265 = vld [vmem:[%s264] sm:$0xf]
  %vm266 = vcmp.gt.f32.partialorder %v265, 0.5
  %v267 = vsel %vm65, %v250, 0
  %269 = vmatprep.subr.mxu0 0.0
  %270 = vmatpush1.msra.mxu0 0.0
  %271 = vmatprep.subr.mxu0 0.0
  %272 = vmatpush1.msra.mxu0 0.0
  %273 = vmatprep.subr.mxu0 0.0
  %274 = vmatpush1.msra.mxu0 0.0
  %275 = vmatprep.subr.mxu0 0.0
  %276 = vmatpush1.msra.mxu0 0.0
  %277 = vmatprep.subr.mxu0 0.0
  %278 = vmatpush1.msra.mxu0 0.0
  %279 = vmatprep.subr.mxu0 0.0
  %280 = vmatpush1.msra.mxu0 0.0
  %281 = vmatprep.subr.mxu0 0.0
  %282 = vmatpush1.msra.mxu0 0.0
  %283 = vmatprep.subr.mxu0 0.0
  %284 = vmatpush1.msra.mxu0 0.0
  %285 = vmatprep.subr.mxu0 0.0
  %286 = vmatpush1.msra.mxu0 0.0
  %287 = vmatprep.subr.mxu0 0.0
  %288 = vmatpush1.msra.mxu0 0.0
  %289 = vmatprep.subr.mxu0 0.0
  %290 = vmatpush1.msra.mxu0 0.0
  %291 = vmatprep.subr.mxu0 0.0
  %292 = vmatpush1.msra.mxu0 0.0
  %293 = vmatprep.subr.mxu0 %v60
  %294 = vmatpush1.msra.mxu0 %v59
  %295 = vmatprep.subr.mxu0 %v58
  %296 = vmatpush1.msra.mxu0 %v57
  %297 = vmatprep.subr.mxu0 %v56
  %298 = vmatpush1.msra.mxu0 %v55
  %299 = vmatprep.subr.mxu0 %v54
  %300 = vmatpush1.msra.mxu0 %v53
  %301 = vmatprep.subr.mxu0 0.0
  %302 = vmatpush2.msra.mxu0 0.0
  %303 = vmatprep.subr.mxu0 0.0
  %304 = vmatpush2.msra.mxu0 0.0
  %305 = vmatprep.subr.mxu0 0.0
  %306 = vmatpush2.msra.mxu0 0.0
  %307 = vmatprep.subr.mxu0 0.0
  %308 = vmatpush2.msra.mxu0 0.0
  %309 = vmatprep.subr.mxu0 0.0
  %310 = vmatpush2.msra.mxu0 0.0
  %311 = vmatprep.subr.mxu0 0.0
  %312 = vmatpush2.msra.mxu0 0.0
  %313 = vmatprep.subr.mxu0 0.0
  %314 = vmatpush2.msra.mxu0 0.0
  %315 = vmatprep.subr.mxu0 0.0
  %316 = vmatpush2.msra.mxu0 0.0
  %317 = vmatprep.subr.mxu0 0.0
  %318 = vmatpush2.msra.mxu0 0.0
  %319 = vmatprep.subr.mxu0 0.0
  %320 = vmatpush2.msra.mxu0 0.0
  %321 = vmatprep.subr.mxu0 0.0
  %322 = vmatpush2.msra.mxu0 0.0
  %323 = vmatprep.subr.mxu0 0.0
  %324 = vmatpush2.msra.mxu0 0.0
  %325 = vmatprep.subr.mxu0 0.0
  %326 = vmatpush2.msra.mxu0 0.0
  %327 = vmatprep.subr.mxu0 0.0
  %328 = vmatpush2.msra.mxu0 0.0
  %329 = vmatprep.subr.mxu0 0.0
  %330 = vmatpush2.msra.mxu0 0.0
  %331 = vmatprep.subr.mxu0 0.0
  %332 = vmatpush2.msra.mxu0 0.0
  %333 = vmatprep.mubr.f32.mxu0 0.0
  %334 = vmatmul.mubr.f32.gmra.mxu0 %v267
  %v335 = vpop.f32.mrf.mxu0
  %v336 = vadd.f32 0.0, %v335
  %v337 = vpop.f32.mrf.mxu0
  %v338 = vadd.f32 0.0, %v337
  %339 = vdwg.mxu0
  %v341 = vsel %vm65, %v263, 0
  %343 = vmatprep.subr.mxu0 0.0
  %344 = vmatpush1.msra.mxu0 0.0
  %345 = vmatprep.subr.mxu0 0.0
  %346 = vmatpush1.msra.mxu0 0.0
  %347 = vmatprep.subr.mxu0 0.0
  %348 = vmatpush1.msra.mxu0 0.0
  %349 = vmatprep.subr.mxu0 0.0
  %350 = vmatpush1.msra.mxu0 0.0
  %351 = vmatprep.subr.mxu0 0.0
  %352 = vmatpush1.msra.mxu0 0.0
  %353 = vmatprep.subr.mxu0 0.0
  %354 = vmatpush1.msra.mxu0 0.0
  %355 = vmatprep.subr.mxu0 0.0
  %356 = vmatpush1.msra.mxu0 0.0
  %357 = vmatprep.subr.mxu0 0.0
  %358 = vmatpush1.msra.mxu0 0.0
  %359 = vmatprep.subr.mxu0 0.0
  %360 = vmatpush1.msra.mxu0 0.0
  %361 = vmatprep.subr.mxu0 0.0
  %362 = vmatpush1.msra.mxu0 0.0
  %363 = vmatprep.subr.mxu0 0.0
  %364 = vmatpush1.msra.mxu0 0.0
  %365 = vmatprep.subr.mxu0 0.0
  %366 = vmatpush1.msra.mxu0 0.0
  %367 = vmatprep.subr.mxu0 %v52
  %368 = vmatpush1.msra.mxu0 %v51
  %369 = vmatprep.subr.mxu0 %v50
  %370 = vmatpush1.msra.mxu0 %v49
  %371 = vmatprep.subr.mxu0 %v48
  %372 = vmatpush1.msra.mxu0 %v47
  %373 = vmatprep.subr.mxu0 %v46
  %374 = vmatpush1.msra.mxu0 %v45
  %375 = vmatprep.subr.mxu0 0.0
  %376 = vmatpush2.msra.mxu0 0.0
  %377 = vmatprep.subr.mxu0 0.0
  %378 = vmatpush2.msra.mxu0 0.0
  %379 = vmatprep.subr.mxu0 0.0
  %380 = vmatpush2.msra.mxu0 0.0
  %381 = vmatprep.subr.mxu0 0.0
  %382 = vmatpush2.msra.mxu0 0.0
  %383 = vmatprep.subr.mxu0 0.0
  %384 = vmatpush2.msra.mxu0 0.0
  %385 = vmatprep.subr.mxu0 0.0
  %386 = vmatpush2.msra.mxu0 0.0
  %387 = vmatprep.subr.mxu0 0.0
  %388 = vmatpush2.msra.mxu0 0.0
  %389 = vmatprep.subr.mxu0 0.0
  %390 = vmatpush2.msra.mxu0 0.0
  %391 = vmatprep.subr.mxu0 0.0
  %392 = vmatpush2.msra.mxu0 0.0
  %393 = vmatprep.subr.mxu0 0.0
  %394 = vmatpush2.msra.mxu0 0.0
  %395 = vmatprep.subr.mxu0 0.0
  %396 = vmatpush2.msra.mxu0 0.0
  %397 = vmatprep.subr.mxu0 0.0
  %398 = vmatpush2.msra.mxu0 0.0
  %399 = vmatprep.subr.mxu0 0.0
  %400 = vmatpush2.msra.mxu0 0.0
  %401 = vmatprep.subr.mxu0 0.0
  %402 = vmatpush2.msra.mxu0 0.0
  %403 = vmatprep.subr.mxu0 0.0
  %404 = vmatpush2.msra.mxu0 0.0
  %405 = vmatprep.subr.mxu0 0.0
  %406 = vmatpush2.msra.mxu0 0.0
  %407 = vmatprep.mubr.f32.mxu0 0.0
  %408 = vmatmul.mubr.f32.gmra.mxu0 %v341
  %v409 = vpop.f32.mrf.mxu0
  %v410 = vadd.f32 %v336, %v409
  %v411 = vpop.f32.mrf.mxu0
  %v412 = vadd.f32 %v338, %v411
  %413 = vdwg.mxu0
  %v414 = vsel %vm215, %v410, %v412
  %v415 = vadd.f32 %v414, %v61
  %v416 = vmul.f32 %v415, 0.5
  %v417 = vsel %vm41, %v415, %v416
  %v418 = vtanh.pop %v417
  %v419 = vmul.f32 %v418, 0.5
  %v420 = vadd.f32 %v419, 0.5
  %v421 = vsel %vm41, %v418, %v420
  %v422 = vmul.f32 %v421, %v246
  %424 = vrot.lane.b32.xlu0 %v421, 64
  %v425 = vpop.permute.xlu0 %424
  %v427 = vmul.f32 %v421, %v425
  %429 = vrot.lane.b32.xlu0 %v427, 32
  %v430 = vpop.permute.xlu0 %429
  %v432 = vadd.f32 %v422, %v430
  %v433 = vtanh.pop %v432
  %435 = vrot.lane.b32.xlu0 %v433, 64
  %v436 = vpop.permute.xlu0 %435
  %v438 = vmul.f32 %v421, %v436
  %v439 = vsel %vm266, 1, 0
  %440 = vset.pattern.permute.xlu0 0
  %441 = vperm.xlu0 %440, %v439
  %v442 = vpop.permute.xlu0 %441
  %vm443 = vcmp.eq.s32.totalorder %v442, 1
  %v444 = vsel %vm443, %v432, %v246
  %v445 = vsel %vm443, %v438, %v247
  %447 = vrot.lane.b32.xlu0 %v445, 32
  %v448 = vpop.permute.xlu0 %447
  %s450 = scalar_lea.vmem [#allocation2], 4
  %451 = vst.msk [vmem:[%s450] sm:$0x3] %vm252, %v448
  %s452 = scalar_lea.vmem [#allocation2], 24
  %453 = vst.msk [vmem:[%s452 + $0x2] sm:$0x3] %vm252, %v448
  %454 = vrot.lane.b32.xlu0 %v445, 64
  %v455 = vpop.permute.xlu0 %454
  %457 = vst.msk [vmem:[%s452 - $0x2] sm:$0xc] %vm259, %v455
  %458 = vst.msk [vmem:[%s450] sm:$0xc] %vm259, %v455
  %s459 = scalar_lea.vmem %s0, 8
  %v460 = vld [vmem:[%s459] sm:$0xf]
  %s461 = scalar_lea.vmem %s1, 8
  %v462 = vld [vmem:[%s461] sm:$0xf]
  %vm463 = vcmp.gt.f32.partialorder %v462, 0.5
  %v464 = vsel %vm65, %v448, 0
  %466 = vmatprep.subr.mxu0 0.0
  %467 = vmatpush1.msra.mxu0 0.0
  %468 = vmatprep.subr.mxu0 0.0
  %469 = vmatpush1.msra.mxu0 0.0
  %470 = vmatprep.subr.mxu0 0.0
  %471 = vmatpush1.msra.mxu0 0.0
  %472 = vmatprep.subr.mxu0 0.0
  %473 = vmatpush1.msra.mxu0 0.0
  %474 = vmatprep.subr.mxu0 0.0
  %475 = vmatpush1.msra.mxu0 0.0
  %476 = vmatprep.subr.mxu0 0.0
  %477 = vmatpush1.msra.mxu0 0.0
  %478 = vmatprep.subr.mxu0 0.0
  %479 = vmatpush1.msra.mxu0 0.0
  %480 = vmatprep.subr.mxu0 0.0
  %481 = vmatpush1.msra.mxu0 0.0
  %482 = vmatprep.subr.mxu0 0.0
  %483 = vmatpush1.msra.mxu0 0.0
  %484 = vmatprep.subr.mxu0 0.0
  %485 = vmatpush1.msra.mxu0 0.0
  %486 = vmatprep.subr.mxu0 0.0
  %487 = vmatpush1.msra.mxu0 0.0
  %488 = vmatprep.subr.mxu0 0.0
  %489 = vmatpush1.msra.mxu0 0.0
  %490 = vmatprep.subr.mxu0 %v60
  %491 = vmatpush1.msra.mxu0 %v59
  %492 = vmatprep.subr.mxu0 %v58
  %493 = vmatpush1.msra.mxu0 %v57
  %494 = vmatprep.subr.mxu0 %v56
  %495 = vmatpush1.msra.mxu0 %v55
  %496 = vmatprep.subr.mxu0 %v54
  %497 = vmatpush1.msra.mxu0 %v53
  %498 = vmatprep.subr.mxu0 0.0
  %499 = vmatpush2.msra.mxu0 0.0
  %500 = vmatprep.subr.mxu0 0.0
  %501 = vmatpush2.msra.mxu0 0.0
  %502 = vmatprep.subr.mxu0 0.0
  %503 = vmatpush2.msra.mxu0 0.0
  %504 = vmatprep.subr.mxu0 0.0
  %505 = vmatpush2.msra.mxu0 0.0
  %506 = vmatprep.subr.mxu0 0.0
  %507 = vmatpush2.msra.mxu0 0.0
  %508 = vmatprep.subr.mxu0 0.0
  %509 = vmatpush2.msra.mxu0 0.0
  %510 = vmatprep.subr.mxu0 0.0
  %511 = vmatpush2.msra.mxu0 0.0
  %512 = vmatprep.subr.mxu0 0.0
  %513 = vmatpush2.msra.mxu0 0.0
  %514 = vmatprep.subr.mxu0 0.0
  %515 = vmatpush2.msra.mxu0 0.0
  %516 = vmatprep.subr.mxu0 0.0
  %517 = vmatpush2.msra.mxu0 0.0
  %518 = vmatprep.subr.mxu0 0.0
  %519 = vmatpush2.msra.mxu0 0.0
  %520 = vmatprep.subr.mxu0 0.0
  %521 = vmatpush2.msra.mxu0 0.0
  %522 = vmatprep.subr.mxu0 0.0
  %523 = vmatpush2.msra.mxu0 0.0
  %524 = vmatprep.subr.mxu0 0.0
  %525 = vmatpush2.msra.mxu0 0.0
  %526 = vmatprep.subr.mxu0 0.0
  %527 = vmatpush2.msra.mxu0 0.0
  %528 = vmatprep.subr.mxu0 0.0
  %529 = vmatpush2.msra.mxu0 0.0
  %530 = vmatprep.mubr.f32.mxu0 0.0
  %531 = vmatmul.mubr.f32.gmra.mxu0 %v464
  %v532 = vpop.f32.mrf.mxu0
  %v533 = vadd.f32 0.0, %v532
  %v534 = vpop.f32.mrf.mxu0
  %v535 = vadd.f32 0.0, %v534
  %536 = vdwg.mxu0
  %v538 = vsel %vm65, %v460, 0
  %540 = vmatprep.subr.mxu0 0.0
  %541 = vmatpush1.msra.mxu0 0.0
  %542 = vmatprep.subr.mxu0 0.0
  %543 = vmatpush1.msra.mxu0 0.0
  %544 = vmatprep.subr.mxu0 0.0
  %545 = vmatpush1.msra.mxu0 0.0
  %546 = vmatprep.subr.mxu0 0.0
  %547 = vmatpush1.msra.mxu0 0.0
  %548 = vmatprep.subr.mxu0 0.0
  %549 = vmatpush1.msra.mxu0 0.0
  %550 = vmatprep.subr.mxu0 0.0
  %551 = vmatpush1.msra.mxu0 0.0
  %552 = vmatprep.subr.mxu0 0.0
  %553 = vmatpush1.msra.mxu0 0.0
  %554 = vmatprep.subr.mxu0 0.0
  %555 = vmatpush1.msra.mxu0 0.0
  %556 = vmatprep.subr.mxu0 0.0
  %557 = vmatpush1.msra.mxu0 0.0
  %558 = vmatprep.subr.mxu0 0.0
  %559 = vmatpush1.msra.mxu0 0.0
  %560 = vmatprep.subr.mxu0 0.0
  %561 = vmatpush1.msra.mxu0 0.0
  %562 = vmatprep.subr.mxu0 0.0
  %563 = vmatpush1.msra.mxu0 0.0
  %564 = vmatprep.subr.mxu0 %v52
  %565 = vmatpush1.msra.mxu0 %v51
  %566 = vmatprep.subr.mxu0 %v50
  %567 = vmatpush1.msra.mxu0 %v49
  %568 = vmatprep.subr.mxu0 %v48
  %569 = vmatpush1.msra.mxu0 %v47
  %570 = vmatprep.subr.mxu0 %v46
  %571 = vmatpush1.msra.mxu0 %v45
  %572 = vmatprep.subr.mxu0 0.0
  %573 = vmatpush2.msra.mxu0 0.0
  %574 = vmatprep.subr.mxu0 0.0
  %575 = vmatpush2.msra.mxu0 0.0
  %576 = vmatprep.subr.mxu0 0.0
  %577 = vmatpush2.msra.mxu0 0.0
  %578 = vmatprep.subr.mxu0 0.0
  %579 = vmatpush2.msra.mxu0 0.0
  %580 = vmatprep.subr.mxu0 0.0
  %581 = vmatpush2.msra.mxu0 0.0
  %582 = vmatprep.subr.mxu0 0.0
  %583 = vmatpush2.msra.mxu0 0.0
  %584 = vmatprep.subr.mxu0 0.0
  %585 = vmatpush2.msra.mxu0 0.0
  %586 = vmatprep.subr.mxu0 0.0
  %587 = vmatpush2.msra.mxu0 0.0
  %588 = vmatprep.subr.mxu0 0.0
  %589 = vmatpush2.msra.mxu0 0.0
  %590 = vmatprep.subr.mxu0 0.0
  %591 = vmatpush2.msra.mxu0 0.0
  %592 = vmatprep.subr.mxu0 0.0
  %593 = vmatpush2.msra.mxu0 0.0
  %594 = vmatprep.subr.mxu0 0.0
  %595 = vmatpush2.msra.mxu0 0.0
  %596 = vmatprep.subr.mxu0 0.0
  %597 = vmatpush2.msra.mxu0 0.0
  %598 = vmatprep.subr.mxu0 0.0
  %599 = vmatpush2.msra.mxu0 0.0
  %600 = vmatprep.subr.mxu0 0.0
  %601 = vmatpush2.msra.mxu0 0.0
  %602 = vmatprep.subr.mxu0 0.0
  %603 = vmatpush2.msra.mxu0 0.0
  %604 = vmatprep.mubr.f32.mxu0 0.0
  %605 = vmatmul.mubr.f32.gmra.mxu0 %v538
  %v606 = vpop.f32.mrf.mxu0
  %v607 = vadd.f32 %v533, %v606
  %v608 = vpop.f32.mrf.mxu0
  %v609 = vadd.f32 %v535, %v608
  %610 = vdwg.mxu0
  %v611 = vsel %vm215, %v607, %v609
  %v612 = vadd.f32 %v611, %v61
  %v613 = vmul.f32 %v612, 0.5
  %v614 = vsel %vm41, %v612, %v613
  %v615 = vtanh.pop %v614
  %v616 = vmul.f32 %v615, 0.5
  %v617 = vadd.f32 %v616, 0.5
  %v618 = vsel %vm41, %v615, %v617
  %v619 = vmul.f32 %v618, %v444
  %621 = vrot.lane.b32.xlu0 %v618, 64
  %v622 = vpop.permute.xlu0 %621
  %v624 = vmul.f32 %v618, %v622
  %626 = vrot.lane.b32.xlu0 %v624, 32
  %v627 = vpop.permute.xlu0 %626
  %v629 = vadd.f32 %v619, %v627
  %v630 = vtanh.pop %v629
  %632 = vrot.lane.b32.xlu0 %v630, 64
  %v633 = vpop.permute.xlu0 %632
  %v635 = vmul.f32 %v618, %v633
  %v636 = vsel %vm463, 1, 0
  %637 = vset.pattern.permute.xlu0 0
  %638 = vperm.xlu0 %637, %v636
  %v639 = vpop.permute.xlu0 %638
  %vm640 = vcmp.eq.s32.totalorder %v639, 1
  %v641 = vsel %vm640, %v629, %v444
  %v642 = vsel %vm640, %v635, %v445
  %644 = vrot.lane.b32.xlu0 %v642, 32
  %v645 = vpop.permute.xlu0 %644
  %s647 = scalar_lea.vmem [#allocation2], 8
  %648 = vst.msk [vmem:[%s647] sm:$0x3] %vm252, %v645
  %s649 = scalar_lea.vmem [#allocation2], 20
  %650 = vst.msk [vmem:[%s649 + $0x2] sm:$0x3] %vm252, %v645
  %651 = vrot.lane.b32.xlu0 %v642, 64
  %v652 = vpop.permute.xlu0 %651
  %654 = vst.msk [vmem:[%s649 - $0x2] sm:$0xc] %vm259, %v652
  %655 = vst.msk [vmem:[%s647] sm:$0xc] %vm259, %v652
  %s656 = scalar_lea.vmem %s0, 12
  %v657 = vld [vmem:[%s656] sm:$0xf]
  %s658 = scalar_lea.vmem %s1, 12
  %v659 = vld [vmem:[%s658] sm:$0xf]
  %vm660 = vcmp.gt.f32.partialorder %v659, 0.5
  %v661 = vsel %vm65, %v645, 0
  %663 = vmatprep.subr.mxu0 0.0
  %664 = vmatpush1.msra.mxu0 0.0
  %665 = vmatprep.subr.mxu0 0.0
  %666 = vmatpush1.msra.mxu0 0.0
  %667 = vmatprep.subr.mxu0 0.0
  %668 = vmatpush1.msra.mxu0 0.0
  %669 = vmatprep.subr.mxu0 0.0
  %670 = vmatpush1.msra.mxu0 0.0
  %671 = vmatprep.subr.mxu0 0.0
  %672 = vmatpush1.msra.mxu0 0.0
  %673 = vmatprep.subr.mxu0 0.0
  %674 = vmatpush1.msra.mxu0 0.0
  %675 = vmatprep.subr.mxu0 0.0
  %676 = vmatpush1.msra.mxu0 0.0
  %677 = vmatprep.subr.mxu0 0.0
  %678 = vmatpush1.msra.mxu0 0.0
  %679 = vmatprep.subr.mxu0 0.0
  %680 = vmatpush1.msra.mxu0 0.0
  %681 = vmatprep.subr.mxu0 0.0
  %682 = vmatpush1.msra.mxu0 0.0
  %683 = vmatprep.subr.mxu0 0.0
  %684 = vmatpush1.msra.mxu0 0.0
  %685 = vmatprep.subr.mxu0 0.0
  %686 = vmatpush1.msra.mxu0 0.0
  %687 = vmatprep.subr.mxu0 %v60
  %688 = vmatpush1.msra.mxu0 %v59
  %689 = vmatprep.subr.mxu0 %v58
  %690 = vmatpush1.msra.mxu0 %v57
  %691 = vmatprep.subr.mxu0 %v56
  %692 = vmatpush1.msra.mxu0 %v55
  %693 = vmatprep.subr.mxu0 %v54
  %694 = vmatpush1.msra.mxu0 %v53
  %695 = vmatprep.subr.mxu0 0.0
  %696 = vmatpush2.msra.mxu0 0.0
  %697 = vmatprep.subr.mxu0 0.0
  %698 = vmatpush2.msra.mxu0 0.0
  %699 = vmatprep.subr.mxu0 0.0
  %700 = vmatpush2.msra.mxu0 0.0
  %701 = vmatprep.subr.mxu0 0.0
  %702 = vmatpush2.msra.mxu0 0.0
  %703 = vmatprep.subr.mxu0 0.0
  %704 = vmatpush2.msra.mxu0 0.0
  %705 = vmatprep.subr.mxu0 0.0
  %706 = vmatpush2.msra.mxu0 0.0
  %707 = vmatprep.subr.mxu0 0.0
  %708 = vmatpush2.msra.mxu0 0.0
  %709 = vmatprep.subr.mxu0 0.0
  %710 = vmatpush2.msra.mxu0 0.0
  %711 = vmatprep.subr.mxu0 0.0
  %712 = vmatpush2.msra.mxu0 0.0
  %713 = vmatprep.subr.mxu0 0.0
  %714 = vmatpush2.msra.mxu0 0.0
  %715 = vmatprep.subr.mxu0 0.0
  %716 = vmatpush2.msra.mxu0 0.0
  %717 = vmatprep.subr.mxu0 0.0
  %718 = vmatpush2.msra.mxu0 0.0
  %719 = vmatprep.subr.mxu0 0.0
  %720 = vmatpush2.msra.mxu0 0.0
  %721 = vmatprep.subr.mxu0 0.0
  %722 = vmatpush2.msra.mxu0 0.0
  %723 = vmatprep.subr.mxu0 0.0
  %724 = vmatpush2.msra.mxu0 0.0
  %725 = vmatprep.subr.mxu0 0.0
  %726 = vmatpush2.msra.mxu0 0.0
  %727 = vmatprep.mubr.f32.mxu0 0.0
  %728 = vmatmul.mubr.f32.gmra.mxu0 %v661
  %v729 = vpop.f32.mrf.mxu0
  %v730 = vadd.f32 0.0, %v729
  %v731 = vpop.f32.mrf.mxu0
  %v732 = vadd.f32 0.0, %v731
  %733 = vdwg.mxu0
  %v735 = vsel %vm65, %v657, 0
  %737 = vmatprep.subr.mxu0 0.0
  %738 = vmatpush1.msra.mxu0 0.0
  %739 = vmatprep.subr.mxu0 0.0
  %740 = vmatpush1.msra.mxu0 0.0
  %741 = vmatprep.subr.mxu0 0.0
  %742 = vmatpush1.msra.mxu0 0.0
  %743 = vmatprep.subr.mxu0 0.0
  %744 = vmatpush1.msra.mxu0 0.0
  %745 = vmatprep.subr.mxu0 0.0
  %746 = vmatpush1.msra.mxu0 0.0
  %747 = vmatprep.subr.mxu0 0.0
  %748 = vmatpush1.msra.mxu0 0.0
  %749 = vmatprep.subr.mxu0 0.0
  %750 = vmatpush1.msra.mxu0 0.0
  %751 = vmatprep.subr.mxu0 0.0
  %752 = vmatpush1.msra.mxu0 0.0
  %753 = vmatprep.subr.mxu0 0.0
  %754 = vmatpush1.msra.mxu0 0.0
  %755 = vmatprep.subr.mxu0 0.0
  %756 = vmatpush1.msra.mxu0 0.0
  %757 = vmatprep.subr.mxu0 0.0
  %758 = vmatpush1.msra.mxu0 0.0
  %759 = vmatprep.subr.mxu0 0.0
  %760 = vmatpush1.msra.mxu0 0.0
  %761 = vmatprep.subr.mxu0 %v52
  %762 = vmatpush1.msra.mxu0 %v51
  %763 = vmatprep.subr.mxu0 %v50
  %764 = vmatpush1.msra.mxu0 %v49
  %765 = vmatprep.subr.mxu0 %v48
  %766 = vmatpush1.msra.mxu0 %v47
  %767 = vmatprep.subr.mxu0 %v46
  %768 = vmatpush1.msra.mxu0 %v45
  %769 = vmatprep.subr.mxu0 0.0
  %770 = vmatpush2.msra.mxu0 0.0
  %771 = vmatprep.subr.mxu0 0.0
  %772 = vmatpush2.msra.mxu0 0.0
  %773 = vmatprep.subr.mxu0 0.0
  %774 = vmatpush2.msra.mxu0 0.0
  %775 = vmatprep.subr.mxu0 0.0
  %776 = vmatpush2.msra.mxu0 0.0
  %777 = vmatprep.subr.mxu0 0.0
  %778 = vmatpush2.msra.mxu0 0.0
  %779 = vmatprep.subr.mxu0 0.0
  %780 = vmatpush2.msra.mxu0 0.0
  %781 = vmatprep.subr.mxu0 0.0
  %782 = vmatpush2.msra.mxu0 0.0
  %783 = vmatprep.subr.mxu0 0.0
  %784 = vmatpush2.msra.mxu0 0.0
  %785 = vmatprep.subr.mxu0 0.0
  %786 = vmatpush2.msra.mxu0 0.0
  %787 = vmatprep.subr.mxu0 0.0
  %788 = vmatpush2.msra.mxu0 0.0
  %789 = vmatprep.subr.mxu0 0.0
  %790 = vmatpush2.msra.mxu0 0.0
  %791 = vmatprep.subr.mxu0 0.0
  %792 = vmatpush2.msra.mxu0 0.0
  %793 = vmatprep.subr.mxu0 0.0
  %794 = vmatpush2.msra.mxu0 0.0
  %795 = vmatprep.subr.mxu0 0.0
  %796 = vmatpush2.msra.mxu0 0.0
  %797 = vmatprep.subr.mxu0 0.0
  %798 = vmatpush2.msra.mxu0 0.0
  %799 = vmatprep.subr.mxu0 0.0
  %800 = vmatpush2.msra.mxu0 0.0
  %801 = vmatprep.mubr.f32.mxu0 0.0
  %802 = vmatmul.mubr.f32.gmra.mxu0 %v735
  %v803 = vpop.f32.mrf.mxu0
  %v804 = vadd.f32 %v730, %v803
  %v805 = vpop.f32.mrf.mxu0
  %v806 = vadd.f32 %v732, %v805
  %807 = vdwg.mxu0
  %v808 = vsel %vm215, %v804, %v806
  %v809 = vadd.f32 %v808, %v61
  %v810 = vmul.f32 %v809, 0.5
  %v811 = vsel %vm41, %v809, %v810
  %v812 = vtanh.pop %v811
  %v813 = vmul.f32 %v812, 0.5
  %v814 = vadd.f32 %v813, 0.5
  %v815 = vsel %vm41, %v812, %v814
  %v816 = vmul.f32 %v815, %v641
  %818 = vrot.lane.b32.xlu0 %v815, 64
  %v819 = vpop.permute.xlu0 %818
  %v821 = vmul.f32 %v815, %v819
  %823 = vrot.lane.b32.xlu0 %v821, 32
  %v824 = vpop.permute.xlu0 %823
  %v826 = vadd.f32 %v816, %v824
  %v827 = vtanh.pop %v826
  %829 = vrot.lane.b32.xlu0 %v827, 64
  %v830 = vpop.permute.xlu0 %829
  %v832 = vmul.f32 %v815, %v830
  %v833 = vsel %vm660, 1, 0
  %834 = vset.pattern.permute.xlu0 0
  %835 = vperm.xlu0 %834, %v833
  %v836 = vpop.permute.xlu0 %835
  %vm837 = vcmp.eq.s32.totalorder %v836, 1
  %v838 = vsel %vm837, %v826, %v641
  %v839 = vsel %vm837, %v832, %v642
  %841 = vrot.lane.b32.xlu0 %v839, 32
  %v842 = vpop.permute.xlu0 %841
  %s844 = scalar_lea.vmem [#allocation2], 12
  %845 = vst.msk [vmem:[%s844] sm:$0x3] %vm252, %v842
  %s846 = scalar_lea.vmem [#allocation2], 16
  %847 = vst.msk [vmem:[%s846 + $0x2] sm:$0x3] %vm252, %v842
  %848 = vrot.lane.b32.xlu0 %v839, 64
  %v849 = vpop.permute.xlu0 %848
  %851 = vst.msk [vmem:[%s846 - $0x2] sm:$0xc] %vm259, %v849
  %852 = vst.msk [vmem:[%s844] sm:$0xc] %vm259, %v849
  %s853 = scalar_lea.vmem %s0, 16
  %v854 = vld [vmem:[%s853] sm:$0xf]
  %s855 = scalar_lea.vmem %s1, 16
  %v856 = vld [vmem:[%s855] sm:$0xf]
  %vm857 = vcmp.gt.f32.partialorder %v856, 0.5
  %v858 = vsel %vm65, %v842, 0
  %860 = vmatprep.subr.mxu0 0.0
  %861 = vmatpush1.msra.mxu0 0.0
  %862 = vmatprep.subr.mxu0 0.0
  %863 = vmatpush1.msra.mxu0 0.0
  %864 = vmatprep.subr.mxu0 0.0
  %865 = vmatpush1.msra.mxu0 0.0
  %866 = vmatprep.subr.mxu0 0.0
  %867 = vmatpush1.msra.mxu0 0.0
  %868 = vmatprep.subr.mxu0 0.0
  %869 = vmatpush1.msra.mxu0 0.0
  %870 = vmatprep.subr.mxu0 0.0
  %871 = vmatpush1.msra.mxu0 0.0
  %872 = vmatprep.subr.mxu0 0.0
  %873 = vmatpush1.msra.mxu0 0.0
  %874 = vmatprep.subr.mxu0 0.0
  %875 = vmatpush1.msra.mxu0 0.0
  %876 = vmatprep.subr.mxu0 0.0
  %877 = vmatpush1.msra.mxu0 0.0
  %878 = vmatprep.subr.mxu0 0.0
  %879 = vmatpush1.msra.mxu0 0.0
  %880 = vmatprep.subr.mxu0 0.0
  %881 = vmatpush1.msra.mxu0 0.0
  %882 = vmatprep.subr.mxu0 0.0
  %883 = vmatpush1.msra.mxu0 0.0
  %884 = vmatprep.subr.mxu0 %v60
  %885 = vmatpush1.msra.mxu0 %v59
  %886 = vmatprep.subr.mxu0 %v58
  %887 = vmatpush1.msra.mxu0 %v57
  %888 = vmatprep.subr.mxu0 %v56
  %889 = vmatpush1.msra.mxu0 %v55
  %890 = vmatprep.subr.mxu0 %v54
  %891 = vmatpush1.msra.mxu0 %v53
  %892 = vmatprep.subr.mxu0 0.0
  %893 = vmatpush2.msra.mxu0 0.0
  %894 = vmatprep.subr.mxu0 0.0
  %895 = vmatpush2.msra.mxu0 0.0
  %896 = vmatprep.subr.mxu0 0.0
  %897 = vmatpush2.msra.mxu0 0.0
  %898 = vmatprep.subr.mxu0 0.0
  %899 = vmatpush2.msra.mxu0 0.0
  %900 = vmatprep.subr.mxu0 0.0
  %901 = vmatpush2.msra.mxu0 0.0
  %902 = vmatprep.subr.mxu0 0.0
  %903 = vmatpush2.msra.mxu0 0.0
  %904 = vmatprep.subr.mxu0 0.0
  %905 = vmatpush2.msra.mxu0 0.0
  %906 = vmatprep.subr.mxu0 0.0
  %907 = vmatpush2.msra.mxu0 0.0
  %908 = vmatprep.subr.mxu0 0.0
  %909 = vmatpush2.msra.mxu0 0.0
  %910 = vmatprep.subr.mxu0 0.0
  %911 = vmatpush2.msra.mxu0 0.0
  %912 = vmatprep.subr.mxu0 0.0
  %913 = vmatpush2.msra.mxu0 0.0
  %914 = vmatprep.subr.mxu0 0.0
  %915 = vmatpush2.msra.mxu0 0.0
  %916 = vmatprep.subr.mxu0 0.0
  %917 = vmatpush2.msra.mxu0 0.0
  %918 = vmatprep.subr.mxu0 0.0
  %919 = vmatpush2.msra.mxu0 0.0
  %920 = vmatprep.subr.mxu0 0.0
  %921 = vmatpush2.msra.mxu0 0.0
  %922 = vmatprep.subr.mxu0 0.0
  %923 = vmatpush2.msra.mxu0 0.0
  %924 = vmatprep.mubr.f32.mxu0 0.0
  %925 = vmatmul.mubr.f32.gmra.mxu0 %v858
  %v926 = vpop.f32.mrf.mxu0
  %v927 = vadd.f32 0.0, %v926
  %v928 = vpop.f32.mrf.mxu0
  %v929 = vadd.f32 0.0, %v928
  %930 = vdwg.mxu0
  %v932 = vsel %vm65, %v854, 0
  %934 = vmatprep.subr.mxu0 0.0
  %935 = vmatpush1.msra.mxu0 0.0
  %936 = vmatprep.subr.mxu0 0.0
  %937 = vmatpush1.msra.mxu0 0.0
  %938 = vmatprep.subr.mxu0 0.0
  %939 = vmatpush1.msra.mxu0 0.0
  %940 = vmatprep.subr.mxu0 0.0
  %941 = vmatpush1.msra.mxu0 0.0
  %942 = vmatprep.subr.mxu0 0.0
  %943 = vmatpush1.msra.mxu0 0.0
  %944 = vmatprep.subr.mxu0 0.0
  %945 = vmatpush1.msra.mxu0 0.0
  %946 = vmatprep.subr.mxu0 0.0
  %947 = vmatpush1.msra.mxu0 0.0
  %948 = vmatprep.subr.mxu0 0.0
  %949 = vmatpush1.msra.mxu0 0.0
  %950 = vmatprep.subr.mxu0 0.0
  %951 = vmatpush1.msra.mxu0 0.0
  %952 = vmatprep.subr.mxu0 0.0
  %953 = vmatpush1.msra.mxu0 0.0
  %954 = vmatprep.subr.mxu0 0.0
  %955 = vmatpush1.msra.mxu0 0.0
  %956 = vmatprep.subr.mxu0 0.0
  %957 = vmatpush1.msra.mxu0 0.0
  %958 = vmatprep.subr.mxu0 %v52
  %959 = vmatpush1.msra.mxu0 %v51
  %960 = vmatprep.subr.mxu0 %v50
  %961 = vmatpush1.msra.mxu0 %v49
  %962 = vmatprep.subr.mxu0 %v48
  %963 = vmatpush1.msra.mxu0 %v47
  %964 = vmatprep.subr.mxu0 %v46
  %965 = vmatpush1.msra.mxu0 %v45
  %966 = vmatprep.subr.mxu0 0.0
  %967 = vmatpush2.msra.mxu0 0.0
  %968 = vmatprep.subr.mxu0 0.0
  %969 = vmatpush2.msra.mxu0 0.0
  %970 = vmatprep.subr.mxu0 0.0
  %971 = vmatpush2.msra.mxu0 0.0
  %972 = vmatprep.subr.mxu0 0.0
  %973 = vmatpush2.msra.mxu0 0.0
  %974 = vmatprep.subr.mxu0 0.0
  %975 = vmatpush2.msra.mxu0 0.0
  %976 = vmatprep.subr.mxu0 0.0
  %977 = vmatpush2.msra.mxu0 0.0
  %978 = vmatprep.subr.mxu0 0.0
  %979 = vmatpush2.msra.mxu0 0.0
  %980 = vmatprep.subr.mxu0 0.0
  %981 = vmatpush2.msra.mxu0 0.0
  %982 = vmatprep.subr.mxu0 0.0
  %983 = vmatpush2.msra.mxu0 0.0
  %984 = vmatprep.subr.mxu0 0.0
  %985 = vmatpush2.msra.mxu0 0.0
  %986 = vmatprep.subr.mxu0 0.0
  %987 = vmatpush2.msra.mxu0 0.0
  %988 = vmatprep.subr.mxu0 0.0
  %989 = vmatpush2.msra.mxu0 0.0
  %990 = vmatprep.subr.mxu0 0.0
  %991 = vmatpush2.msra.mxu0 0.0
  %992 = vmatprep.subr.mxu0 0.0
  %993 = vmatpush2.msra.mxu0 0.0
  %994 = vmatprep.subr.mxu0 0.0
  %995 = vmatpush2.msra.mxu0 0.0
  %996 = vmatprep.subr.mxu0 0.0
  %997 = vmatpush2.msra.mxu0 0.0
  %998 = vmatprep.mubr.f32.mxu0 0.0
  %999 = vmatmul.mubr.f32.gmra.mxu0 %v932
  %v1000 = vpop.f32.mrf.mxu0
  %v1001 = vadd.f32 %v927, %v1000
  %v1002 = vpop.f32.mrf.mxu0
  %v1003 = vadd.f32 %v929, %v1002
  %1004 = vdwg.mxu0
  %v1005 = vsel %vm215, %v1001, %v1003
  %v1006 = vadd.f32 %v1005, %v61
  %v1007 = vmul.f32 %v1006, 0.5
  %v1008 = vsel %vm41, %v1006, %v1007
  %v1009 = vtanh.pop %v1008
  %v1010 = vmul.f32 %v1009, 0.5
  %v1011 = vadd.f32 %v1010, 0.5
  %v1012 = vsel %vm41, %v1009, %v1011
  %v1013 = vmul.f32 %v1012, %v838
  %1015 = vrot.lane.b32.xlu0 %v1012, 64
  %v1016 = vpop.permute.xlu0 %1015
  %v1018 = vmul.f32 %v1012, %v1016
  %1020 = vrot.lane.b32.xlu0 %v1018, 32
  %v1021 = vpop.permute.xlu0 %1020
  %v1023 = vadd.f32 %v1013, %v1021
  %v1024 = vtanh.pop %v1023
  %1026 = vrot.lane.b32.xlu0 %v1024, 64
  %v1027 = vpop.permute.xlu0 %1026
  %v1029 = vmul.f32 %v1012, %v1027
  %v1030 = vsel %vm857, 1, 0
  %1031 = vset.pattern.permute.xlu0 0
  %1032 = vperm.xlu0 %1031, %v1030
  %v1033 = vpop.permute.xlu0 %1032
  %vm1034 = vcmp.eq.s32.totalorder %v1033, 1
  %v1035 = vsel %vm1034, %v1023, %v838
  %v1036 = vsel %vm1034, %v1029, %v839
  %1038 = vrot.lane.b32.xlu0 %v1036, 32
  %v1039 = vpop.permute.xlu0 %1038
  %1041 = vst.msk [vmem:[%s846] sm:$0x3] %vm252, %v1039
  %1042 = vst.msk [vmem:[%s844 + $0x2] sm:$0x3] %vm252, %v1039
  %1043 = vrot.lane.b32.xlu0 %v1036, 64
  %v1044 = vpop.permute.xlu0 %1043
  %1046 = vst.msk [vmem:[%s844 - $0x2] sm:$0xc] %vm259, %v1044
  %1047 = vst.msk [vmem:[%s846] sm:$0xc] %vm259, %v1044
  %s1048 = scalar_lea.vmem %s0, 20
  %v1049 = vld [vmem:[%s1048] sm:$0xf]
  %s1050 = scalar_lea.vmem %s1, 20
  %v1051 = vld [vmem:[%s1050] sm:$0xf]
  %vm1052 = vcmp.gt.f32.partialorder %v1051, 0.5
  %v1053 = vsel %vm65, %v1039, 0
  %1055 = vmatprep.subr.mxu0 0.0
  %1056 = vmatpush1.msra.mxu0 0.0
  %1057 = vmatprep.subr.mxu0 0.0
  %1058 = vmatpush1.msra.mxu0 0.0
  %1059 = vmatprep.subr.mxu0 0.0
  %1060 = vmatpush1.msra.mxu0 0.0
  %1061 = vmatprep.subr.mxu0 0.0
  %1062 = vmatpush1.msra.mxu0 0.0
  %1063 = vmatprep.subr.mxu0 0.0
  %1064 = vmatpush1.msra.mxu0 0.0
  %1065 = vmatprep.subr.mxu0 0.0
  %1066 = vmatpush1.msra.mxu0 0.0
  %1067 = vmatprep.subr.mxu0 0.0
  %1068 = vmatpush1.msra.mxu0 0.0
  %1069 = vmatprep.subr.mxu0 0.0
  %1070 = vmatpush1.msra.mxu0 0.0
  %1071 = vmatprep.subr.mxu0 0.0
  %1072 = vmatpush1.msra.mxu0 0.0
  %1073 = vmatprep.subr.mxu0 0.0
  %1074 = vmatpush1.msra.mxu0 0.0
  %1075 = vmatprep.subr.mxu0 0.0
  %1076 = vmatpush1.msra.mxu0 0.0
  %1077 = vmatprep.subr.mxu0 0.0
  %1078 = vmatpush1.msra.mxu0 0.0
  %1079 = vmatprep.subr.mxu0 %v60
  %1080 = vmatpush1.msra.mxu0 %v59
  %1081 = vmatprep.subr.mxu0 %v58
  %1082 = vmatpush1.msra.mxu0 %v57
  %1083 = vmatprep.subr.mxu0 %v56
  %1084 = vmatpush1.msra.mxu0 %v55
  %1085 = vmatprep.subr.mxu0 %v54
  %1086 = vmatpush1.msra.mxu0 %v53
  %1087 = vmatprep.subr.mxu0 0.0
  %1088 = vmatpush2.msra.mxu0 0.0
  %1089 = vmatprep.subr.mxu0 0.0
  %1090 = vmatpush2.msra.mxu0 0.0
  %1091 = vmatprep.subr.mxu0 0.0
  %1092 = vmatpush2.msra.mxu0 0.0
  %1093 = vmatprep.subr.mxu0 0.0
  %1094 = vmatpush2.msra.mxu0 0.0
  %1095 = vmatprep.subr.mxu0 0.0
  %1096 = vmatpush2.msra.mxu0 0.0
  %1097 = vmatprep.subr.mxu0 0.0
  %1098 = vmatpush2.msra.mxu0 0.0
  %1099 = vmatprep.subr.mxu0 0.0
  %1100 = vmatpush2.msra.mxu0 0.0
  %1101 = vmatprep.subr.mxu0 0.0
  %1102 = vmatpush2.msra.mxu0 0.0
  %1103 = vmatprep.subr.mxu0 0.0
  %1104 = vmatpush2.msra.mxu0 0.0
  %1105 = vmatprep.subr.mxu0 0.0
  %1106 = vmatpush2.msra.mxu0 0.0
  %1107 = vmatprep.subr.mxu0 0.0
  %1108 = vmatpush2.msra.mxu0 0.0
  %1109 = vmatprep.subr.mxu0 0.0
  %1110 = vmatpush2.msra.mxu0 0.0
  %1111 = vmatprep.subr.mxu0 0.0
  %1112 = vmatpush2.msra.mxu0 0.0
  %1113 = vmatprep.subr.mxu0 0.0
  %1114 = vmatpush2.msra.mxu0 0.0
  %1115 = vmatprep.subr.mxu0 0.0
  %1116 = vmatpush2.msra.mxu0 0.0
  %1117 = vmatprep.subr.mxu0 0.0
  %1118 = vmatpush2.msra.mxu0 0.0
  %1119 = vmatprep.mubr.f32.mxu0 0.0
  %1120 = vmatmul.mubr.f32.gmra.mxu0 %v1053
  %v1121 = vpop.f32.mrf.mxu0
  %v1122 = vadd.f32 0.0, %v1121
  %v1123 = vpop.f32.mrf.mxu0
  %v1124 = vadd.f32 0.0, %v1123
  %1125 = vdwg.mxu0
  %v1127 = vsel %vm65, %v1049, 0
  %1129 = vmatprep.subr.mxu0 0.0
  %1130 = vmatpush1.msra.mxu0 0.0
  %1131 = vmatprep.subr.mxu0 0.0
  %1132 = vmatpush1.msra.mxu0 0.0
  %1133 = vmatprep.subr.mxu0 0.0
  %1134 = vmatpush1.msra.mxu0 0.0
  %1135 = vmatprep.subr.mxu0 0.0
  %1136 = vmatpush1.msra.mxu0 0.0
  %1137 = vmatprep.subr.mxu0 0.0
  %1138 = vmatpush1.msra.mxu0 0.0
  %1139 = vmatprep.subr.mxu0 0.0
  %1140 = vmatpush1.msra.mxu0 0.0
  %1141 = vmatprep.subr.mxu0 0.0
  %1142 = vmatpush1.msra.mxu0 0.0
  %1143 = vmatprep.subr.mxu0 0.0
  %1144 = vmatpush1.msra.mxu0 0.0
  %1145 = vmatprep.subr.mxu0 0.0
  %1146 = vmatpush1.msra.mxu0 0.0
  %1147 = vmatprep.subr.mxu0 0.0
  %1148 = vmatpush1.msra.mxu0 0.0
  %1149 = vmatprep.subr.mxu0 0.0
  %1150 = vmatpush1.msra.mxu0 0.0
  %1151 = vmatprep.subr.mxu0 0.0
  %1152 = vmatpush1.msra.mxu0 0.0
  %1153 = vmatprep.subr.mxu0 %v52
  %1154 = vmatpush1.msra.mxu0 %v51
  %1155 = vmatprep.subr.mxu0 %v50
  %1156 = vmatpush1.msra.mxu0 %v49
  %1157 = vmatprep.subr.mxu0 %v48
  %1158 = vmatpush1.msra.mxu0 %v47
  %1159 = vmatprep.subr.mxu0 %v46
  %1160 = vmatpush1.msra.mxu0 %v45
  %1161 = vmatprep.subr.mxu0 0.0
  %1162 = vmatpush2.msra.mxu0 0.0
  %1163 = vmatprep.subr.mxu0 0.0
  %1164 = vmatpush2.msra.mxu0 0.0
  %1165 = vmatprep.subr.mxu0 0.0
  %1166 = vmatpush2.msra.mxu0 0.0
  %1167 = vmatprep.subr.mxu0 0.0
  %1168 = vmatpush2.msra.mxu0 0.0
  %1169 = vmatprep.subr.mxu0 0.0
  %1170 = vmatpush2.msra.mxu0 0.0
  %1171 = vmatprep.subr.mxu0 0.0
  %1172 = vmatpush2.msra.mxu0 0.0
  %1173 = vmatprep.subr.mxu0 0.0
  %1174 = vmatpush2.msra.mxu0 0.0
  %1175 = vmatprep.subr.mxu0 0.0
  %1176 = vmatpush2.msra.mxu0 0.0
  %1177 = vmatprep.subr.mxu0 0.0
  %1178 = vmatpush2.msra.mxu0 0.0
  %1179 = vmatprep.subr.mxu0 0.0
  %1180 = vmatpush2.msra.mxu0 0.0
  %1181 = vmatprep.subr.mxu0 0.0
  %1182 = vmatpush2.msra.mxu0 0.0
  %1183 = vmatprep.subr.mxu0 0.0
  %1184 = vmatpush2.msra.mxu0 0.0
  %1185 = vmatprep.subr.mxu0 0.0
  %1186 = vmatpush2.msra.mxu0 0.0
  %1187 = vmatprep.subr.mxu0 0.0
  %1188 = vmatpush2.msra.mxu0 0.0
  %1189 = vmatprep.subr.mxu0 0.0
  %1190 = vmatpush2.msra.mxu0 0.0
  %1191 = vmatprep.subr.mxu0 0.0
  %1192 = vmatpush2.msra.mxu0 0.0
  %1193 = vmatprep.mubr.f32.mxu0 0.0
  %1194 = vmatmul.mubr.f32.gmra.mxu0 %v1127
  %v1195 = vpop.f32.mrf.mxu0
  %v1196 = vadd.f32 %v1122, %v1195
  %v1197 = vpop.f32.mrf.mxu0
  %v1198 = vadd.f32 %v1124, %v1197
  %1199 = vdwg.mxu0
  %v1200 = vsel %vm215, %v1196, %v1198
  %v1201 = vadd.f32 %v1200, %v61
  %v1202 = vmul.f32 %v1201, 0.5
  %v1203 = vsel %vm41, %v1201, %v1202
  %v1204 = vtanh.pop %v1203
  %v1205 = vmul.f32 %v1204, 0.5
  %v1206 = vadd.f32 %v1205, 0.5
  %v1207 = vsel %vm41, %v1204, %v1206
  %v1208 = vmul.f32 %v1207, %v1035
  %1210 = vrot.lane.b32.xlu0 %v1207, 64
  %v1211 = vpop.permute.xlu0 %1210
  %v1213 = vmul.f32 %v1207, %v1211
  %1215 = vrot.lane.b32.xlu0 %v1213, 32
  %v1216 = vpop.permute.xlu0 %1215
  %v1218 = vadd.f32 %v1208, %v1216
  %v1219 = vtanh.pop %v1218
  %1221 = vrot.lane.b32.xlu0 %v1219, 64
  %v1222 = vpop.permute.xlu0 %1221
  %v1224 = vmul.f32 %v1207, %v1222
  %v1225 = vsel %vm1052, 1, 0
  %1226 = vset.pattern.permute.xlu0 0
  %1227 = vperm.xlu0 %1226, %v1225
  %v1228 = vpop.permute.xlu0 %1227
  %vm1229 = vcmp.eq.s32.totalorder %v1228, 1
  %v1230 = vsel %vm1229, %v1218, %v1035
  %v1231 = vsel %vm1229, %v1224, %v1036
  %1233 = vrot.lane.b32.xlu0 %v1231, 32
  %v1234 = vpop.permute.xlu0 %1233
  %1236 = vst.msk [vmem:[%s649] sm:$0x3] %vm252, %v1234
  %1237 = vst.msk [vmem:[%s647 + $0x2] sm:$0x3] %vm252, %v1234
  %1238 = vrot.lane.b32.xlu0 %v1231, 64
  %v1239 = vpop.permute.xlu0 %1238
  %1241 = vst.msk [vmem:[%s647 - $0x2] sm:$0xc] %vm259, %v1239
  %1242 = vst.msk [vmem:[%s649] sm:$0xc] %vm259, %v1239
  %s1243 = scalar_lea.vmem %s0, 24
  %v1244 = vld [vmem:[%s1243] sm:$0xf]
  %s1245 = scalar_lea.vmem %s1, 24
  %v1246 = vld [vmem:[%s1245] sm:$0xf]
  %vm1247 = vcmp.gt.f32.partialorder %v1246, 0.5
  %v1248 = vsel %vm65, %v1234, 0
  %1250 = vmatprep.subr.mxu0 0.0
  %1251 = vmatpush1.msra.mxu0 0.0
  %1252 = vmatprep.subr.mxu0 0.0
  %1253 = vmatpush1.msra.mxu0 0.0
  %1254 = vmatprep.subr.mxu0 0.0
  %1255 = vmatpush1.msra.mxu0 0.0
  %1256 = vmatprep.subr.mxu0 0.0
  %1257 = vmatpush1.msra.mxu0 0.0
  %1258 = vmatprep.subr.mxu0 0.0
  %1259 = vmatpush1.msra.mxu0 0.0
  %1260 = vmatprep.subr.mxu0 0.0
  %1261 = vmatpush1.msra.mxu0 0.0
  %1262 = vmatprep.subr.mxu0 0.0
  %1263 = vmatpush1.msra.mxu0 0.0
  %1264 = vmatprep.subr.mxu0 0.0
  %1265 = vmatpush1.msra.mxu0 0.0
  %1266 = vmatprep.subr.mxu0 0.0
  %1267 = vmatpush1.msra.mxu0 0.0
  %1268 = vmatprep.subr.mxu0 0.0
  %1269 = vmatpush1.msra.mxu0 0.0
  %1270 = vmatprep.subr.mxu0 0.0
  %1271 = vmatpush1.msra.mxu0 0.0
  %1272 = vmatprep.subr.mxu0 0.0
  %1273 = vmatpush1.msra.mxu0 0.0
  %1274 = vmatprep.subr.mxu0 %v60
  %1275 = vmatpush1.msra.mxu0 %v59
  %1276 = vmatprep.subr.mxu0 %v58
  %1277 = vmatpush1.msra.mxu0 %v57
  %1278 = vmatprep.subr.mxu0 %v56
  %1279 = vmatpush1.msra.mxu0 %v55
  %1280 = vmatprep.subr.mxu0 %v54
  %1281 = vmatpush1.msra.mxu0 %v53
  %1282 = vmatprep.subr.mxu0 0.0
  %1283 = vmatpush2.msra.mxu0 0.0
  %1284 = vmatprep.subr.mxu0 0.0
  %1285 = vmatpush2.msra.mxu0 0.0
  %1286 = vmatprep.subr.mxu0 0.0
  %1287 = vmatpush2.msra.mxu0 0.0
  %1288 = vmatprep.subr.mxu0 0.0
  %1289 = vmatpush2.msra.mxu0 0.0
  %1290 = vmatprep.subr.mxu0 0.0
  %1291 = vmatpush2.msra.mxu0 0.0
  %1292 = vmatprep.subr.mxu0 0.0
  %1293 = vmatpush2.msra.mxu0 0.0
  %1294 = vmatprep.subr.mxu0 0.0
  %1295 = vmatpush2.msra.mxu0 0.0
  %1296 = vmatprep.subr.mxu0 0.0
  %1297 = vmatpush2.msra.mxu0 0.0
  %1298 = vmatprep.subr.mxu0 0.0
  %1299 = vmatpush2.msra.mxu0 0.0
  %1300 = vmatprep.subr.mxu0 0.0
  %1301 = vmatpush2.msra.mxu0 0.0
  %1302 = vmatprep.subr.mxu0 0.0
  %1303 = vmatpush2.msra.mxu0 0.0
  %1304 = vmatprep.subr.mxu0 0.0
  %1305 = vmatpush2.msra.mxu0 0.0
  %1306 = vmatprep.subr.mxu0 0.0
  %1307 = vmatpush2.msra.mxu0 0.0
  %1308 = vmatprep.subr.mxu0 0.0
  %1309 = vmatpush2.msra.mxu0 0.0
  %1310 = vmatprep.subr.mxu0 0.0
  %1311 = vmatpush2.msra.mxu0 0.0
  %1312 = vmatprep.subr.mxu0 0.0
  %1313 = vmatpush2.msra.mxu0 0.0
  %1314 = vmatprep.mubr.f32.mxu0 0.0
  %1315 = vmatmul.mubr.f32.gmra.mxu0 %v1248
  %v1316 = vpop.f32.mrf.mxu0
  %v1317 = vadd.f32 0.0, %v1316
  %v1318 = vpop.f32.mrf.mxu0
  %v1319 = vadd.f32 0.0, %v1318
  %1320 = vdwg.mxu0
  %v1322 = vsel %vm65, %v1244, 0
  %1324 = vmatprep.subr.mxu0 0.0
  %1325 = vmatpush1.msra.mxu0 0.0
  %1326 = vmatprep.subr.mxu0 0.0
  %1327 = vmatpush1.msra.mxu0 0.0
  %1328 = vmatprep.subr.mxu0 0.0
  %1329 = vmatpush1.msra.mxu0 0.0
  %1330 = vmatprep.subr.mxu0 0.0
  %1331 = vmatpush1.msra.mxu0 0.0
  %1332 = vmatprep.subr.mxu0 0.0
  %1333 = vmatpush1.msra.mxu0 0.0
  %1334 = vmatprep.subr.mxu0 0.0
  %1335 = vmatpush1.msra.mxu0 0.0
  %1336 = vmatprep.subr.mxu0 0.0
  %1337 = vmatpush1.msra.mxu0 0.0
  %1338 = vmatprep.subr.mxu0 0.0
  %1339 = vmatpush1.msra.mxu0 0.0
  %1340 = vmatprep.subr.mxu0 0.0
  %1341 = vmatpush1.msra.mxu0 0.0
  %1342 = vmatprep.subr.mxu0 0.0
  %1343 = vmatpush1.msra.mxu0 0.0
  %1344 = vmatprep.subr.mxu0 0.0
  %1345 = vmatpush1.msra.mxu0 0.0
  %1346 = vmatprep.subr.mxu0 0.0
  %1347 = vmatpush1.msra.mxu0 0.0
  %1348 = vmatprep.subr.mxu0 %v52
  %1349 = vmatpush1.msra.mxu0 %v51
  %1350 = vmatprep.subr.mxu0 %v50
  %1351 = vmatpush1.msra.mxu0 %v49
  %1352 = vmatprep.subr.mxu0 %v48
  %1353 = vmatpush1.msra.mxu0 %v47
  %1354 = vmatprep.subr.mxu0 %v46
  %1355 = vmatpush1.msra.mxu0 %v45
  %1356 = vmatprep.subr.mxu0 0.0
  %1357 = vmatpush2.msra.mxu0 0.0
  %1358 = vmatprep.subr.mxu0 0.0
  %1359 = vmatpush2.msra.mxu0 0.0
  %1360 = vmatprep.subr.mxu0 0.0
  %1361 = vmatpush2.msra.mxu0 0.0
  %1362 = vmatprep.subr.mxu0 0.0
  %1363 = vmatpush2.msra.mxu0 0.0
  %1364 = vmatprep.subr.mxu0 0.0
  %1365 = vmatpush2.msra.mxu0 0.0
  %1366 = vmatprep.subr.mxu0 0.0
  %1367 = vmatpush2.msra.mxu0 0.0
  %1368 = vmatprep.subr.mxu0 0.0
  %1369 = vmatpush2.msra.mxu0 0.0
  %1370 = vmatprep.subr.mxu0 0.0
  %1371 = vmatpush2.msra.mxu0 0.0
  %1372 = vmatprep.subr.mxu0 0.0
  %1373 = vmatpush2.msra.mxu0 0.0
  %1374 = vmatprep.subr.mxu0 0.0
  %1375 = vmatpush2.msra.mxu0 0.0
  %1376 = vmatprep.subr.mxu0 0.0
  %1377 = vmatpush2.msra.mxu0 0.0
  %1378 = vmatprep.subr.mxu0 0.0
  %1379 = vmatpush2.msra.mxu0 0.0
  %1380 = vmatprep.subr.mxu0 0.0
  %1381 = vmatpush2.msra.mxu0 0.0
  %1382 = vmatprep.subr.mxu0 0.0
  %1383 = vmatpush2.msra.mxu0 0.0
  %1384 = vmatprep.subr.mxu0 0.0
  %1385 = vmatpush2.msra.mxu0 0.0
  %1386 = vmatprep.subr.mxu0 0.0
  %1387 = vmatpush2.msra.mxu0 0.0
  %1388 = vmatprep.mubr.f32.mxu0 0.0
  %1389 = vmatmul.mubr.f32.gmra.mxu0 %v1322
  %v1390 = vpop.f32.mrf.mxu0
  %v1391 = vadd.f32 %v1317, %v1390
  %v1392 = vpop.f32.mrf.mxu0
  %v1393 = vadd.f32 %v1319, %v1392
  %1394 = vdwg.mxu0
  %v1395 = vsel %vm215, %v1391, %v1393
  %v1396 = vadd.f32 %v1395, %v61
  %v1397 = vmul.f32 %v1396, 0.5
  %v1398 = vsel %vm41, %v1396, %v1397
  %v1399 = vtanh.pop %v1398
  %v1400 = vmul.f32 %v1399, 0.5
  %v1401 = vadd.f32 %v1400, 0.5
  %v1402 = vsel %vm41, %v1399, %v1401
  %v1403 = vmul.f32 %v1402, %v1230
  %1405 = vrot.lane.b32.xlu0 %v1402, 64
  %v1406 = vpop.permute.xlu0 %1405
  %v1408 = vmul.f32 %v1402, %v1406
  %1410 = vrot.lane.b32.xlu0 %v1408, 32
  %v1411 = vpop.permute.xlu0 %1410
  %v1413 = vadd.f32 %v1403, %v1411
  %v1414 = vtanh.pop %v1413
  %1416 = vrot.lane.b32.xlu0 %v1414, 64
  %v1417 = vpop.permute.xlu0 %1416
  %v1419 = vmul.f32 %v1402, %v1417
  %v1420 = vsel %vm1247, 1, 0
  %1421 = vset.pattern.permute.xlu0 0
  %1422 = vperm.xlu0 %1421, %v1420
  %v1423 = vpop.permute.xlu0 %1422
  %vm1424 = vcmp.eq.s32.totalorder %v1423, 1
  %v1425 = vsel %vm1424, %v1413, %v1230
  %v1426 = vsel %vm1424, %v1419, %v1231
  %1428 = vrot.lane.b32.xlu0 %v1426, 32
  %v1429 = vpop.permute.xlu0 %1428
  %1431 = vst.msk [vmem:[%s452] sm:$0x3] %vm252, %v1429
  %1432 = vst.msk [vmem:[%s450 + $0x2] sm:$0x3] %vm252, %v1429
  %1433 = vrot.lane.b32.xlu0 %v1426, 64
  %v1434 = vpop.permute.xlu0 %1433
  %1436 = vst.msk [vmem:[%s450 - $0x2] sm:$0xc] %vm259, %v1434
  %1437 = vst.msk [vmem:[%s452] sm:$0xc] %vm259, %v1434
  %s1438 = scalar_lea.vmem %s0, 28
  %v1439 = vld [vmem:[%s1438] sm:$0xf]
  %s1440 = scalar_lea.vmem %s1, 28
  %v1441 = vld [vmem:[%s1440] sm:$0xf]
  %vm1442 = vcmp.gt.f32.partialorder %v1441, 0.5
  %v1443 = vsel %vm65, %v1429, 0
  %1445 = vmatprep.subr.mxu0 0.0
  %1446 = vmatpush1.msra.mxu0 0.0
  %1447 = vmatprep.subr.mxu0 0.0
  %1448 = vmatpush1.msra.mxu0 0.0
  %1449 = vmatprep.subr.mxu0 0.0
  %1450 = vmatpush1.msra.mxu0 0.0
  %1451 = vmatprep.subr.mxu0 0.0
  %1452 = vmatpush1.msra.mxu0 0.0
  %1453 = vmatprep.subr.mxu0 0.0
  %1454 = vmatpush1.msra.mxu0 0.0
  %1455 = vmatprep.subr.mxu0 0.0
  %1456 = vmatpush1.msra.mxu0 0.0
  %1457 = vmatprep.subr.mxu0 0.0
  %1458 = vmatpush1.msra.mxu0 0.0
  %1459 = vmatprep.subr.mxu0 0.0
  %1460 = vmatpush1.msra.mxu0 0.0
  %1461 = vmatprep.subr.mxu0 0.0
  %1462 = vmatpush1.msra.mxu0 0.0
  %1463 = vmatprep.subr.mxu0 0.0
  %1464 = vmatpush1.msra.mxu0 0.0
  %1465 = vmatprep.subr.mxu0 0.0
  %1466 = vmatpush1.msra.mxu0 0.0
  %1467 = vmatprep.subr.mxu0 0.0
  %1468 = vmatpush1.msra.mxu0 0.0
  %1469 = vmatprep.subr.mxu0 %v60
  %1470 = vmatpush1.msra.mxu0 %v59
  %1471 = vmatprep.subr.mxu0 %v58
  %1472 = vmatpush1.msra.mxu0 %v57
  %1473 = vmatprep.subr.mxu0 %v56
  %1474 = vmatpush1.msra.mxu0 %v55
  %1475 = vmatprep.subr.mxu0 %v54
  %1476 = vmatpush1.msra.mxu0 %v53
  %1477 = vmatprep.subr.mxu0 0.0
  %1478 = vmatpush2.msra.mxu0 0.0
  %1479 = vmatprep.subr.mxu0 0.0
  %1480 = vmatpush2.msra.mxu0 0.0
  %1481 = vmatprep.subr.mxu0 0.0
  %1482 = vmatpush2.msra.mxu0 0.0
  %1483 = vmatprep.subr.mxu0 0.0
  %1484 = vmatpush2.msra.mxu0 0.0
  %1485 = vmatprep.subr.mxu0 0.0
  %1486 = vmatpush2.msra.mxu0 0.0
  %1487 = vmatprep.subr.mxu0 0.0
  %1488 = vmatpush2.msra.mxu0 0.0
  %1489 = vmatprep.subr.mxu0 0.0
  %1490 = vmatpush2.msra.mxu0 0.0
  %1491 = vmatprep.subr.mxu0 0.0
  %1492 = vmatpush2.msra.mxu0 0.0
  %1493 = vmatprep.subr.mxu0 0.0
  %1494 = vmatpush2.msra.mxu0 0.0
  %1495 = vmatprep.subr.mxu0 0.0
  %1496 = vmatpush2.msra.mxu0 0.0
  %1497 = vmatprep.subr.mxu0 0.0
  %1498 = vmatpush2.msra.mxu0 0.0
  %1499 = vmatprep.subr.mxu0 0.0
  %1500 = vmatpush2.msra.mxu0 0.0
  %1501 = vmatprep.subr.mxu0 0.0
  %1502 = vmatpush2.msra.mxu0 0.0
  %1503 = vmatprep.subr.mxu0 0.0
  %1504 = vmatpush2.msra.mxu0 0.0
  %1505 = vmatprep.subr.mxu0 0.0
  %1506 = vmatpush2.msra.mxu0 0.0
  %1507 = vmatprep.subr.mxu0 0.0
  %1508 = vmatpush2.msra.mxu0 0.0
  %1509 = vmatprep.mubr.f32.mxu0 0.0
  %1510 = vmatmul.mubr.f32.gmra.mxu0 %v1443
  %v1511 = vpop.f32.mrf.mxu0
  %v1512 = vadd.f32 0.0, %v1511
  %v1513 = vpop.f32.mrf.mxu0
  %v1514 = vadd.f32 0.0, %v1513
  %1515 = vdwg.mxu0
  %v1517 = vsel %vm65, %v1439, 0
  %1519 = vmatprep.subr.mxu0 0.0
  %1520 = vmatpush1.msra.mxu0 0.0
  %1521 = vmatprep.subr.mxu0 0.0
  %1522 = vmatpush1.msra.mxu0 0.0
  %1523 = vmatprep.subr.mxu0 0.0
  %1524 = vmatpush1.msra.mxu0 0.0
  %1525 = vmatprep.subr.mxu0 0.0
  %1526 = vmatpush1.msra.mxu0 0.0
  %1527 = vmatprep.subr.mxu0 0.0
  %1528 = vmatpush1.msra.mxu0 0.0
  %1529 = vmatprep.subr.mxu0 0.0
  %1530 = vmatpush1.msra.mxu0 0.0
  %1531 = vmatprep.subr.mxu0 0.0
  %1532 = vmatpush1.msra.mxu0 0.0
  %1533 = vmatprep.subr.mxu0 0.0
  %1534 = vmatpush1.msra.mxu0 0.0
  %1535 = vmatprep.subr.mxu0 0.0
  %1536 = vmatpush1.msra.mxu0 0.0
  %1537 = vmatprep.subr.mxu0 0.0
  %1538 = vmatpush1.msra.mxu0 0.0
  %1539 = vmatprep.subr.mxu0 0.0
  %1540 = vmatpush1.msra.mxu0 0.0
  %1541 = vmatprep.subr.mxu0 0.0
  %1542 = vmatpush1.msra.mxu0 0.0
  %1543 = vmatprep.subr.mxu0 %v52
  %1544 = vmatpush1.msra.mxu0 %v51
  %1545 = vmatprep.subr.mxu0 %v50
  %1546 = vmatpush1.msra.mxu0 %v49
  %1547 = vmatprep.subr.mxu0 %v48
  %1548 = vmatpush1.msra.mxu0 %v47
  %1549 = vmatprep.subr.mxu0 %v46
  %1550 = vmatpush1.msra.mxu0 %v45
  %1551 = vmatprep.subr.mxu0 0.0
  %1552 = vmatpush2.msra.mxu0 0.0
  %1553 = vmatprep.subr.mxu0 0.0
  %1554 = vmatpush2.msra.mxu0 0.0
  %1555 = vmatprep.subr.mxu0 0.0
  %1556 = vmatpush2.msra.mxu0 0.0
  %1557 = vmatprep.subr.mxu0 0.0
  %1558 = vmatpush2.msra.mxu0 0.0
  %1559 = vmatprep.subr.mxu0 0.0
  %1560 = vmatpush2.msra.mxu0 0.0
  %1561 = vmatprep.subr.mxu0 0.0
  %1562 = vmatpush2.msra.mxu0 0.0
  %1563 = vmatprep.subr.mxu0 0.0
  %1564 = vmatpush2.msra.mxu0 0.0
  %1565 = vmatprep.subr.mxu0 0.0
  %1566 = vmatpush2.msra.mxu0 0.0
  %1567 = vmatprep.subr.mxu0 0.0
  %1568 = vmatpush2.msra.mxu0 0.0
  %1569 = vmatprep.subr.mxu0 0.0
  %1570 = vmatpush2.msra.mxu0 0.0
  %1571 = vmatprep.subr.mxu0 0.0
  %1572 = vmatpush2.msra.mxu0 0.0
  %1573 = vmatprep.subr.mxu0 0.0
  %1574 = vmatpush2.msra.mxu0 0.0
  %1575 = vmatprep.subr.mxu0 0.0
  %1576 = vmatpush2.msra.mxu0 0.0
  %1577 = vmatprep.subr.mxu0 0.0
  %1578 = vmatpush2.msra.mxu0 0.0
  %1579 = vmatprep.subr.mxu0 0.0
  %1580 = vmatpush2.msra.mxu0 0.0
  %1581 = vmatprep.subr.mxu0 0.0
  %1582 = vmatpush2.msra.mxu0 0.0
  %1583 = vmatprep.mubr.f32.mxu0 0.0
  %1584 = vmatmul.mubr.f32.gmra.mxu0 %v1517
  %v1585 = vpop.f32.mrf.mxu0
  %v1586 = vadd.f32 %v1512, %v1585
  %v1587 = vpop.f32.mrf.mxu0
  %v1588 = vadd.f32 %v1514, %v1587
  %1589 = vdwg.mxu0
  %v1590 = vsel %vm215, %v1586, %v1588
  %v1591 = vadd.f32 %v1590, %v61
  %v1592 = vmul.f32 %v1591, 0.5
  %v1593 = vsel %vm41, %v1591, %v1592
  %v1594 = vtanh.pop %v1593
  %v1595 = vmul.f32 %v1594, 0.5
  %v1596 = vadd.f32 %v1595, 0.5
  %v1597 = vsel %vm41, %v1594, %v1596
  %v1598 = vmul.f32 %v1597, %v1425
  %1600 = vrot.lane.b32.xlu0 %v1597, 64
  %v1601 = vpop.permute.xlu0 %1600
  %v1603 = vmul.f32 %v1597, %v1601
  %1605 = vrot.lane.b32.xlu0 %v1603, 32
  %v1606 = vpop.permute.xlu0 %1605
  %v1608 = vadd.f32 %v1598, %v1606
  %v1609 = vtanh.pop %v1608
  %1611 = vrot.lane.b32.xlu0 %v1609, 64
  %v1612 = vpop.permute.xlu0 %1611
  %v1614 = vmul.f32 %v1597, %v1612
  %v1615 = vsel %vm1442, 1, 0
  %1616 = vset.pattern.permute.xlu0 0
  %1617 = vperm.xlu0 %1616, %v1615
  %v1618 = vpop.permute.xlu0 %1617
  %vm1619 = vcmp.eq.s32.totalorder %v1618, 1
  %v1620 = vsel %vm1619, %v1614, %v1426
  %1622 = vrot.lane.b32.xlu0 %v1620, 32
  %v1623 = vpop.permute.xlu0 %1622
  %1625 = vst.msk [vmem:[%s254] sm:$0x3] %vm252, %v1623
  %1626 = vst.msk [vmem:[#allocation2 + $0x2] sm:$0x3] %vm252, %v1623
  %1627 = vrot.lane.b32.xlu0 %v1620, 64
  %v1628 = vpop.permute.xlu0 %1627
  %1630 = vst.msk [vmem:[#allocation2 - $0x2] sm:$0xc] %vm259, %v1628
  %1631 = vst.msk [vmem:[%s254] sm:$0xc] %vm259, %v1628
  %v1632 = vld [vmem:[%s5] sm:$0xff]
  %v1633 = vld [vmem:[%s5 + $0x8] sm:$0xff]
  %v1634 = vld [vmem:[%s5 + $0x10] sm:$0xff]
  %v1635 = vld [vmem:[%s5 + $0x18] sm:$0xff]
  %v1636 = vld [vmem:[%s5 + $0x20] sm:$0xff]
  %v1637 = vld [vmem:[%s5 + $0x28] sm:$0xff]
  %v1638 = vld [vmem:[%s5 + $0x30] sm:$0xff]
  %v1639 = vld [vmem:[%s5 + $0x38] sm:$0xff]
  %v1640 = vld [vmem:[%s5 + $0x40] sm:$0xff]
  %v1641 = vld [vmem:[%s5 + $0x48] sm:$0xff]
  %v1642 = vld [vmem:[%s5 + $0x50] sm:$0xff]
  %v1643 = vld [vmem:[%s5 + $0x58] sm:$0xff]
  %v1644 = vld [vmem:[%s5 + $0x60] sm:$0xff]
  %v1645 = vld [vmem:[%s5 + $0x68] sm:$0xff]
  %v1646 = vld [vmem:[%s5 + $0x70] sm:$0xff]
  %v1647 = vld [vmem:[%s5 + $0x78] sm:$0xff]
  %v1648 = vld [vmem:[%s6] sm:$0xff]
  %v1649 = vld [vmem:[%s6 + $0x8] sm:$0xff]
  %v1650 = vld [vmem:[%s6 + $0x10] sm:$0xff]
  %v1651 = vld [vmem:[%s6 + $0x18] sm:$0xff]
  %v1652 = vld [vmem:[%s6 + $0x20] sm:$0xff]
  %v1653 = vld [vmem:[%s6 + $0x28] sm:$0xff]
  %v1654 = vld [vmem:[%s6 + $0x30] sm:$0xff]
  %v1655 = vld [vmem:[%s6 + $0x38] sm:$0xff]
  %v1656 = vld [vmem:[%s7] sm:$0xf]
  %v1657 = vld [vmem:[#allocation2] sm:$0xf]
  %v1658 = vld [vmem:[%s1] sm:$0xf]
  %vm1659 = vcmp.gt.f32.partialorder %v1658, 0.5
  %1660 = vmatprep.subr.mxu0 0.0
  %1661 = vmatpush1.msra.mxu0 0.0
  %1662 = vmatprep.subr.mxu0 0.0
  %1663 = vmatpush1.msra.mxu0 0.0
  %1664 = vmatprep.subr.mxu0 0.0
  %1665 = vmatpush1.msra.mxu0 0.0
  %1666 = vmatprep.subr.mxu0 0.0
  %1667 = vmatpush1.msra.mxu0 0.0
  %1668 = vmatprep.subr.mxu0 0.0
  %1669 = vmatpush1.msra.mxu0 0.0
  %1670 = vmatprep.subr.mxu0 0.0
  %1671 = vmatpush1.msra.mxu0 0.0
  %1672 = vmatprep.subr.mxu0 0.0
  %1673 = vmatpush1.msra.mxu0 0.0
  %1674 = vmatprep.subr.mxu0 0.0
  %1675 = vmatpush1.msra.mxu0 0.0
  %1676 = vmatprep.subr.mxu0 0.0
  %1677 = vmatpush1.msra.mxu0 0.0
  %1678 = vmatprep.subr.mxu0 0.0
  %1679 = vmatpush1.msra.mxu0 0.0
  %1680 = vmatprep.subr.mxu0 0.0
  %1681 = vmatpush1.msra.mxu0 0.0
  %1682 = vmatprep.subr.mxu0 0.0
  %1683 = vmatpush1.msra.mxu0 0.0
  %1684 = vmatprep.subr.mxu0 %v1655
  %1685 = vmatpush1.msra.mxu0 %v1654
  %1686 = vmatprep.subr.mxu0 %v1653
  %1687 = vmatpush1.msra.mxu0 %v1652
  %1688 = vmatprep.subr.mxu0 %v1651
  %1689 = vmatpush1.msra.mxu0 %v1650
  %1690 = vmatprep.subr.mxu0 %v1649
  %1691 = vmatpush1.msra.mxu0 %v1648
  %1692 = vmatprep.subr.mxu0 0.0
  %1693 = vmatpush2.msra.mxu0 0.0
  %1694 = vmatprep.subr.mxu0 0.0
  %1695 = vmatpush2.msra.mxu0 0.0
  %1696 = vmatprep.subr.mxu0 0.0
  %1697 = vmatpush2.msra.mxu0 0.0
  %1698 = vmatprep.subr.mxu0 0.0
  %1699 = vmatpush2.msra.mxu0 0.0
  %1700 = vmatprep.subr.mxu0 0.0
  %1701 = vmatpush2.msra.mxu0 0.0
  %1702 = vmatprep.subr.mxu0 0.0
  %1703 = vmatpush2.msra.mxu0 0.0
  %1704 = vmatprep.subr.mxu0 0.0
  %1705 = vmatpush2.msra.mxu0 0.0
  %1706 = vmatprep.subr.mxu0 0.0
  %1707 = vmatpush2.msra.mxu0 0.0
  %1708 = vmatprep.subr.mxu0 0.0
  %1709 = vmatpush2.msra.mxu0 0.0
  %1710 = vmatprep.subr.mxu0 0.0
  %1711 = vmatpush2.msra.mxu0 0.0
  %1712 = vmatprep.subr.mxu0 0.0
  %1713 = vmatpush2.msra.mxu0 0.0
  %1714 = vmatprep.subr.mxu0 0.0
  %1715 = vmatpush2.msra.mxu0 0.0
  %1716 = vmatprep.subr.mxu0 0.0
  %1717 = vmatpush2.msra.mxu0 0.0
  %1718 = vmatprep.subr.mxu0 0.0
  %1719 = vmatpush2.msra.mxu0 0.0
  %1720 = vmatprep.subr.mxu0 0.0
  %1721 = vmatpush2.msra.mxu0 0.0
  %1722 = vmatprep.subr.mxu0 0.0
  %1723 = vmatpush2.msra.mxu0 0.0
  %1724 = vmatprep.mubr.f32.mxu0 0.0
  %1725 = vmatmul.mubr.f32.gmra.mxu0 %v67
  %v1726 = vpop.f32.mrf.mxu0
  %v1727 = vadd.f32 0.0, %v1726
  %v1728 = vpop.f32.mrf.mxu0
  %v1729 = vadd.f32 0.0, %v1728
  %1730 = vdwg.mxu0
  %vm1731 = vcmask 523264
  %v1733 = vsel %vm1731, %v1657, 0
  %1735 = vmatprep.subr.mxu0 0.0
  %1736 = vmatpush1.msra.mxu0 0.0
  %1737 = vmatprep.subr.mxu0 0.0
  %1738 = vmatpush1.msra.mxu0 0.0
  %1739 = vmatprep.subr.mxu0 0.0
  %1740 = vmatpush1.msra.mxu0 0.0
  %1741 = vmatprep.subr.mxu0 0.0
  %1742 = vmatpush1.msra.mxu0 0.0
  %1743 = vmatprep.subr.mxu0 0.0
  %1744 = vmatpush1.msra.mxu0 0.0
  %1745 = vmatprep.subr.mxu0 0.0
  %1746 = vmatpush1.msra.mxu0 0.0
  %1747 = vmatprep.subr.mxu0 0.0
  %1748 = vmatpush1.msra.mxu0 0.0
  %1749 = vmatprep.subr.mxu0 0.0
  %1750 = vmatpush1.msra.mxu0 0.0
  %1751 = vmatprep.subr.mxu0 %v1647
  %1752 = vmatpush1.msra.mxu0 %v1646
  %1753 = vmatprep.subr.mxu0 %v1645
  %1754 = vmatpush1.msra.mxu0 %v1644
  %1755 = vmatprep.subr.mxu0 %v1643
  %1756 = vmatpush1.msra.mxu0 %v1642
  %1757 = vmatprep.subr.mxu0 %v1641
  %1758 = vmatpush1.msra.mxu0 %v1640
  %1759 = vmatprep.subr.mxu0 %v1639
  %1760 = vmatpush1.msra.mxu0 %v1638
  %1761 = vmatprep.subr.mxu0 %v1637
  %1762 = vmatpush1.msra.mxu0 %v1636
  %1763 = vmatprep.subr.mxu0 %v1635
  %1764 = vmatpush1.msra.mxu0 %v1634
  %1765 = vmatprep.subr.mxu0 %v1633
  %1766 = vmatpush1.msra.mxu0 %v1632
  %1767 = vmatprep.subr.mxu0 0.0
  %1768 = vmatpush2.msra.mxu0 0.0
  %1769 = vmatprep.subr.mxu0 0.0
  %1770 = vmatpush2.msra.mxu0 0.0
  %1771 = vmatprep.subr.mxu0 0.0
  %1772 = vmatpush2.msra.mxu0 0.0
  %1773 = vmatprep.subr.mxu0 0.0
  %1774 = vmatpush2.msra.mxu0 0.0
  %1775 = vmatprep.subr.mxu0 0.0
  %1776 = vmatpush2.msra.mxu0 0.0
  %1777 = vmatprep.subr.mxu0 0.0
  %1778 = vmatpush2.msra.mxu0 0.0
  %1779 = vmatprep.subr.mxu0 0.0
  %1780 = vmatpush2.msra.mxu0 0.0
  %1781 = vmatprep.subr.mxu0 0.0
  %1782 = vmatpush2.msra.mxu0 0.0
  %1783 = vmatprep.subr.mxu0 0.0
  %1784 = vmatpush2.msra.mxu0 0.0
  %1785 = vmatprep.subr.mxu0 0.0
  %1786 = vmatpush2.msra.mxu0 0.0
  %1787 = vmatprep.subr.mxu0 0.0
  %1788 = vmatpush2.msra.mxu0 0.0
  %1789 = vmatprep.subr.mxu0 0.0
  %1790 = vmatpush2.msra.mxu0 0.0
  %1791 = vmatprep.subr.mxu0 0.0
  %1792 = vmatpush2.msra.mxu0 0.0
  %1793 = vmatprep.subr.mxu0 0.0
  %1794 = vmatpush2.msra.mxu0 0.0
  %1795 = vmatprep.subr.mxu0 0.0
  %1796 = vmatpush2.msra.mxu0 0.0
  %1797 = vmatprep.subr.mxu0 0.0
  %1798 = vmatpush2.msra.mxu0 0.0
  %1799 = vmatprep.mubr.f32.mxu0 0.0
  %1800 = vmatmul.mubr.f32.gmra.mxu0 %v1733
  %v1801 = vpop.f32.mrf.mxu0
  %v1802 = vadd.f32 %v1727, %v1801
  %v1803 = vpop.f32.mrf.mxu0
  %v1804 = vadd.f32 %v1729, %v1803
  %1805 = vdwg.mxu0
  %v1806 = vsel %vm215, %v1802, %v1804
  %v1807 = vadd.f32 %v1806, %v1656
  %v1808 = vmul.f32 %v1807, 0.5
  %v1809 = vsel %vm41, %v1807, %v1808
  %v1810 = vtanh.pop %v1809
  %v1811 = vmul.f32 %v1810, 0.5
  %v1812 = vadd.f32 %v1811, 0.5
  %v1813 = vsel %vm41, %v1810, %v1812
  %v1814 = vmul.f32 %v1813, 0.0
  %1816 = vrot.lane.b32.xlu0 %v1813, 64
  %v1817 = vpop.permute.xlu0 %1816
  %v1819 = vmul.f32 %v1813, %v1817
  %1821 = vrot.lane.b32.xlu0 %v1819, 32
  %v1822 = vpop.permute.xlu0 %1821
  %v1824 = vadd.f32 %v1814, %v1822
  %v1825 = vtanh.pop %v1824
  %1827 = vrot.lane.b32.xlu0 %v1825, 64
  %v1828 = vpop.permute.xlu0 %1827
  %v1830 = vmul.f32 %v1813, %v1828
  %v1831 = vsel %vm1659, 1, 0
  %1832 = vset.pattern.permute.xlu0 0
  %1833 = vperm.xlu0 %1832, %v1831
  %v1834 = vpop.permute.xlu0 %1833
  %vm1835 = vcmp.eq.s32.totalorder %v1834, 1
  %v1836 = vsel %vm1835, %v1824, 0.0
  %v1837 = vsel %vm1835, %v1830, 0.0
  %v1838 = vld [vmem:[%s450] sm:$0xf]
  %v1839 = vld [vmem:[%s264] sm:$0xf]
  %vm1840 = vcmp.gt.f32.partialorder %v1839, 0.5
  %1842 = vrot.lane.b32.xlu0 %v1837, 32
  %v1843 = vpop.permute.xlu0 %1842
  %v1844 = vsel %vm65, %v1843, 0
  %1846 = vmatprep.subr.mxu0 0.0
  %1847 = vmatpush1.msra.mxu0 0.0
  %1848 = vmatprep.subr.mxu0 0.0
  %1849 = vmatpush1.msra.mxu0 0.0
  %1850 = vmatprep.subr.mxu0 0.0
  %1851 = vmatpush1.msra.mxu0 0.0
  %1852 = vmatprep.subr.mxu0 0.0
  %1853 = vmatpush1.msra.mxu0 0.0
  %1854 = vmatprep.subr.mxu0 0.0
  %1855 = vmatpush1.msra.mxu0 0.0
  %1856 = vmatprep.subr.mxu0 0.0
  %1857 = vmatpush1.msra.mxu0 0.0
  %1858 = vmatprep.subr.mxu0 0.0
  %1859 = vmatpush1.msra.mxu0 0.0
  %1860 = vmatprep.subr.mxu0 0.0
  %1861 = vmatpush1.msra.mxu0 0.0
  %1862 = vmatprep.subr.mxu0 0.0
  %1863 = vmatpush1.msra.mxu0 0.0
  %1864 = vmatprep.subr.mxu0 0.0
  %1865 = vmatpush1.msra.mxu0 0.0
  %1866 = vmatprep.subr.mxu0 0.0
  %1867 = vmatpush1.msra.mxu0 0.0
  %1868 = vmatprep.subr.mxu0 0.0
  %1869 = vmatpush1.msra.mxu0 0.0
  %1870 = vmatprep.subr.mxu0 %v1655
  %1871 = vmatpush1.msra.mxu0 %v1654
  %1872 = vmatprep.subr.mxu0 %v1653
  %1873 = vmatpush1.msra.mxu0 %v1652
  %1874 = vmatprep.subr.mxu0 %v1651
  %1875 = vmatpush1.msra.mxu0 %v1650
  %1876 = vmatprep.subr.mxu0 %v1649
  %1877 = vmatpush1.msra.mxu0 %v1648
  %1878 = vmatprep.subr.mxu0 0.0
  %1879 = vmatpush2.msra.mxu0 0.0
  %1880 = vmatprep.subr.mxu0 0.0
  %1881 = vmatpush2.msra.mxu0 0.0
  %1882 = vmatprep.subr.mxu0 0.0
  %1883 = vmatpush2.msra.mxu0 0.0
  %1884 = vmatprep.subr.mxu0 0.0
  %1885 = vmatpush2.msra.mxu0 0.0
  %1886 = vmatprep.subr.mxu0 0.0
  %1887 = vmatpush2.msra.mxu0 0.0
  %1888 = vmatprep.subr.mxu0 0.0
  %1889 = vmatpush2.msra.mxu0 0.0
  %1890 = vmatprep.subr.mxu0 0.0
  %1891 = vmatpush2.msra.mxu0 0.0
  %1892 = vmatprep.subr.mxu0 0.0
  %1893 = vmatpush2.msra.mxu0 0.0
  %1894 = vmatprep.subr.mxu0 0.0
  %1895 = vmatpush2.msra.mxu0 0.0
  %1896 = vmatprep.subr.mxu0 0.0
  %1897 = vmatpush2.msra.mxu0 0.0
  %1898 = vmatprep.subr.mxu0 0.0
  %1899 = vmatpush2.msra.mxu0 0.0
  %1900 = vmatprep.subr.mxu0 0.0
  %1901 = vmatpush2.msra.mxu0 0.0
  %1902 = vmatprep.subr.mxu0 0.0
  %1903 = vmatpush2.msra.mxu0 0.0
  %1904 = vmatprep.subr.mxu0 0.0
  %1905 = vmatpush2.msra.mxu0 0.0
  %1906 = vmatprep.subr.mxu0 0.0
  %1907 = vmatpush2.msra.mxu0 0.0
  %1908 = vmatprep.subr.mxu0 0.0
  %1909 = vmatpush2.msra.mxu0 0.0
  %1910 = vmatprep.mubr.f32.mxu0 0.0
  %1911 = vmatmul.mubr.f32.gmra.mxu0 %v1844
  %v1912 = vpop.f32.mrf.mxu0
  %v1913 = vadd.f32 0.0, %v1912
  %v1914 = vpop.f32.mrf.mxu0
  %v1915 = vadd.f32 0.0, %v1914
  %1916 = vdwg.mxu0
  %v1918 = vsel %vm1731, %v1838, 0
  %1920 = vmatprep.subr.mxu0 0.0
  %1921 = vmatpush1.msra.mxu0 0.0
  %1922 = vmatprep.subr.mxu0 0.0
  %1923 = vmatpush1.msra.mxu0 0.0
  %1924 = vmatprep.subr.mxu0 0.0
  %1925 = vmatpush1.msra.mxu0 0.0
  %1926 = vmatprep.subr.mxu0 0.0
  %1927 = vmatpush1.msra.mxu0 0.0
  %1928 = vmatprep.subr.mxu0 0.0
  %1929 = vmatpush1.msra.mxu0 0.0
  %1930 = vmatprep.subr.mxu0 0.0
  %1931 = vmatpush1.msra.mxu0 0.0
  %1932 = vmatprep.subr.mxu0 0.0
  %1933 = vmatpush1.msra.mxu0 0.0
  %1934 = vmatprep.subr.mxu0 0.0
  %1935 = vmatpush1.msra.mxu0 0.0
  %1936 = vmatprep.subr.mxu0 %v1647
  %1937 = vmatpush1.msra.mxu0 %v1646
  %1938 = vmatprep.subr.mxu0 %v1645
  %1939 = vmatpush1.msra.mxu0 %v1644
  %1940 = vmatprep.subr.mxu0 %v1643
  %1941 = vmatpush1.msra.mxu0 %v1642
  %1942 = vmatprep.subr.mxu0 %v1641
  %1943 = vmatpush1.msra.mxu0 %v1640
  %1944 = vmatprep.subr.mxu0 %v1639
  %1945 = vmatpush1.msra.mxu0 %v1638
  %1946 = vmatprep.subr.mxu0 %v1637
  %1947 = vmatpush1.msra.mxu0 %v1636
  %1948 = vmatprep.subr.mxu0 %v1635
  %1949 = vmatpush1.msra.mxu0 %v1634
  %1950 = vmatprep.subr.mxu0 %v1633
  %1951 = vmatpush1.msra.mxu0 %v1632
  %1952 = vmatprep.subr.mxu0 0.0
  %1953 = vmatpush2.msra.mxu0 0.0
  %1954 = vmatprep.subr.mxu0 0.0
  %1955 = vmatpush2.msra.mxu0 0.0
  %1956 = vmatprep.subr.mxu0 0.0
  %1957 = vmatpush2.msra.mxu0 0.0
  %1958 = vmatprep.subr.mxu0 0.0
  %1959 = vmatpush2.msra.mxu0 0.0
  %1960 = vmatprep.subr.mxu0 0.0
  %1961 = vmatpush2.msra.mxu0 0.0
  %1962 = vmatprep.subr.mxu0 0.0
  %1963 = vmatpush2.msra.mxu0 0.0
  %1964 = vmatprep.subr.mxu0 0.0
  %1965 = vmatpush2.msra.mxu0 0.0
  %1966 = vmatprep.subr.mxu0 0.0
  %1967 = vmatpush2.msra.mxu0 0.0
  %1968 = vmatprep.subr.mxu0 0.0
  %1969 = vmatpush2.msra.mxu0 0.0
  %1970 = vmatprep.subr.mxu0 0.0
  %1971 = vmatpush2.msra.mxu0 0.0
  %1972 = vmatprep.subr.mxu0 0.0
  %1973 = vmatpush2.msra.mxu0 0.0
  %1974 = vmatprep.subr.mxu0 0.0
  %1975 = vmatpush2.msra.mxu0 0.0
  %1976 = vmatprep.subr.mxu0 0.0
  %1977 = vmatpush2.msra.mxu0 0.0
  %1978 = vmatprep.subr.mxu0 0.0
  %1979 = vmatpush2.msra.mxu0 0.0
  %1980 = vmatprep.subr.mxu0 0.0
  %1981 = vmatpush2.msra.mxu0 0.0
  %1982 = vmatprep.subr.mxu0 0.0
  %1983 = vmatpush2.msra.mxu0 0.0
  %1984 = vmatprep.mubr.f32.mxu0 0.0
  %1985 = vmatmul.mubr.f32.gmra.mxu0 %v1918
  %v1986 = vpop.f32.mrf.mxu0
  %v1987 = vadd.f32 %v1913, %v1986
  %v1988 = vpop.f32.mrf.mxu0
  %v1989 = vadd.f32 %v1915, %v1988
  %1990 = vdwg.mxu0
  %v1991 = vsel %vm215, %v1987, %v1989
  %v1992 = vadd.f32 %v1991, %v1656
  %v1993 = vmul.f32 %v1992, 0.5
  %v1994 = vsel %vm41, %v1992, %v1993
  %v1995 = vtanh.pop %v1994
  %v1996 = vmul.f32 %v1995, 0.5
  %v1997 = vadd.f32 %v1996, 0.5
  %v1998 = vsel %vm41, %v1995, %v1997
  %v1999 = vmul.f32 %v1998, %v1836
  %2001 = vrot.lane.b32.xlu0 %v1998, 64
  %v2002 = vpop.permute.xlu0 %2001
  %v2004 = vmul.f32 %v1998, %v2002
  %2006 = vrot.lane.b32.xlu0 %v2004, 32
  %v2007 = vpop.permute.xlu0 %2006
  %v2009 = vadd.f32 %v1999, %v2007
  %v2010 = vtanh.pop %v2009
  %2012 = vrot.lane.b32.xlu0 %v2010, 64
  %v2013 = vpop.permute.xlu0 %2012
  %v2015 = vmul.f32 %v1998, %v2013
  %v2016 = vsel %vm1840, 1, 0
  %2017 = vset.pattern.permute.xlu0 0
  %2018 = vperm.xlu0 %2017, %v2016
  %v2019 = vpop.permute.xlu0 %2018
  %vm2020 = vcmp.eq.s32.totalorder %v2019, 1
  %v2021 = vsel %vm2020, %v2009, %v1836
  %v2022 = vsel %vm2020, %v2015, %v1837
  %v2023 = vld [vmem:[%s647] sm:$0xf]
  %v2024 = vld [vmem:[%s461] sm:$0xf]
  %vm2025 = vcmp.gt.f32.partialorder %v2024, 0.5
  %2027 = vrot.lane.b32.xlu0 %v2022, 32
  %v2028 = vpop.permute.xlu0 %2027
  %v2029 = vsel %vm65, %v2028, 0
  %2031 = vmatprep.subr.mxu0 0.0
  %2032 = vmatpush1.msra.mxu0 0.0
  %2033 = vmatprep.subr.mxu0 0.0
  %2034 = vmatpush1.msra.mxu0 0.0
  %2035 = vmatprep.subr.mxu0 0.0
  %2036 = vmatpush1.msra.mxu0 0.0
  %2037 = vmatprep.subr.mxu0 0.0
  %2038 = vmatpush1.msra.mxu0 0.0
  %2039 = vmatprep.subr.mxu0 0.0
  %2040 = vmatpush1.msra.mxu0 0.0
  %2041 = vmatprep.subr.mxu0 0.0
  %2042 = vmatpush1.msra.mxu0 0.0
  %2043 = vmatprep.subr.mxu0 0.0
  %2044 = vmatpush1.msra.mxu0 0.0
  %2045 = vmatprep.subr.mxu0 0.0
  %2046 = vmatpush1.msra.mxu0 0.0
  %2047 = vmatprep.subr.mxu0 0.0
  %2048 = vmatpush1.msra.mxu0 0.0
  %2049 = vmatprep.subr.mxu0 0.0
  %2050 = vmatpush1.msra.mxu0 0.0
  %2051 = vmatprep.subr.mxu0 0.0
  %2052 = vmatpush1.msra.mxu0 0.0
  %2053 = vmatprep.subr.mxu0 0.0
  %2054 = vmatpush1.msra.mxu0 0.0
  %2055 = vmatprep.subr.mxu0 %v1655
  %2056 = vmatpush1.msra.mxu0 %v1654
  %2057 = vmatprep.subr.mxu0 %v1653
  %2058 = vmatpush1.msra.mxu0 %v1652
  %2059 = vmatprep.subr.mxu0 %v1651
  %2060 = vmatpush1.msra.mxu0 %v1650
  %2061 = vmatprep.subr.mxu0 %v1649
  %2062 = vmatpush1.msra.mxu0 %v1648
  %2063 = vmatprep.subr.mxu0 0.0
  %2064 = vmatpush2.msra.mxu0 0.0
  %2065 = vmatprep.subr.mxu0 0.0
  %2066 = vmatpush2.msra.mxu0 0.0
  %2067 = vmatprep.subr.mxu0 0.0
  %2068 = vmatpush2.msra.mxu0 0.0
  %2069 = vmatprep.subr.mxu0 0.0
  %2070 = vmatpush2.msra.mxu0 0.0
  %2071 = vmatprep.subr.mxu0 0.0
  %2072 = vmatpush2.msra.mxu0 0.0
  %2073 = vmatprep.subr.mxu0 0.0
  %2074 = vmatpush2.msra.mxu0 0.0
  %2075 = vmatprep.subr.mxu0 0.0
  %2076 = vmatpush2.msra.mxu0 0.0
  %2077 = vmatprep.subr.mxu0 0.0
  %2078 = vmatpush2.msra.mxu0 0.0
  %2079 = vmatprep.subr.mxu0 0.0
  %2080 = vmatpush2.msra.mxu0 0.0
  %2081 = vmatprep.subr.mxu0 0.0
  %2082 = vmatpush2.msra.mxu0 0.0
  %2083 = vmatprep.subr.mxu0 0.0
  %2084 = vmatpush2.msra.mxu0 0.0
  %2085 = vmatprep.subr.mxu0 0.0
  %2086 = vmatpush2.msra.mxu0 0.0
  %2087 = vmatprep.subr.mxu0 0.0
  %2088 = vmatpush2.msra.mxu0 0.0
  %2089 = vmatprep.subr.mxu0 0.0
  %2090 = vmatpush2.msra.mxu0 0.0
  %2091 = vmatprep.subr.mxu0 0.0
  %2092 = vmatpush2.msra.mxu0 0.0
  %2093 = vmatprep.subr.mxu0 0.0
  %2094 = vmatpush2.msra.mxu0 0.0
  %2095 = vmatprep.mubr.f32.mxu0 0.0
  %2096 = vmatmul.mubr.f32.gmra.mxu0 %v2029
  %v2097 = vpop.f32.mrf.mxu0
  %v2098 = vadd.f32 0.0, %v2097
  %v2099 = vpop.f32.mrf.mxu0
  %v2100 = vadd.f32 0.0, %v2099
  %2101 = vdwg.mxu0
  %v2103 = vsel %vm1731, %v2023, 0
  %2105 = vmatprep.subr.mxu0 0.0
  %2106 = vmatpush1.msra.mxu0 0.0
  %2107 = vmatprep.subr.mxu0 0.0
  %2108 = vmatpush1.msra.mxu0 0.0
  %2109 = vmatprep.subr.mxu0 0.0
  %2110 = vmatpush1.msra.mxu0 0.0
  %2111 = vmatprep.subr.mxu0 0.0
  %2112 = vmatpush1.msra.mxu0 0.0
  %2113 = vmatprep.subr.mxu0 0.0
  %2114 = vmatpush1.msra.mxu0 0.0
  %2115 = vmatprep.subr.mxu0 0.0
  %2116 = vmatpush1.msra.mxu0 0.0
  %2117 = vmatprep.subr.mxu0 0.0
  %2118 = vmatpush1.msra.mxu0 0.0
  %2119 = vmatprep.subr.mxu0 0.0
  %2120 = vmatpush1.msra.mxu0 0.0
  %2121 = vmatprep.subr.mxu0 %v1647
  %2122 = vmatpush1.msra.mxu0 %v1646
  %2123 = vmatprep.subr.mxu0 %v1645
  %2124 = vmatpush1.msra.mxu0 %v1644
  %2125 = vmatprep.subr.mxu0 %v1643
  %2126 = vmatpush1.msra.mxu0 %v1642
  %2127 = vmatprep.subr.mxu0 %v1641
  %2128 = vmatpush1.msra.mxu0 %v1640
  %2129 = vmatprep.subr.mxu0 %v1639
  %2130 = vmatpush1.msra.mxu0 %v1638
  %2131 = vmatprep.subr.mxu0 %v1637
  %2132 = vmatpush1.msra.mxu0 %v1636
  %2133 = vmatprep.subr.mxu0 %v1635
  %2134 = vmatpush1.msra.mxu0 %v1634
  %2135 = vmatprep.subr.mxu0 %v1633
  %2136 = vmatpush1.msra.mxu0 %v1632
  %2137 = vmatprep.subr.mxu0 0.0
  %2138 = vmatpush2.msra.mxu0 0.0
  %2139 = vmatprep.subr.mxu0 0.0
  %2140 = vmatpush2.msra.mxu0 0.0
  %2141 = vmatprep.subr.mxu0 0.0
  %2142 = vmatpush2.msra.mxu0 0.0
  %2143 = vmatprep.subr.mxu0 0.0
  %2144 = vmatpush2.msra.mxu0 0.0
  %2145 = vmatprep.subr.mxu0 0.0
  %2146 = vmatpush2.msra.mxu0 0.0
  %2147 = vmatprep.subr.mxu0 0.0
  %2148 = vmatpush2.msra.mxu0 0.0
  %2149 = vmatprep.subr.mxu0 0.0
  %2150 = vmatpush2.msra.mxu0 0.0
  %2151 = vmatprep.subr.mxu0 0.0
  %2152 = vmatpush2.msra.mxu0 0.0
  %2153 = vmatprep.subr.mxu0 0.0
  %2154 = vmatpush2.msra.mxu0 0.0
  %2155 = vmatprep.subr.mxu0 0.0
  %2156 = vmatpush2.msra.mxu0 0.0
  %2157 = vmatprep.subr.mxu0 0.0
  %2158 = vmatpush2.msra.mxu0 0.0
  %2159 = vmatprep.subr.mxu0 0.0
  %2160 = vmatpush2.msra.mxu0 0.0
  %2161 = vmatprep.subr.mxu0 0.0
  %2162 = vmatpush2.msra.mxu0 0.0
  %2163 = vmatprep.subr.mxu0 0.0
  %2164 = vmatpush2.msra.mxu0 0.0
  %2165 = vmatprep.subr.mxu0 0.0
  %2166 = vmatpush2.msra.mxu0 0.0
  %2167 = vmatprep.subr.mxu0 0.0
  %2168 = vmatpush2.msra.mxu0 0.0
  %2169 = vmatprep.mubr.f32.mxu0 0.0
  %2170 = vmatmul.mubr.f32.gmra.mxu0 %v2103
  %v2171 = vpop.f32.mrf.mxu0
  %v2172 = vadd.f32 %v2098, %v2171
  %v2173 = vpop.f32.mrf.mxu0
  %v2174 = vadd.f32 %v2100, %v2173
  %2175 = vdwg.mxu0
  %v2176 = vsel %vm215, %v2172, %v2174
  %v2177 = vadd.f32 %v2176, %v1656
  %v2178 = vmul.f32 %v2177, 0.5
  %v2179 = vsel %vm41, %v2177, %v2178
  %v2180 = vtanh.pop %v2179
  %v2181 = vmul.f32 %v2180, 0.5
  %v2182 = vadd.f32 %v2181, 0.5
  %v2183 = vsel %vm41, %v2180, %v2182
  %v2184 = vmul.f32 %v2183, %v2021
  %2186 = vrot.lane.b32.xlu0 %v2183, 64
  %v2187 = vpop.permute.xlu0 %2186
  %v2189 = vmul.f32 %v2183, %v2187
  %2191 = vrot.lane.b32.xlu0 %v2189, 32
  %v2192 = vpop.permute.xlu0 %2191
  %v2194 = vadd.f32 %v2184, %v2192
  %v2195 = vtanh.pop %v2194
  %2197 = vrot.lane.b32.xlu0 %v2195, 64
  %v2198 = vpop.permute.xlu0 %2197
  %v2200 = vmul.f32 %v2183, %v2198
  %v2201 = vsel %vm2025, 1, 0
  %2202 = vset.pattern.permute.xlu0 0
  %2203 = vperm.xlu0 %2202, %v2201
  %v2204 = vpop.permute.xlu0 %2203
  %vm2205 = vcmp.eq.s32.totalorder %v2204, 1
  %v2206 = vsel %vm2205, %v2194, %v2021
  %v2207 = vsel %vm2205, %v2200, %v2022
  %v2208 = vld [vmem:[%s844] sm:$0xf]
  %v2209 = vld [vmem:[%s658] sm:$0xf]
  %vm2210 = vcmp.gt.f32.partialorder %v2209, 0.5
  %2212 = vrot.lane.b32.xlu0 %v2207, 32
  %v2213 = vpop.permute.xlu0 %2212
  %v2214 = vsel %vm65, %v2213, 0
  %2216 = vmatprep.subr.mxu0 0.0
  %2217 = vmatpush1.msra.mxu0 0.0
  %2218 = vmatprep.subr.mxu0 0.0
  %2219 = vmatpush1.msra.mxu0 0.0
  %2220 = vmatprep.subr.mxu0 0.0
  %2221 = vmatpush1.msra.mxu0 0.0
  %2222 = vmatprep.subr.mxu0 0.0
  %2223 = vmatpush1.msra.mxu0 0.0
  %2224 = vmatprep.subr.mxu0 0.0
  %2225 = vmatpush1.msra.mxu0 0.0
  %2226 = vmatprep.subr.mxu0 0.0
  %2227 = vmatpush1.msra.mxu0 0.0
  %2228 = vmatprep.subr.mxu0 0.0
  %2229 = vmatpush1.msra.mxu0 0.0
  %2230 = vmatprep.subr.mxu0 0.0
  %2231 = vmatpush1.msra.mxu0 0.0
  %2232 = vmatprep.subr.mxu0 0.0
  %2233 = vmatpush1.msra.mxu0 0.0
  %2234 = vmatprep.subr.mxu0 0.0
  %2235 = vmatpush1.msra.mxu0 0.0
  %2236 = vmatprep.subr.mxu0 0.0
  %2237 = vmatpush1.msra.mxu0 0.0
  %2238 = vmatprep.subr.mxu0 0.0
  %2239 = vmatpush1.msra.mxu0 0.0
  %2240 = vmatprep.subr.mxu0 %v1655
  %2241 = vmatpush1.msra.mxu0 %v1654
  %2242 = vmatprep.subr.mxu0 %v1653
  %2243 = vmatpush1.msra.mxu0 %v1652
  %2244 = vmatprep.subr.mxu0 %v1651
  %2245 = vmatpush1.msra.mxu0 %v1650
  %2246 = vmatprep.subr.mxu0 %v1649
  %2247 = vmatpush1.msra.mxu0 %v1648
  %2248 = vmatprep.subr.mxu0 0.0
  %2249 = vmatpush2.msra.mxu0 0.0
  %2250 = vmatprep.subr.mxu0 0.0
  %2251 = vmatpush2.msra.mxu0 0.0
  %2252 = vmatprep.subr.mxu0 0.0
  %2253 = vmatpush2.msra.mxu0 0.0
  %2254 = vmatprep.subr.mxu0 0.0
  %2255 = vmatpush2.msra.mxu0 0.0
  %2256 = vmatprep.subr.mxu0 0.0
  %2257 = vmatpush2.msra.mxu0 0.0
  %2258 = vmatprep.subr.mxu0 0.0
  %2259 = vmatpush2.msra.mxu0 0.0
  %2260 = vmatprep.subr.mxu0 0.0
  %2261 = vmatpush2.msra.mxu0 0.0
  %2262 = vmatprep.subr.mxu0 0.0
  %2263 = vmatpush2.msra.mxu0 0.0
  %2264 = vmatprep.subr.mxu0 0.0
  %2265 = vmatpush2.msra.mxu0 0.0
  %2266 = vmatprep.subr.mxu0 0.0
  %2267 = vmatpush2.msra.mxu0 0.0
  %2268 = vmatprep.subr.mxu0 0.0
  %2269 = vmatpush2.msra.mxu0 0.0
  %2270 = vmatprep.subr.mxu0 0.0
  %2271 = vmatpush2.msra.mxu0 0.0
  %2272 = vmatprep.subr.mxu0 0.0
  %2273 = vmatpush2.msra.mxu0 0.0
  %2274 = vmatprep.subr.mxu0 0.0
  %2275 = vmatpush2.msra.mxu0 0.0
  %2276 = vmatprep.subr.mxu0 0.0
  %2277 = vmatpush2.msra.mxu0 0.0
  %2278 = vmatprep.subr.mxu0 0.0
  %2279 = vmatpush2.msra.mxu0 0.0
  %2280 = vmatprep.mubr.f32.mxu0 0.0
  %2281 = vmatmul.mubr.f32.gmra.mxu0 %v2214
  %v2282 = vpop.f32.mrf.mxu0
  %v2283 = vadd.f32 0.0, %v2282
  %v2284 = vpop.f32.mrf.mxu0
  %v2285 = vadd.f32 0.0, %v2284
  %2286 = vdwg.mxu0
  %v2288 = vsel %vm1731, %v2208, 0
  %2290 = vmatprep.subr.mxu0 0.0
  %2291 = vmatpush1.msra.mxu0 0.0
  %2292 = vmatprep.subr.mxu0 0.0
  %2293 = vmatpush1.msra.mxu0 0.0
  %2294 = vmatprep.subr.mxu0 0.0
  %2295 = vmatpush1.msra.mxu0 0.0
  %2296 = vmatprep.subr.mxu0 0.0
  %2297 = vmatpush1.msra.mxu0 0.0
  %2298 = vmatprep.subr.mxu0 0.0
  %2299 = vmatpush1.msra.mxu0 0.0
  %2300 = vmatprep.subr.mxu0 0.0
  %2301 = vmatpush1.msra.mxu0 0.0
  %2302 = vmatprep.subr.mxu0 0.0
  %2303 = vmatpush1.msra.mxu0 0.0
  %2304 = vmatprep.subr.mxu0 0.0
  %2305 = vmatpush1.msra.mxu0 0.0
  %2306 = vmatprep.subr.mxu0 %v1647
  %2307 = vmatpush1.msra.mxu0 %v1646
  %2308 = vmatprep.subr.mxu0 %v1645
  %2309 = vmatpush1.msra.mxu0 %v1644
  %2310 = vmatprep.subr.mxu0 %v1643
  %2311 = vmatpush1.msra.mxu0 %v1642
  %2312 = vmatprep.subr.mxu0 %v1641
  %2313 = vmatpush1.msra.mxu0 %v1640
  %2314 = vmatprep.subr.mxu0 %v1639
  %2315 = vmatpush1.msra.mxu0 %v1638
  %2316 = vmatprep.subr.mxu0 %v1637
  %2317 = vmatpush1.msra.mxu0 %v1636
  %2318 = vmatprep.subr.mxu0 %v1635
  %2319 = vmatpush1.msra.mxu0 %v1634
  %2320 = vmatprep.subr.mxu0 %v1633
  %2321 = vmatpush1.msra.mxu0 %v1632
  %2322 = vmatprep.subr.mxu0 0.0
  %2323 = vmatpush2.msra.mxu0 0.0
  %2324 = vmatprep.subr.mxu0 0.0
  %2325 = vmatpush2.msra.mxu0 0.0
  %2326 = vmatprep.subr.mxu0 0.0
  %2327 = vmatpush2.msra.mxu0 0.0
  %2328 = vmatprep.subr.mxu0 0.0
  %2329 = vmatpush2.msra.mxu0 0.0
  %2330 = vmatprep.subr.mxu0 0.0
  %2331 = vmatpush2.msra.mxu0 0.0
  %2332 = vmatprep.subr.mxu0 0.0
  %2333 = vmatpush2.msra.mxu0 0.0
  %2334 = vmatprep.subr.mxu0 0.0
  %2335 = vmatpush2.msra.mxu0 0.0
  %2336 = vmatprep.subr.mxu0 0.0
  %2337 = vmatpush2.msra.mxu0 0.0
  %2338 = vmatprep.subr.mxu0 0.0
  %2339 = vmatpush2.msra.mxu0 0.0
  %2340 = vmatprep.subr.mxu0 0.0
  %2341 = vmatpush2.msra.mxu0 0.0
  %2342 = vmatprep.subr.mxu0 0.0
  %2343 = vmatpush2.msra.mxu0 0.0
  %2344 = vmatprep.subr.mxu0 0.0
  %2345 = vmatpush2.msra.mxu0 0.0
  %2346 = vmatprep.subr.mxu0 0.0
  %2347 = vmatpush2.msra.mxu0 0.0
  %2348 = vmatprep.subr.mxu0 0.0
  %2349 = vmatpush2.msra.mxu0 0.0
  %2350 = vmatprep.subr.mxu0 0.0
  %2351 = vmatpush2.msra.mxu0 0.0
  %2352 = vmatprep.subr.mxu0 0.0
  %2353 = vmatpush2.msra.mxu0 0.0
  %2354 = vmatprep.mubr.f32.mxu0 0.0
  %2355 = vmatmul.mubr.f32.gmra.mxu0 %v2288
  %v2356 = vpop.f32.mrf.mxu0
  %v2357 = vadd.f32 %v2283, %v2356
  %v2358 = vpop.f32.mrf.mxu0
  %v2359 = vadd.f32 %v2285, %v2358
  %2360 = vdwg.mxu0
  %v2361 = vsel %vm215, %v2357, %v2359
  %v2362 = vadd.f32 %v2361, %v1656
  %v2363 = vmul.f32 %v2362, 0.5
  %v2364 = vsel %vm41, %v2362, %v2363
  %v2365 = vtanh.pop %v2364
  %v2366 = vmul.f32 %v2365, 0.5
  %v2367 = vadd.f32 %v2366, 0.5
  %v2368 = vsel %vm41, %v2365, %v2367
  %v2369 = vmul.f32 %v2368, %v2206
  %2371 = vrot.lane.b32.xlu0 %v2368, 64
  %v2372 = vpop.permute.xlu0 %2371
  %v2374 = vmul.f32 %v2368, %v2372
  %2376 = vrot.lane.b32.xlu0 %v2374, 32
  %v2377 = vpop.permute.xlu0 %2376
  %v2379 = vadd.f32 %v2369, %v2377
  %v2380 = vtanh.pop %v2379
  %2382 = vrot.lane.b32.xlu0 %v2380, 64
  %v2383 = vpop.permute.xlu0 %2382
  %v2385 = vmul.f32 %v2368, %v2383
  %v2386 = vsel %vm2210, 1, 0
  %2387 = vset.pattern.permute.xlu0 0
  %2388 = vperm.xlu0 %2387, %v2386
  %v2389 = vpop.permute.xlu0 %2388
  %vm2390 = vcmp.eq.s32.totalorder %v2389, 1
  %v2391 = vsel %vm2390, %v2379, %v2206
  %v2392 = vsel %vm2390, %v2385, %v2207
  %v2393 = vld [vmem:[%s846] sm:$0xf]
  %v2394 = vld [vmem:[%s855] sm:$0xf]
  %vm2395 = vcmp.gt.f32.partialorder %v2394, 0.5
  %2397 = vrot.lane.b32.xlu0 %v2392, 32
  %v2398 = vpop.permute.xlu0 %2397
  %v2399 = vsel %vm65, %v2398, 0
  %2401 = vmatprep.subr.mxu0 0.0
  %2402 = vmatpush1.msra.mxu0 0.0
  %2403 = vmatprep.subr.mxu0 0.0
  %2404 = vmatpush1.msra.mxu0 0.0
  %2405 = vmatprep.subr.mxu0 0.0
  %2406 = vmatpush1.msra.mxu0 0.0
  %2407 = vmatprep.subr.mxu0 0.0
  %2408 = vmatpush1.msra.mxu0 0.0
  %2409 = vmatprep.subr.mxu0 0.0
  %2410 = vmatpush1.msra.mxu0 0.0
  %2411 = vmatprep.subr.mxu0 0.0
  %2412 = vmatpush1.msra.mxu0 0.0
  %2413 = vmatprep.subr.mxu0 0.0
  %2414 = vmatpush1.msra.mxu0 0.0
  %2415 = vmatprep.subr.mxu0 0.0
  %2416 = vmatpush1.msra.mxu0 0.0
  %2417 = vmatprep.subr.mxu0 0.0
  %2418 = vmatpush1.msra.mxu0 0.0
  %2419 = vmatprep.subr.mxu0 0.0
  %2420 = vmatpush1.msra.mxu0 0.0
  %2421 = vmatprep.subr.mxu0 0.0
  %2422 = vmatpush1.msra.mxu0 0.0
  %2423 = vmatprep.subr.mxu0 0.0
  %2424 = vmatpush1.msra.mxu0 0.0
  %2425 = vmatprep.subr.mxu0 %v1655
  %2426 = vmatpush1.msra.mxu0 %v1654
  %2427 = vmatprep.subr.mxu0 %v1653
  %2428 = vmatpush1.msra.mxu0 %v1652
  %2429 = vmatprep.subr.mxu0 %v1651
  %2430 = vmatpush1.msra.mxu0 %v1650
  %2431 = vmatprep.subr.mxu0 %v1649
  %2432 = vmatpush1.msra.mxu0 %v1648
  %2433 = vmatprep.subr.mxu0 0.0
  %2434 = vmatpush2.msra.mxu0 0.0
  %2435 = vmatprep.subr.mxu0 0.0
  %2436 = vmatpush2.msra.mxu0 0.0
  %2437 = vmatprep.subr.mxu0 0.0
  %2438 = vmatpush2.msra.mxu0 0.0
  %2439 = vmatprep.subr.mxu0 0.0
  %2440 = vmatpush2.msra.mxu0 0.0
  %2441 = vmatprep.subr.mxu0 0.0
  %2442 = vmatpush2.msra.mxu0 0.0
  %2443 = vmatprep.subr.mxu0 0.0
  %2444 = vmatpush2.msra.mxu0 0.0
  %2445 = vmatprep.subr.mxu0 0.0
  %2446 = vmatpush2.msra.mxu0 0.0
  %2447 = vmatprep.subr.mxu0 0.0
  %2448 = vmatpush2.msra.mxu0 0.0
  %2449 = vmatprep.subr.mxu0 0.0
  %2450 = vmatpush2.msra.mxu0 0.0
  %2451 = vmatprep.subr.mxu0 0.0
  %2452 = vmatpush2.msra.mxu0 0.0
  %2453 = vmatprep.subr.mxu0 0.0
  %2454 = vmatpush2.msra.mxu0 0.0
  %2455 = vmatprep.subr.mxu0 0.0
  %2456 = vmatpush2.msra.mxu0 0.0
  %2457 = vmatprep.subr.mxu0 0.0
  %2458 = vmatpush2.msra.mxu0 0.0
  %2459 = vmatprep.subr.mxu0 0.0
  %2460 = vmatpush2.msra.mxu0 0.0
  %2461 = vmatprep.subr.mxu0 0.0
  %2462 = vmatpush2.msra.mxu0 0.0
  %2463 = vmatprep.subr.mxu0 0.0
  %2464 = vmatpush2.msra.mxu0 0.0
  %2465 = vmatprep.mubr.f32.mxu0 0.0
  %2466 = vmatmul.mubr.f32.gmra.mxu0 %v2399
  %v2467 = vpop.f32.mrf.mxu0
  %v2468 = vadd.f32 0.0, %v2467
  %v2469 = vpop.f32.mrf.mxu0
  %v2470 = vadd.f32 0.0, %v2469
  %2471 = vdwg.mxu0
  %v2473 = vsel %vm1731, %v2393, 0
  %2475 = vmatprep.subr.mxu0 0.0
  %2476 = vmatpush1.msra.mxu0 0.0
  %2477 = vmatprep.subr.mxu0 0.0
  %2478 = vmatpush1.msra.mxu0 0.0
  %2479 = vmatprep.subr.mxu0 0.0
  %2480 = vmatpush1.msra.mxu0 0.0
  %2481 = vmatprep.subr.mxu0 0.0
  %2482 = vmatpush1.msra.mxu0 0.0
  %2483 = vmatprep.subr.mxu0 0.0
  %2484 = vmatpush1.msra.mxu0 0.0
  %2485 = vmatprep.subr.mxu0 0.0
  %2486 = vmatpush1.msra.mxu0 0.0
  %2487 = vmatprep.subr.mxu0 0.0
  %2488 = vmatpush1.msra.mxu0 0.0
  %2489 = vmatprep.subr.mxu0 0.0
  %2490 = vmatpush1.msra.mxu0 0.0
  %2491 = vmatprep.subr.mxu0 %v1647
  %2492 = vmatpush1.msra.mxu0 %v1646
  %2493 = vmatprep.subr.mxu0 %v1645
  %2494 = vmatpush1.msra.mxu0 %v1644
  %2495 = vmatprep.subr.mxu0 %v1643
  %2496 = vmatpush1.msra.mxu0 %v1642
  %2497 = vmatprep.subr.mxu0 %v1641
  %2498 = vmatpush1.msra.mxu0 %v1640
  %2499 = vmatprep.subr.mxu0 %v1639
  %2500 = vmatpush1.msra.mxu0 %v1638
  %2501 = vmatprep.subr.mxu0 %v1637
  %2502 = vmatpush1.msra.mxu0 %v1636
  %2503 = vmatprep.subr.mxu0 %v1635
  %2504 = vmatpush1.msra.mxu0 %v1634
  %2505 = vmatprep.subr.mxu0 %v1633
  %2506 = vmatpush1.msra.mxu0 %v1632
  %2507 = vmatprep.subr.mxu0 0.0
  %2508 = vmatpush2.msra.mxu0 0.0
  %2509 = vmatprep.subr.mxu0 0.0
  %2510 = vmatpush2.msra.mxu0 0.0
  %2511 = vmatprep.subr.mxu0 0.0
  %2512 = vmatpush2.msra.mxu0 0.0
  %2513 = vmatprep.subr.mxu0 0.0
  %2514 = vmatpush2.msra.mxu0 0.0
  %2515 = vmatprep.subr.mxu0 0.0
  %2516 = vmatpush2.msra.mxu0 0.0
  %2517 = vmatprep.subr.mxu0 0.0
  %2518 = vmatpush2.msra.mxu0 0.0
  %2519 = vmatprep.subr.mxu0 0.0
  %2520 = vmatpush2.msra.mxu0 0.0
  %2521 = vmatprep.subr.mxu0 0.0
  %2522 = vmatpush2.msra.mxu0 0.0
  %2523 = vmatprep.subr.mxu0 0.0
  %2524 = vmatpush2.msra.mxu0 0.0
  %2525 = vmatprep.subr.mxu0 0.0
  %2526 = vmatpush2.msra.mxu0 0.0
  %2527 = vmatprep.subr.mxu0 0.0
  %2528 = vmatpush2.msra.mxu0 0.0
  %2529 = vmatprep.subr.mxu0 0.0
  %2530 = vmatpush2.msra.mxu0 0.0
  %2531 = vmatprep.subr.mxu0 0.0
  %2532 = vmatpush2.msra.mxu0 0.0
  %2533 = vmatprep.subr.mxu0 0.0
  %2534 = vmatpush2.msra.mxu0 0.0
  %2535 = vmatprep.subr.mxu0 0.0
  %2536 = vmatpush2.msra.mxu0 0.0
  %2537 = vmatprep.subr.mxu0 0.0
  %2538 = vmatpush2.msra.mxu0 0.0
  %2539 = vmatprep.mubr.f32.mxu0 0.0
  %2540 = vmatmul.mubr.f32.gmra.mxu0 %v2473
  %v2541 = vpop.f32.mrf.mxu0
  %v2542 = vadd.f32 %v2468, %v2541
  %v2543 = vpop.f32.mrf.mxu0
  %v2544 = vadd.f32 %v2470, %v2543
  %2545 = vdwg.mxu0
  %v2546 = vsel %vm215, %v2542, %v2544
  %v2547 = vadd.f32 %v2546, %v1656
  %v2548 = vmul.f32 %v2547, 0.5
  %v2549 = vsel %vm41, %v2547, %v2548
  %v2550 = vtanh.pop %v2549
  %v2551 = vmul.f32 %v2550, 0.5
  %v2552 = vadd.f32 %v2551, 0.5
  %v2553 = vsel %vm41, %v2550, %v2552
  %v2554 = vmul.f32 %v2553, %v2391
  %2556 = vrot.lane.b32.xlu0 %v2553, 64
  %v2557 = vpop.permute.xlu0 %2556
  %v2559 = vmul.f32 %v2553, %v2557
  %2561 = vrot.lane.b32.xlu0 %v2559, 32
  %v2562 = vpop.permute.xlu0 %2561
  %v2564 = vadd.f32 %v2554, %v2562
  %v2565 = vtanh.pop %v2564
  %2567 = vrot.lane.b32.xlu0 %v2565, 64
  %v2568 = vpop.permute.xlu0 %2567
  %v2570 = vmul.f32 %v2553, %v2568
  %v2571 = vsel %vm2395, 1, 0
  %2572 = vset.pattern.permute.xlu0 0
  %2573 = vperm.xlu0 %2572, %v2571
  %v2574 = vpop.permute.xlu0 %2573
  %vm2575 = vcmp.eq.s32.totalorder %v2574, 1
  %v2576 = vsel %vm2575, %v2564, %v2391
  %v2577 = vsel %vm2575, %v2570, %v2392
  %v2578 = vld [vmem:[%s649] sm:$0xf]
  %v2579 = vld [vmem:[%s1050] sm:$0xf]
  %vm2580 = vcmp.gt.f32.partialorder %v2579, 0.5
  %2582 = vrot.lane.b32.xlu0 %v2577, 32
  %v2583 = vpop.permute.xlu0 %2582
  %v2584 = vsel %vm65, %v2583, 0
  %2586 = vmatprep.subr.mxu0 0.0
  %2587 = vmatpush1.msra.mxu0 0.0
  %2588 = vmatprep.subr.mxu0 0.0
  %2589 = vmatpush1.msra.mxu0 0.0
  %2590 = vmatprep.subr.mxu0 0.0
  %2591 = vmatpush1.msra.mxu0 0.0
  %2592 = vmatprep.subr.mxu0 0.0
  %2593 = vmatpush1.msra.mxu0 0.0
  %2594 = vmatprep.subr.mxu0 0.0
  %2595 = vmatpush1.msra.mxu0 0.0
  %2596 = vmatprep.subr.mxu0 0.0
  %2597 = vmatpush1.msra.mxu0 0.0
  %2598 = vmatprep.subr.mxu0 0.0
  %2599 = vmatpush1.msra.mxu0 0.0
  %2600 = vmatprep.subr.mxu0 0.0
  %2601 = vmatpush1.msra.mxu0 0.0
  %2602 = vmatprep.subr.mxu0 0.0
  %2603 = vmatpush1.msra.mxu0 0.0
  %2604 = vmatprep.subr.mxu0 0.0
  %2605 = vmatpush1.msra.mxu0 0.0
  %2606 = vmatprep.subr.mxu0 0.0
  %2607 = vmatpush1.msra.mxu0 0.0
  %2608 = vmatprep.subr.mxu0 0.0
  %2609 = vmatpush1.msra.mxu0 0.0
  %2610 = vmatprep.subr.mxu0 %v1655
  %2611 = vmatpush1.msra.mxu0 %v1654
  %2612 = vmatprep.subr.mxu0 %v1653
  %2613 = vmatpush1.msra.mxu0 %v1652
  %2614 = vmatprep.subr.mxu0 %v1651
  %2615 = vmatpush1.msra.mxu0 %v1650
  %2616 = vmatprep.subr.mxu0 %v1649
  %2617 = vmatpush1.msra.mxu0 %v1648
  %2618 = vmatprep.subr.mxu0 0.0
  %2619 = vmatpush2.msra.mxu0 0.0
  %2620 = vmatprep.subr.mxu0 0.0
  %2621 = vmatpush2.msra.mxu0 0.0
  %2622 = vmatprep.subr.mxu0 0.0
  %2623 = vmatpush2.msra.mxu0 0.0
  %2624 = vmatprep.subr.mxu0 0.0
  %2625 = vmatpush2.msra.mxu0 0.0
  %2626 = vmatprep.subr.mxu0 0.0
  %2627 = vmatpush2.msra.mxu0 0.0
  %2628 = vmatprep.subr.mxu0 0.0
  %2629 = vmatpush2.msra.mxu0 0.0
  %2630 = vmatprep.subr.mxu0 0.0
  %2631 = vmatpush2.msra.mxu0 0.0
  %2632 = vmatprep.subr.mxu0 0.0
  %2633 = vmatpush2.msra.mxu0 0.0
  %2634 = vmatprep.subr.mxu0 0.0
  %2635 = vmatpush2.msra.mxu0 0.0
  %2636 = vmatprep.subr.mxu0 0.0
  %2637 = vmatpush2.msra.mxu0 0.0
  %2638 = vmatprep.subr.mxu0 0.0
  %2639 = vmatpush2.msra.mxu0 0.0
  %2640 = vmatprep.subr.mxu0 0.0
  %2641 = vmatpush2.msra.mxu0 0.0
  %2642 = vmatprep.subr.mxu0 0.0
  %2643 = vmatpush2.msra.mxu0 0.0
  %2644 = vmatprep.subr.mxu0 0.0
  %2645 = vmatpush2.msra.mxu0 0.0
  %2646 = vmatprep.subr.mxu0 0.0
  %2647 = vmatpush2.msra.mxu0 0.0
  %2648 = vmatprep.subr.mxu0 0.0
  %2649 = vmatpush2.msra.mxu0 0.0
  %2650 = vmatprep.mubr.f32.mxu0 0.0
  %2651 = vmatmul.mubr.f32.gmra.mxu0 %v2584
  %v2652 = vpop.f32.mrf.mxu0
  %v2653 = vadd.f32 0.0, %v2652
  %v2654 = vpop.f32.mrf.mxu0
  %v2655 = vadd.f32 0.0, %v2654
  %2656 = vdwg.mxu0
  %v2658 = vsel %vm1731, %v2578, 0
  %2660 = vmatprep.subr.mxu0 0.0
  %2661 = vmatpush1.msra.mxu0 0.0
  %2662 = vmatprep.subr.mxu0 0.0
  %2663 = vmatpush1.msra.mxu0 0.0
  %2664 = vmatprep.subr.mxu0 0.0
  %2665 = vmatpush1.msra.mxu0 0.0
  %2666 = vmatprep.subr.mxu0 0.0
  %2667 = vmatpush1.msra.mxu0 0.0
  %2668 = vmatprep.subr.mxu0 0.0
  %2669 = vmatpush1.msra.mxu0 0.0
  %2670 = vmatprep.subr.mxu0 0.0
  %2671 = vmatpush1.msra.mxu0 0.0
  %2672 = vmatprep.subr.mxu0 0.0
  %2673 = vmatpush1.msra.mxu0 0.0
  %2674 = vmatprep.subr.mxu0 0.0
  %2675 = vmatpush1.msra.mxu0 0.0
  %2676 = vmatprep.subr.mxu0 %v1647
  %2677 = vmatpush1.msra.mxu0 %v1646
  %2678 = vmatprep.subr.mxu0 %v1645
  %2679 = vmatpush1.msra.mxu0 %v1644
  %2680 = vmatprep.subr.mxu0 %v1643
  %2681 = vmatpush1.msra.mxu0 %v1642
  %2682 = vmatprep.subr.mxu0 %v1641
  %2683 = vmatpush1.msra.mxu0 %v1640
  %2684 = vmatprep.subr.mxu0 %v1639
  %2685 = vmatpush1.msra.mxu0 %v1638
  %2686 = vmatprep.subr.mxu0 %v1637
  %2687 = vmatpush1.msra.mxu0 %v1636
  %2688 = vmatprep.subr.mxu0 %v1635
  %2689 = vmatpush1.msra.mxu0 %v1634
  %2690 = vmatprep.subr.mxu0 %v1633
  %2691 = vmatpush1.msra.mxu0 %v1632
  %2692 = vmatprep.subr.mxu0 0.0
  %2693 = vmatpush2.msra.mxu0 0.0
  %2694 = vmatprep.subr.mxu0 0.0
  %2695 = vmatpush2.msra.mxu0 0.0
  %2696 = vmatprep.subr.mxu0 0.0
  %2697 = vmatpush2.msra.mxu0 0.0
  %2698 = vmatprep.subr.mxu0 0.0
  %2699 = vmatpush2.msra.mxu0 0.0
  %2700 = vmatprep.subr.mxu0 0.0
  %2701 = vmatpush2.msra.mxu0 0.0
  %2702 = vmatprep.subr.mxu0 0.0
  %2703 = vmatpush2.msra.mxu0 0.0
  %2704 = vmatprep.subr.mxu0 0.0
  %2705 = vmatpush2.msra.mxu0 0.0
  %2706 = vmatprep.subr.mxu0 0.0
  %2707 = vmatpush2.msra.mxu0 0.0
  %2708 = vmatprep.subr.mxu0 0.0
  %2709 = vmatpush2.msra.mxu0 0.0
  %2710 = vmatprep.subr.mxu0 0.0
  %2711 = vmatpush2.msra.mxu0 0.0
  %2712 = vmatprep.subr.mxu0 0.0
  %2713 = vmatpush2.msra.mxu0 0.0
  %2714 = vmatprep.subr.mxu0 0.0
  %2715 = vmatpush2.msra.mxu0 0.0
  %2716 = vmatprep.subr.mxu0 0.0
  %2717 = vmatpush2.msra.mxu0 0.0
  %2718 = vmatprep.subr.mxu0 0.0
  %2719 = vmatpush2.msra.mxu0 0.0
  %2720 = vmatprep.subr.mxu0 0.0
  %2721 = vmatpush2.msra.mxu0 0.0
  %2722 = vmatprep.subr.mxu0 0.0
  %2723 = vmatpush2.msra.mxu0 0.0
  %2724 = vmatprep.mubr.f32.mxu0 0.0
  %2725 = vmatmul.mubr.f32.gmra.mxu0 %v2658
  %v2726 = vpop.f32.mrf.mxu0
  %v2727 = vadd.f32 %v2653, %v2726
  %v2728 = vpop.f32.mrf.mxu0
  %v2729 = vadd.f32 %v2655, %v2728
  %2730 = vdwg.mxu0
  %v2731 = vsel %vm215, %v2727, %v2729
  %v2732 = vadd.f32 %v2731, %v1656
  %v2733 = vmul.f32 %v2732, 0.5
  %v2734 = vsel %vm41, %v2732, %v2733
  %v2735 = vtanh.pop %v2734
  %v2736 = vmul.f32 %v2735, 0.5
  %v2737 = vadd.f32 %v2736, 0.5
  %v2738 = vsel %vm41, %v2735, %v2737
  %v2739 = vmul.f32 %v2738, %v2576
  %2741 = vrot.lane.b32.xlu0 %v2738, 64
  %v2742 = vpop.permute.xlu0 %2741
  %v2744 = vmul.f32 %v2738, %v2742
  %2746 = vrot.lane.b32.xlu0 %v2744, 32
  %v2747 = vpop.permute.xlu0 %2746
  %v2749 = vadd.f32 %v2739, %v2747
  %v2750 = vtanh.pop %v2749
  %2752 = vrot.lane.b32.xlu0 %v2750, 64
  %v2753 = vpop.permute.xlu0 %2752
  %v2755 = vmul.f32 %v2738, %v2753
  %v2756 = vsel %vm2580, 1, 0
  %2757 = vset.pattern.permute.xlu0 0
  %2758 = vperm.xlu0 %2757, %v2756
  %v2759 = vpop.permute.xlu0 %2758
  %vm2760 = vcmp.eq.s32.totalorder %v2759, 1
  %v2761 = vsel %vm2760, %v2749, %v2576
  %v2762 = vsel %vm2760, %v2755, %v2577
  %v2763 = vld [vmem:[%s452] sm:$0xf]
  %v2764 = vld [vmem:[%s1245] sm:$0xf]
  %vm2765 = vcmp.gt.f32.partialorder %v2764, 0.5
  %2767 = vrot.lane.b32.xlu0 %v2762, 32
  %v2768 = vpop.permute.xlu0 %2767
  %v2769 = vsel %vm65, %v2768, 0
  %2771 = vmatprep.subr.mxu0 0.0
  %2772 = vmatpush1.msra.mxu0 0.0
  %2773 = vmatprep.subr.mxu0 0.0
  %2774 = vmatpush1.msra.mxu0 0.0
  %2775 = vmatprep.subr.mxu0 0.0
  %2776 = vmatpush1.msra.mxu0 0.0
  %2777 = vmatprep.subr.mxu0 0.0
  %2778 = vmatpush1.msra.mxu0 0.0
  %2779 = vmatprep.subr.mxu0 0.0
  %2780 = vmatpush1.msra.mxu0 0.0
  %2781 = vmatprep.subr.mxu0 0.0
  %2782 = vmatpush1.msra.mxu0 0.0
  %2783 = vmatprep.subr.mxu0 0.0
  %2784 = vmatpush1.msra.mxu0 0.0
  %2785 = vmatprep.subr.mxu0 0.0
  %2786 = vmatpush1.msra.mxu0 0.0
  %2787 = vmatprep.subr.mxu0 0.0
  %2788 = vmatpush1.msra.mxu0 0.0
  %2789 = vmatprep.subr.mxu0 0.0
  %2790 = vmatpush1.msra.mxu0 0.0
  %2791 = vmatprep.subr.mxu0 0.0
  %2792 = vmatpush1.msra.mxu0 0.0
  %2793 = vmatprep.subr.mxu0 0.0
  %2794 = vmatpush1.msra.mxu0 0.0
  %2795 = vmatprep.subr.mxu0 %v1655
  %2796 = vmatpush1.msra.mxu0 %v1654
  %2797 = vmatprep.subr.mxu0 %v1653
  %2798 = vmatpush1.msra.mxu0 %v1652
  %2799 = vmatprep.subr.mxu0 %v1651
  %2800 = vmatpush1.msra.mxu0 %v1650
  %2801 = vmatprep.subr.mxu0 %v1649
  %2802 = vmatpush1.msra.mxu0 %v1648
  %2803 = vmatprep.subr.mxu0 0.0
  %2804 = vmatpush2.msra.mxu0 0.0
  %2805 = vmatprep.subr.mxu0 0.0
  %2806 = vmatpush2.msra.mxu0 0.0
  %2807 = vmatprep.subr.mxu0 0.0
  %2808 = vmatpush2.msra.mxu0 0.0
  %2809 = vmatprep.subr.mxu0 0.0
  %2810 = vmatpush2.msra.mxu0 0.0
  %2811 = vmatprep.subr.mxu0 0.0
  %2812 = vmatpush2.msra.mxu0 0.0
  %2813 = vmatprep.subr.mxu0 0.0
  %2814 = vmatpush2.msra.mxu0 0.0
  %2815 = vmatprep.subr.mxu0 0.0
  %2816 = vmatpush2.msra.mxu0 0.0
  %2817 = vmatprep.subr.mxu0 0.0
  %2818 = vmatpush2.msra.mxu0 0.0
  %2819 = vmatprep.subr.mxu0 0.0
  %2820 = vmatpush2.msra.mxu0 0.0
  %2821 = vmatprep.subr.mxu0 0.0
  %2822 = vmatpush2.msra.mxu0 0.0
  %2823 = vmatprep.subr.mxu0 0.0
  %2824 = vmatpush2.msra.mxu0 0.0
  %2825 = vmatprep.subr.mxu0 0.0
  %2826 = vmatpush2.msra.mxu0 0.0
  %2827 = vmatprep.subr.mxu0 0.0
  %2828 = vmatpush2.msra.mxu0 0.0
  %2829 = vmatprep.subr.mxu0 0.0
  %2830 = vmatpush2.msra.mxu0 0.0
  %2831 = vmatprep.subr.mxu0 0.0
  %2832 = vmatpush2.msra.mxu0 0.0
  %2833 = vmatprep.subr.mxu0 0.0
  %2834 = vmatpush2.msra.mxu0 0.0
  %2835 = vmatprep.mubr.f32.mxu0 0.0
  %2836 = vmatmul.mubr.f32.gmra.mxu0 %v2769
  %v2837 = vpop.f32.mrf.mxu0
  %v2838 = vadd.f32 0.0, %v2837
  %v2839 = vpop.f32.mrf.mxu0
  %v2840 = vadd.f32 0.0, %v2839
  %2841 = vdwg.mxu0
  %v2843 = vsel %vm1731, %v2763, 0
  %2845 = vmatprep.subr.mxu0 0.0
  %2846 = vmatpush1.msra.mxu0 0.0
  %2847 = vmatprep.subr.mxu0 0.0
  %2848 = vmatpush1.msra.mxu0 0.0
  %2849 = vmatprep.subr.mxu0 0.0
  %2850 = vmatpush1.msra.mxu0 0.0
  %2851 = vmatprep.subr.mxu0 0.0
  %2852 = vmatpush1.msra.mxu0 0.0
  %2853 = vmatprep.subr.mxu0 0.0
  %2854 = vmatpush1.msra.mxu0 0.0
  %2855 = vmatprep.subr.mxu0 0.0
  %2856 = vmatpush1.msra.mxu0 0.0
  %2857 = vmatprep.subr.mxu0 0.0
  %2858 = vmatpush1.msra.mxu0 0.0
  %2859 = vmatprep.subr.mxu0 0.0
  %2860 = vmatpush1.msra.mxu0 0.0
  %2861 = vmatprep.subr.mxu0 %v1647
  %2862 = vmatpush1.msra.mxu0 %v1646
  %2863 = vmatprep.subr.mxu0 %v1645
  %2864 = vmatpush1.msra.mxu0 %v1644
  %2865 = vmatprep.subr.mxu0 %v1643
  %2866 = vmatpush1.msra.mxu0 %v1642
  %2867 = vmatprep.subr.mxu0 %v1641
  %2868 = vmatpush1.msra.mxu0 %v1640
  %2869 = vmatprep.subr.mxu0 %v1639
  %2870 = vmatpush1.msra.mxu0 %v1638
  %2871 = vmatprep.subr.mxu0 %v1637
  %2872 = vmatpush1.msra.mxu0 %v1636
  %2873 = vmatprep.subr.mxu0 %v1635
  %2874 = vmatpush1.msra.mxu0 %v1634
  %2875 = vmatprep.subr.mxu0 %v1633
  %2876 = vmatpush1.msra.mxu0 %v1632
  %2877 = vmatprep.subr.mxu0 0.0
  %2878 = vmatpush2.msra.mxu0 0.0
  %2879 = vmatprep.subr.mxu0 0.0
  %2880 = vmatpush2.msra.mxu0 0.0
  %2881 = vmatprep.subr.mxu0 0.0
  %2882 = vmatpush2.msra.mxu0 0.0
  %2883 = vmatprep.subr.mxu0 0.0
  %2884 = vmatpush2.msra.mxu0 0.0
  %2885 = vmatprep.subr.mxu0 0.0
  %2886 = vmatpush2.msra.mxu0 0.0
  %2887 = vmatprep.subr.mxu0 0.0
  %2888 = vmatpush2.msra.mxu0 0.0
  %2889 = vmatprep.subr.mxu0 0.0
  %2890 = vmatpush2.msra.mxu0 0.0
  %2891 = vmatprep.subr.mxu0 0.0
  %2892 = vmatpush2.msra.mxu0 0.0
  %2893 = vmatprep.subr.mxu0 0.0
  %2894 = vmatpush2.msra.mxu0 0.0
  %2895 = vmatprep.subr.mxu0 0.0
  %2896 = vmatpush2.msra.mxu0 0.0
  %2897 = vmatprep.subr.mxu0 0.0
  %2898 = vmatpush2.msra.mxu0 0.0
  %2899 = vmatprep.subr.mxu0 0.0
  %2900 = vmatpush2.msra.mxu0 0.0
  %2901 = vmatprep.subr.mxu0 0.0
  %2902 = vmatpush2.msra.mxu0 0.0
  %2903 = vmatprep.subr.mxu0 0.0
  %2904 = vmatpush2.msra.mxu0 0.0
  %2905 = vmatprep.subr.mxu0 0.0
  %2906 = vmatpush2.msra.mxu0 0.0
  %2907 = vmatprep.subr.mxu0 0.0
  %2908 = vmatpush2.msra.mxu0 0.0
  %2909 = vmatprep.mubr.f32.mxu0 0.0
  %2910 = vmatmul.mubr.f32.gmra.mxu0 %v2843
  %v2911 = vpop.f32.mrf.mxu0
  %v2912 = vadd.f32 %v2838, %v2911
  %v2913 = vpop.f32.mrf.mxu0
  %v2914 = vadd.f32 %v2840, %v2913
  %2915 = vdwg.mxu0
  %v2916 = vsel %vm215, %v2912, %v2914
  %v2917 = vadd.f32 %v2916, %v1656
  %v2918 = vmul.f32 %v2917, 0.5
  %v2919 = vsel %vm41, %v2917, %v2918
  %v2920 = vtanh.pop %v2919
  %v2921 = vmul.f32 %v2920, 0.5
  %v2922 = vadd.f32 %v2921, 0.5
  %v2923 = vsel %vm41, %v2920, %v2922
  %v2924 = vmul.f32 %v2923, %v2761
  %2926 = vrot.lane.b32.xlu0 %v2923, 64
  %v2927 = vpop.permute.xlu0 %2926
  %v2929 = vmul.f32 %v2923, %v2927
  %2931 = vrot.lane.b32.xlu0 %v2929, 32
  %v2932 = vpop.permute.xlu0 %2931
  %v2934 = vadd.f32 %v2924, %v2932
  %v2935 = vtanh.pop %v2934
  %2937 = vrot.lane.b32.xlu0 %v2935, 64
  %v2938 = vpop.permute.xlu0 %2937
  %v2940 = vmul.f32 %v2923, %v2938
  %v2941 = vsel %vm2765, 1, 0
  %2942 = vset.pattern.permute.xlu0 0
  %2943 = vperm.xlu0 %2942, %v2941
  %v2944 = vpop.permute.xlu0 %2943
  %vm2945 = vcmp.eq.s32.totalorder %v2944, 1
  %v2946 = vsel %vm2945, %v2934, %v2761
  %v2947 = vsel %vm2945, %v2940, %v2762
  %v2948 = vld [vmem:[%s254] sm:$0xf]
  %v2949 = vld [vmem:[%s1440] sm:$0xf]
  %vm2950 = vcmp.gt.f32.partialorder %v2949, 0.5
  %2952 = vrot.lane.b32.xlu0 %v2947, 32
  %v2953 = vpop.permute.xlu0 %2952
  %v2954 = vsel %vm65, %v2953, 0
  %2956 = vmatprep.subr.mxu0 0.0
  %2957 = vmatpush1.msra.mxu0 0.0
  %2958 = vmatprep.subr.mxu0 0.0
  %2959 = vmatpush1.msra.mxu0 0.0
  %2960 = vmatprep.subr.mxu0 0.0
  %2961 = vmatpush1.msra.mxu0 0.0
  %2962 = vmatprep.subr.mxu0 0.0
  %2963 = vmatpush1.msra.mxu0 0.0
  %2964 = vmatprep.subr.mxu0 0.0
  %2965 = vmatpush1.msra.mxu0 0.0
  %2966 = vmatprep.subr.mxu0 0.0
  %2967 = vmatpush1.msra.mxu0 0.0
  %2968 = vmatprep.subr.mxu0 0.0
  %2969 = vmatpush1.msra.mxu0 0.0
  %2970 = vmatprep.subr.mxu0 0.0
  %2971 = vmatpush1.msra.mxu0 0.0
  %2972 = vmatprep.subr.mxu0 0.0
  %2973 = vmatpush1.msra.mxu0 0.0
  %2974 = vmatprep.subr.mxu0 0.0
  %2975 = vmatpush1.msra.mxu0 0.0
  %2976 = vmatprep.subr.mxu0 0.0
  %2977 = vmatpush1.msra.mxu0 0.0
  %2978 = vmatprep.subr.mxu0 0.0
  %2979 = vmatpush1.msra.mxu0 0.0
  %2980 = vmatprep.subr.mxu0 %v1655
  %2981 = vmatpush1.msra.mxu0 %v1654
  %2982 = vmatprep.subr.mxu0 %v1653
  %2983 = vmatpush1.msra.mxu0 %v1652
  %2984 = vmatprep.subr.mxu0 %v1651
  %2985 = vmatpush1.msra.mxu0 %v1650
  %2986 = vmatprep.subr.mxu0 %v1649
  %2987 = vmatpush1.msra.mxu0 %v1648
  %2988 = vmatprep.subr.mxu0 0.0
  %2989 = vmatpush2.msra.mxu0 0.0
  %2990 = vmatprep.subr.mxu0 0.0
  %2991 = vmatpush2.msra.mxu0 0.0
  %2992 = vmatprep.subr.mxu0 0.0
  %2993 = vmatpush2.msra.mxu0 0.0
  %2994 = vmatprep.subr.mxu0 0.0
  %2995 = vmatpush2.msra.mxu0 0.0
  %2996 = vmatprep.subr.mxu0 0.0
  %2997 = vmatpush2.msra.mxu0 0.0
  %2998 = vmatprep.subr.mxu0 0.0
  %2999 = vmatpush2.msra.mxu0 0.0
  %3000 = vmatprep.subr.mxu0 0.0
  %3001 = vmatpush2.msra.mxu0 0.0
  %3002 = vmatprep.subr.mxu0 0.0
  %3003 = vmatpush2.msra.mxu0 0.0
  %3004 = vmatprep.subr.mxu0 0.0
  %3005 = vmatpush2.msra.mxu0 0.0
  %3006 = vmatprep.subr.mxu0 0.0
  %3007 = vmatpush2.msra.mxu0 0.0
  %3008 = vmatprep.subr.mxu0 0.0
  %3009 = vmatpush2.msra.mxu0 0.0
  %3010 = vmatprep.subr.mxu0 0.0
  %3011 = vmatpush2.msra.mxu0 0.0
  %3012 = vmatprep.subr.mxu0 0.0
  %3013 = vmatpush2.msra.mxu0 0.0
  %3014 = vmatprep.subr.mxu0 0.0
  %3015 = vmatpush2.msra.mxu0 0.0
  %3016 = vmatprep.subr.mxu0 0.0
  %3017 = vmatpush2.msra.mxu0 0.0
  %3018 = vmatprep.subr.mxu0 0.0
  %3019 = vmatpush2.msra.mxu0 0.0
  %3020 = vmatprep.mubr.f32.mxu0 0.0
  %3021 = vmatmul.mubr.f32.gmra.mxu0 %v2954
  %v3022 = vpop.f32.mrf.mxu0
  %v3023 = vadd.f32 0.0, %v3022
  %v3024 = vpop.f32.mrf.mxu0
  %v3025 = vadd.f32 0.0, %v3024
  %3026 = vdwg.mxu0
  %v3028 = vsel %vm1731, %v2948, 0
  %3030 = vmatprep.subr.mxu0 0.0
  %3031 = vmatpush1.msra.mxu0 0.0
  %3032 = vmatprep.subr.mxu0 0.0
  %3033 = vmatpush1.msra.mxu0 0.0
  %3034 = vmatprep.subr.mxu0 0.0
  %3035 = vmatpush1.msra.mxu0 0.0
  %3036 = vmatprep.subr.mxu0 0.0
  %3037 = vmatpush1.msra.mxu0 0.0
  %3038 = vmatprep.subr.mxu0 0.0
  %3039 = vmatpush1.msra.mxu0 0.0
  %3040 = vmatprep.subr.mxu0 0.0
  %3041 = vmatpush1.msra.mxu0 0.0
  %3042 = vmatprep.subr.mxu0 0.0
  %3043 = vmatpush1.msra.mxu0 0.0
  %3044 = vmatprep.subr.mxu0 0.0
  %3045 = vmatpush1.msra.mxu0 0.0
  %3046 = vmatprep.subr.mxu0 %v1647
  %3047 = vmatpush1.msra.mxu0 %v1646
  %3048 = vmatprep.subr.mxu0 %v1645
  %3049 = vmatpush1.msra.mxu0 %v1644
  %3050 = vmatprep.subr.mxu0 %v1643
  %3051 = vmatpush1.msra.mxu0 %v1642
  %3052 = vmatprep.subr.mxu0 %v1641
  %3053 = vmatpush1.msra.mxu0 %v1640
  %3054 = vmatprep.subr.mxu0 %v1639
  %3055 = vmatpush1.msra.mxu0 %v1638
  %3056 = vmatprep.subr.mxu0 %v1637
  %3057 = vmatpush1.msra.mxu0 %v1636
  %3058 = vmatprep.subr.mxu0 %v1635
  %3059 = vmatpush1.msra.mxu0 %v1634
  %3060 = vmatprep.subr.mxu0 %v1633
  %3061 = vmatpush1.msra.mxu0 %v1632
  %3062 = vmatprep.subr.mxu0 0.0
  %3063 = vmatpush2.msra.mxu0 0.0
  %3064 = vmatprep.subr.mxu0 0.0
  %3065 = vmatpush2.msra.mxu0 0.0
  %3066 = vmatprep.subr.mxu0 0.0
  %3067 = vmatpush2.msra.mxu0 0.0
  %3068 = vmatprep.subr.mxu0 0.0
  %3069 = vmatpush2.msra.mxu0 0.0
  %3070 = vmatprep.subr.mxu0 0.0
  %3071 = vmatpush2.msra.mxu0 0.0
  %3072 = vmatprep.subr.mxu0 0.0
  %3073 = vmatpush2.msra.mxu0 0.0
  %3074 = vmatprep.subr.mxu0 0.0
  %3075 = vmatpush2.msra.mxu0 0.0
  %3076 = vmatprep.subr.mxu0 0.0
  %3077 = vmatpush2.msra.mxu0 0.0
  %3078 = vmatprep.subr.mxu0 0.0
  %3079 = vmatpush2.msra.mxu0 0.0
  %3080 = vmatprep.subr.mxu0 0.0
  %3081 = vmatpush2.msra.mxu0 0.0
  %3082 = vmatprep.subr.mxu0 0.0
  %3083 = vmatpush2.msra.mxu0 0.0
  %3084 = vmatprep.subr.mxu0 0.0
  %3085 = vmatpush2.msra.mxu0 0.0
  %3086 = vmatprep.subr.mxu0 0.0
  %3087 = vmatpush2.msra.mxu0 0.0
  %3088 = vmatprep.subr.mxu0 0.0
  %3089 = vmatpush2.msra.mxu0 0.0
  %3090 = vmatprep.subr.mxu0 0.0
  %3091 = vmatpush2.msra.mxu0 0.0
  %3092 = vmatprep.subr.mxu0 0.0
  %3093 = vmatpush2.msra.mxu0 0.0
  %3094 = vmatprep.mubr.f32.mxu0 0.0
  %3095 = vmatmul.mubr.f32.gmra.mxu0 %v3028
  %v3096 = vpop.f32.mrf.mxu0
  %v3097 = vadd.f32 %v3023, %v3096
  %v3098 = vpop.f32.mrf.mxu0
  %v3099 = vadd.f32 %v3025, %v3098
  %3100 = vdwg.mxu0
  %v3101 = vsel %vm215, %v3097, %v3099
  %v3102 = vadd.f32 %v3101, %v1656
  %v3103 = vmul.f32 %v3102, 0.5
  %v3104 = vsel %vm41, %v3102, %v3103
  %v3105 = vtanh.pop %v3104
  %v3106 = vmul.f32 %v3105, 0.5
  %v3107 = vadd.f32 %v3106, 0.5
  %v3108 = vsel %vm41, %v3105, %v3107
  %v3109 = vmul.f32 %v3108, %v2946
  %3111 = vrot.lane.b32.xlu0 %v3108, 64
  %v3112 = vpop.permute.xlu0 %3111
  %v3114 = vmul.f32 %v3108, %v3112
  %3116 = vrot.lane.b32.xlu0 %v3114, 32
  %v3117 = vpop.permute.xlu0 %3116
  %v3119 = vadd.f32 %v3109, %v3117
  %v3120 = vtanh.pop %v3119
  %3122 = vrot.lane.b32.xlu0 %v3120, 64
  %v3123 = vpop.permute.xlu0 %3122
  %v3125 = vmul.f32 %v3108, %v3123
  %v3126 = vsel %vm2950, 1, 0
  %3127 = vset.pattern.permute.xlu0 0
  %3128 = vperm.xlu0 %3127, %v3126
  %v3129 = vpop.permute.xlu0 %3128
  %vm3130 = vcmp.eq.s32.totalorder %v3129, 1
  %v3131 = vsel %vm3130, %v3125, %v2947
  %v3132 = vld [vmem:[%s8] sm:$0xff]
  %v3133 = vld [vmem:[%s8 + $0x8] sm:$0xff]
  %v3134 = vld [vmem:[%s8 + $0x10] sm:$0xff]
  %v3135 = vld [vmem:[%s8 + $0x18] sm:$0xff]
  %v3136 = vld [vmem:[%s8 + $0x20] sm:$0xff]
  %v3137 = vld [vmem:[%s8 + $0x28] sm:$0xff]
  %v3138 = vld [vmem:[%s8 + $0x30] sm:$0xff]
  %v3139 = vld [vmem:[%s8 + $0x38] sm:$0xff]
  %v3141 = vrot.slane %v3131, 2
  %3142 = vrot.lane.b32.xlu0 %v3141, 32
  %v3143 = vpop.permute.xlu0 %3142
  %v3144 = vsel %vm65, %v3143, 0
  %3146 = vmatprep.subr.mxu0 0.0
  %3147 = vmatpush1.msra.mxu0 0.0
  %3148 = vmatprep.subr.mxu0 0.0
  %3149 = vmatpush1.msra.mxu0 0.0
  %3150 = vmatprep.subr.mxu0 0.0
  %3151 = vmatpush1.msra.mxu0 0.0
  %3152 = vmatprep.subr.mxu0 0.0
  %3153 = vmatpush1.msra.mxu0 0.0
  %3154 = vmatprep.subr.mxu0 0.0
  %3155 = vmatpush1.msra.mxu0 0.0
  %3156 = vmatprep.subr.mxu0 0.0
  %3157 = vmatpush1.msra.mxu0 0.0
  %3158 = vmatprep.subr.mxu0 0.0
  %3159 = vmatpush1.msra.mxu0 0.0
  %3160 = vmatprep.subr.mxu0 0.0
  %3161 = vmatpush1.msra.mxu0 0.0
  %3162 = vmatprep.subr.mxu0 0.0
  %3163 = vmatpush1.msra.mxu0 0.0
  %3164 = vmatprep.subr.mxu0 0.0
  %3165 = vmatpush1.msra.mxu0 0.0
  %3166 = vmatprep.subr.mxu0 0.0
  %3167 = vmatpush1.msra.mxu0 0.0
  %3168 = vmatprep.subr.mxu0 0.0
  %3169 = vmatpush1.msra.mxu0 0.0
  %3170 = vmatprep.subr.mxu0 0.0
  %3171 = vmatpush1.msra.mxu0 %v3139
  %3172 = vmatprep.subr.mxu0 0.0
  %3173 = vmatpush1.msra.mxu0 %v3138
  %3174 = vmatprep.subr.mxu0 0.0
  %3175 = vmatpush1.msra.mxu0 %v3137
  %3176 = vmatprep.subr.mxu0 0.0
  %3177 = vmatpush1.msra.mxu0 %v3136
  %3178 = vmatprep.subr.mxu0 0.0
  %3179 = vmatpush2.msra.mxu0 0.0
  %3180 = vmatprep.subr.mxu0 0.0
  %3181 = vmatpush2.msra.mxu0 0.0
  %3182 = vmatprep.subr.mxu0 0.0
  %3183 = vmatpush2.msra.mxu0 0.0
  %3184 = vmatprep.subr.mxu0 0.0
  %3185 = vmatpush2.msra.mxu0 0.0
  %3186 = vmatprep.subr.mxu0 0.0
  %3187 = vmatpush2.msra.mxu0 0.0
  %3188 = vmatprep.subr.mxu0 0.0
  %3189 = vmatpush2.msra.mxu0 0.0
  %3190 = vmatprep.subr.mxu0 0.0
  %3191 = vmatpush2.msra.mxu0 0.0
  %3192 = vmatprep.subr.mxu0 0.0
  %3193 = vmatpush2.msra.mxu0 0.0
  %3194 = vmatprep.subr.mxu0 0.0
  %3195 = vmatpush2.msra.mxu0 0.0
  %3196 = vmatprep.subr.mxu0 0.0
  %3197 = vmatpush2.msra.mxu0 0.0
  %3198 = vmatprep.subr.mxu0 0.0
  %3199 = vmatpush2.msra.mxu0 0.0
  %3200 = vmatprep.subr.mxu0 0.0
  %3201 = vmatpush2.msra.mxu0 0.0
  %3202 = vmatprep.subr.mxu0 0.0
  %3203 = vmatpush2.msra.mxu0 0.0
  %3204 = vmatprep.subr.mxu0 0.0
  %3205 = vmatpush2.msra.mxu0 0.0
  %3206 = vmatprep.subr.mxu0 0.0
  %3207 = vmatpush2.msra.mxu0 0.0
  %3208 = vmatprep.subr.mxu0 0.0
  %3209 = vmatpush2.msra.mxu0 0.0
  %3210 = vmatprep.mubr.f32.mxu0 0.0
  %3211 = vmatmul.mubr.f32.gmra.mxu0 %v3144
  %v3212 = vpop.f32.mrf.mxu0
  %v3213 = vadd.f32 0.0, %v3212
  %v3214 = vpop.f32.mrf.mxu0
  %3215 = vdwg.mxu0
  %3216 = vrot.lane.b32.xlu0 %v3131, 32
  %v3217 = vpop.permute.xlu0 %3216
  %v3218 = vsel %vm65, %v3217, 0
  %3220 = vmatprep.subr.mxu0 0.0
  %3221 = vmatpush1.msra.mxu0 0.0
  %3222 = vmatprep.subr.mxu0 0.0
  %3223 = vmatpush1.msra.mxu0 0.0
  %3224 = vmatprep.subr.mxu0 0.0
  %3225 = vmatpush1.msra.mxu0 0.0
  %3226 = vmatprep.subr.mxu0 0.0
  %3227 = vmatpush1.msra.mxu0 0.0
  %3228 = vmatprep.subr.mxu0 0.0
  %3229 = vmatpush1.msra.mxu0 0.0
  %3230 = vmatprep.subr.mxu0 0.0
  %3231 = vmatpush1.msra.mxu0 0.0
  %3232 = vmatprep.subr.mxu0 0.0
  %3233 = vmatpush1.msra.mxu0 0.0
  %3234 = vmatprep.subr.mxu0 0.0
  %3235 = vmatpush1.msra.mxu0 0.0
  %3236 = vmatprep.subr.mxu0 0.0
  %3237 = vmatpush1.msra.mxu0 0.0
  %3238 = vmatprep.subr.mxu0 0.0
  %3239 = vmatpush1.msra.mxu0 0.0
  %3240 = vmatprep.subr.mxu0 0.0
  %3241 = vmatpush1.msra.mxu0 0.0
  %3242 = vmatprep.subr.mxu0 0.0
  %3243 = vmatpush1.msra.mxu0 0.0
  %3244 = vmatprep.subr.mxu0 0.0
  %3245 = vmatpush1.msra.mxu0 %v3135
  %3246 = vmatprep.subr.mxu0 0.0
  %3247 = vmatpush1.msra.mxu0 %v3134
  %3248 = vmatprep.subr.mxu0 0.0
  %3249 = vmatpush1.msra.mxu0 %v3133
  %3250 = vmatprep.subr.mxu0 0.0
  %3251 = vmatpush1.msra.mxu0 %v3132
  %3252 = vmatprep.subr.mxu0 0.0
  %3253 = vmatpush2.msra.mxu0 0.0
  %3254 = vmatprep.subr.mxu0 0.0
  %3255 = vmatpush2.msra.mxu0 0.0
  %3256 = vmatprep.subr.mxu0 0.0
  %3257 = vmatpush2.msra.mxu0 0.0
  %3258 = vmatprep.subr.mxu0 0.0
  %3259 = vmatpush2.msra.mxu0 0.0
  %3260 = vmatprep.subr.mxu0 0.0
  %3261 = vmatpush2.msra.mxu0 0.0
  %3262 = vmatprep.subr.mxu0 0.0
  %3263 = vmatpush2.msra.mxu0 0.0
  %3264 = vmatprep.subr.mxu0 0.0
  %3265 = vmatpush2.msra.mxu0 0.0
  %3266 = vmatprep.subr.mxu0 0.0
  %3267 = vmatpush2.msra.mxu0 0.0
  %3268 = vmatprep.subr.mxu0 0.0
  %3269 = vmatpush2.msra.mxu0 0.0
  %3270 = vmatprep.subr.mxu0 0.0
  %3271 = vmatpush2.msra.mxu0 0.0
  %3272 = vmatprep.subr.mxu0 0.0
  %3273 = vmatpush2.msra.mxu0 0.0
  %3274 = vmatprep.subr.mxu0 0.0
  %3275 = vmatpush2.msra.mxu0 0.0
  %3276 = vmatprep.subr.mxu0 0.0
  %3277 = vmatpush2.msra.mxu0 0.0
  %3278 = vmatprep.subr.mxu0 0.0
  %3279 = vmatpush2.msra.mxu0 0.0
  %3280 = vmatprep.subr.mxu0 0.0
  %3281 = vmatpush2.msra.mxu0 0.0
  %3282 = vmatprep.subr.mxu0 0.0
  %3283 = vmatpush2.msra.mxu0 0.0
  %3284 = vmatprep.mubr.f32.mxu0 0.0
  %3285 = vmatmul.mubr.f32.gmra.mxu0 %v3218
  %v3286 = vpop.f32.mrf.mxu0
  %v3287 = vadd.f32 %v3213, %v3286
  %v3288 = vpop.f32.mrf.mxu0
  %3289 = vdwg.mxu0
  %v3290 = vld [vmem:[#allocation3] sm:$0x1]
  %v3292 = vlaneseq
  %v3293 = vshrl.u32 %v3292, 7
  %v3294 = vsub.s32 0, %v3293
  %v3295 = vrot.slane %v3290, %v3294
  %v3297 = vadd.f32 %v3287, %v3295
  %vm3298 = vcmask 1024
  %3299 = vst.msk [vmem:[%s10] sm:$0x3] %vm3298, %v3297
  // Predicated region
  $region42: #{lstm_net_forward.1} parent=0 // pred_check
    _
  $region43: #{lstm_net_forward.1} parent=0 // pred_check_branch
    %3301 = sbr.rel (0) target = $region45
  $region44: #{lstm_net_forward.1} parent=0 // pred_region
    _
  $region45: #{lstm_net_forward.1} parent=0 // pred_fallthru
    _
  // Predicated region
  $region46: #{lstm_net_forward.1} parent=0 // pred_check
    _
  $region47: #{lstm_net_forward.1} parent=0 // pred_check_branch
    %3303 = sbr.rel (0) target = $region49
  $region48: #{lstm_net_forward.1} parent=0 // pred_region
    _
  $region49: #{lstm_net_forward.1} parent=0 // pred_fallthru
    _

</llo_original>
